<compile_context>
chip_gen: v5e
topology: v5e:2x2
jax: 0.10.0
libtpu: 0.0.40
codegen_flags: <defaults>
</compile_context>

<pallas_src>
import functools

import jax
import jax.numpy as jnp
from jax import lax
from jax.experimental import pallas as pl
from jax.experimental.pallas import tpu as pltpu


# --------------------------------------------------------------------------- #
# Kernel
# --------------------------------------------------------------------------- #
def pos_lstm_kernel(idx_ref,          # (B_pad*seq,) int32, SMEM (scalar prefetch)
                    emb_hbm,          # (vocab, E)  HBM (pl.ANY)
                    wih_ref,          # (E, 4Hp)    VMEM (gate-padded W_ih^T)
                    whh_ref,          # (Hp, 4Hp)   VMEM (gate-padded W_hh^T)
                    bias_ref,         # (1, 4Hp)    VMEM f32 (b_ih + b_hh, padded)
                    wd_ref,           # (Hp, T)     VMEM (row-padded W_dense^T)
                    bd_ref,           # (1, T)      VMEM f32
                    out_ref,          # (seq*B_TILE, T) VMEM f32
                    xbuf,             # (seq*B_TILE, E)   scratch (gathered emb rows)
                    gx_ref,           # (seq*B_TILE, 4Hp) scratch f32
                    hseq_ref,         # (seq*B_TILE, Hp)  scratch f32
                    dma_sem,          # (1,) DMA semaphore
                    *, seq, b_tile, hp):
    nrows = seq * b_tile
    base = pl.program_id(0) * nrows
    cdt = whh_ref.dtype               # matmul compute dtype (f32 or bf16)

    # ---- 1) DMA-gather the seq*B_TILE embedding rows this batch chunk needs ----
    # Row r = t*b_tile + b holds timestep t of sequence b within this chunk.
    @pl.loop(0, nrows)
    def _issue(r):
        row = idx_ref[base + r]
        pltpu.make_async_copy(emb_hbm.at[row], xbuf.at[r], dma_sem.at[0]).start()

    @pl.loop(0, nrows)
    def _drain(r):
        # All copies share one semaphore and have identical sizes, so waiting
        # nrows times guarantees every row has landed before xbuf is read.
        pltpu.make_async_copy(emb_hbm.at[0], xbuf.at[r], dma_sem.at[0]).wait()

    # ---- 2) Input projection + (b_ih + b_hh) for every timestep, one matmul ----
    x = xbuf[...].astype(cdt)
    gx_ref[...] = jnp.dot(x, wih_ref[...],
                          preferred_element_type=jnp.float32) + bias_ref[...]

    # ---- 3) Serial LSTM recurrence over time, batched over B_TILE sequences ----
    def step(t, carry):
        h, c = carry
        row0 = pl.multiple_of(t * b_tile, b_tile)
        gates = gx_ref[pl.ds(row0, b_tile), :] + jnp.dot(
            h.astype(cdt), whh_ref[...], preferred_element_type=jnp.float32)
        # Gate blocks are 128-lane aligned: i=[0,hp) f=[hp,2hp) g=[2hp,3hp) o=[3hp,4hp)
        sig_if = jax.nn.sigmoid(gates[:, 0:2 * hp])
        g_gate = jnp.tanh(gates[:, 2 * hp:3 * hp])
        o_gate = jax.nn.sigmoid(gates[:, 3 * hp:4 * hp])
        i_gate = sig_if[:, 0:hp]
        f_gate = sig_if[:, hp:2 * hp]
        c = f_gate * c + i_gate * g_gate
        h = o_gate * jnp.tanh(c)
        hseq_ref[pl.ds(row0, b_tile), :] = h      # lane-dense (Hp-wide) store
        return (h, c)

    h0 = jnp.zeros((b_tile, hp), jnp.float32)
    c0 = jnp.zeros((b_tile, hp), jnp.float32)
    lax.fori_loop(0, seq, step, (h0, c0), unroll=True)

    # ---- 4) Dense + log_softmax, batched over all seq*B_TILE rows --------------
    hs = hseq_ref[...].astype(wd_ref.dtype)
    logits = jnp.dot(hs, wd_ref[...],
                     preferred_element_type=jnp.float32) + bd_ref[...]
    m = jnp.max(logits, axis=-1, keepdims=True)
    z = logits - m
    lse = jnp.log(jnp.sum(jnp.exp(z), axis=-1, keepdims=True))
    out_ref[...] = z - lse


# --------------------------------------------------------------------------- #
# One-time, weight-only preprocessing (cache the result; do NOT re-run per call)
# --------------------------------------------------------------------------- #
def prepare_params(emb, w_ih, w_hh, b_ih, b_hh, w_d, b_d, *,
                   compute_dtype=jnp.float32):
    four_h, _ = w_ih.shape
    H = four_h // 4
    Hp = ((H + 127) // 128) * 128          # gate blocks padded to a 128-lane boundary
    T = w_d.shape[0]

    def pad_gate_cols(m):                  # (rows, 4H) -> (rows, 4Hp), gate g at [g*Hp, g*Hp+H)
        rows = m.shape[0]
        out = jnp.zeros((rows, 4 * Hp), m.dtype)
        for g in range(4):                 # PyTorch gate order: i, f, g, o
            out = out.at[:, g * Hp:g * Hp + H].set(m[:, g * H:(g + 1) * H])
        return out

    wih_p = pad_gate_cols(w_ih.T).astype(compute_dtype)                       # (E, 4Hp)
    whh_p = jnp.zeros((Hp, 4 * Hp), jnp.float32).at[:H].set(
        pad_gate_cols(w_hh.T)).astype(compute_dtype)                          # (Hp, 4Hp)
    bias_p = pad_gate_cols((b_ih + b_hh)[None, :]).astype(jnp.float32)        # (1, 4Hp)
    wd_p = jnp.zeros((Hp, T), jnp.float32).at[:H].set(w_d.T).astype(compute_dtype)  # (Hp, T)
    bd_p = b_d[None, :].astype(jnp.float32)                                   # (1, T)
    return {
        "emb": emb.astype(jnp.float32),    # stays in HBM; rows are DMA-gathered
        "wih": wih_p, "whh": whh_p, "bias": bias_p, "wd": wd_p, "bd": bd_p,
    }


# --------------------------------------------------------------------------- #
# Forward pass wrapper
# --------------------------------------------------------------------------- #
@functools.partial(jax.jit, static_argnames=("b_tile",))
def pos_forward(word_indices, params, *, b_tile=8):
    """POSModel forward. word_indices: (seq,) or (B, seq) int. Returns log-probs."""
    emb, wih, whh = params["emb"], params["wih"], params["whh"]
    bias, wd, bd = params["bias"], params["wd"], params["bd"]

    squeeze = word_indices.ndim == 1
    idx = word_indices[None, :] if squeeze else word_indices
    idx = idx.astype(jnp.int32)
    B, seq = idx.shape
    E = emb.shape[1]
    Hp = whh.shape[0]
    T = wd.shape[1]

    # Pad the batch to a multiple of b_tile (padded rows reuse index 0, sliced off below).
    n_chunks = (B + b_tile - 1) // b_tile
    B_pad = n_chunks * b_tile
    idx = jnp.pad(idx, ((0, B_pad - B), (0, 0)))
    # Flatten time-major within each chunk: flat[c*nrows + t*b_tile + b] = idx[c*b_tile+b, t]
    idx_flat = idx.reshape(n_chunks, b_tile, seq).transpose(0, 2, 1).reshape(-1)

    nrows = seq * b_tile
    kernel = functools.partial(pos_lstm_kernel, seq=seq, b_tile=b_tile, hp=Hp)
    out = pl.pallas_call(
        kernel,
        out_shape=jax.ShapeDtypeStruct((n_chunks, nrows, T), jnp.float32),
        grid_spec=pltpu.PrefetchScalarGridSpec(
            num_scalar_prefetch=1,
            grid=(n_chunks,),
            in_specs=[
                pl.BlockSpec(memory_space=pl.ANY),                 # embedding (HBM)
                pl.BlockSpec((E, 4 * Hp), lambda c, s: (0, 0)),    # W_ih^T (padded)
                pl.BlockSpec((Hp, 4 * Hp), lambda c, s: (0, 0)),   # W_hh^T (padded)
                pl.BlockSpec((1, 4 * Hp), lambda c, s: (0, 0)),    # b_ih + b_hh
                pl.BlockSpec((Hp, T), lambda c, s: (0, 0)),        # W_dense^T
                pl.BlockSpec((1, T), lambda c, s: (0, 0)),         # b_dense
            ],
            out_specs=pl.BlockSpec((None, nrows, T), lambda c, s: (c, 0, 0)),
            scratch_shapes=[
                pltpu.VMEM((nrows, E), emb.dtype),         # gathered embedding rows
                pltpu.VMEM((nrows, 4 * Hp), jnp.float32),  # gx = x @ W_ih^T + bias
                pltpu.VMEM((nrows, Hp), jnp.float32),      # per-step hidden states
                pltpu.SemaphoreType.DMA((1,)),             # shared gather semaphore
            ]),
        compiler_params=pltpu.CompilerParams(
            dimension_semantics=("parallel",),
            vmem_limit_bytes=32 * 1024 * 1024),
    )(idx_flat, emb, wih, whh, bias, wd, bd)

    # (n_chunks, seq*b_tile, T) time-major  ->  (B, seq, T)
    out = out.reshape(n_chunks, seq, b_tile, T).transpose(0, 2, 1, 3)
    out = out.reshape(B_pad, seq, T)[:B]
    return out[0] if squeeze else out


# --------------------------------------------------------------------------- #
# Pure-JAX f32 reference with exact PyTorch POSModel semantics
# --------------------------------------------------------------------------- #
def reference_forward(word_indices, emb, w_ih, w_hh, b_ih, b_hh, w_d, b_d):
    H = w_hh.shape[1]
    x = emb[word_indices]                        # (seq, E)
    gx = x @ w_ih.T + (b_ih + b_hh)              # (seq, 4H)

    def step(carry, gxt):
        h, c = carry
        gates = gxt + h @ w_hh.T
        i = jax.nn.sigmoid(gates[0:H])
        f = jax.nn.sigmoid(gates[H:2 * H])
        g = jnp.tanh(gates[2 * H:3 * H])
        o = jax.nn.sigmoid(gates[3 * H:4 * H])
        c = f * c + i * g
        h = o * jnp.tanh(c)
        return (h, c), h

    init = (jnp.zeros((H,), jnp.float32), jnp.zeros((H,), jnp.float32))
    _, hs = lax.scan(step, init, gx)
    logits = hs @ w_d.T + b_d
    return jax.nn.log_softmax(logits, axis=-1)


if __name__ == "__main__":
    embedding_dim, hidden_dim, vocab_size, target_size = 32, 32, 256, 8
    seq_len, batch = 8, 16

    key = jax.random.PRNGKey(0)
    ks = jax.random.split(key, 8)
    scale = 1.0 / float(jnp.sqrt(hidden_dim))
    emb = jax.random.normal(ks[0], (vocab_size, embedding_dim), jnp.float32)
    w_ih = jax.random.uniform(ks[1], (4 * hidden_dim, embedding_dim), jnp.float32, -scale, scale)
    w_hh = jax.random.uniform(ks[2], (4 * hidden_dim, hidden_dim), jnp.float32, -scale, scale)
    b_ih = jax.random.uniform(ks[3], (4 * hidden_dim,), jnp.float32, -scale, scale)
    b_hh = jax.random.uniform(ks[4], (4 * hidden_dim,), jnp.float32, -scale, scale)
    w_d = jax.random.uniform(ks[5], (target_size, hidden_dim), jnp.float32, -scale, scale)
    b_d = jax.random.uniform(ks[6], (target_size,), jnp.float32, -scale, scale)
    idx = jax.random.randint(ks[7], (batch, seq_len), 0, vocab_size, jnp.int32)

    ref = jax.vmap(
        lambda wi: reference_forward(wi, emb, w_ih, w_hh, b_ih, b_hh, w_d, b_d))(idx)

    # ---- f32 parameters: strict check against the exact module reference -------
    p32 = prepare_params(emb, w_ih, w_hh, b_ih, b_hh, w_d, b_d,
                         compute_dtype=jnp.float32)
    out32 = jax.block_until_ready(pos_forward(idx, p32))
    assert out32.shape == (batch, seq_len, target_size)
    err32 = float(jnp.max(jnp.abs(out32 - ref)))
    assert err32 < 2e-4, f"f32 max abs err = {err32}"

    # ---- single-sequence API (the module's original forward signature) ---------
    out1 = jax.block_until_ready(pos_forward(idx[0], p32))
    assert out1.shape == (seq_len, target_size)
    assert float(jnp.max(jnp.abs(out1 - ref[0]))) < 2e-4

    # ---- bf16 weights (native MXU format): loose quantization sanity bound -----
    pbf = prepare_params(emb, w_ih, w_hh, b_ih, b_hh, w_d, b_d,
                         compute_dtype=jnp.bfloat16)
    outbf = jax.block_until_ready(pos_forward(idx, pbf))
    errbf = float(jnp.max(jnp.abs(outbf - ref)))
    assert bool(jnp.all(jnp.isfinite(outbf))) and errbf < 0.15, (
        f"bf16 max abs err = {errbf}")

    print("KERNEL_OK")
</pallas_src>

<mosaic_0001>
module attributes {stable_mosaic.version = 11 : i64} {
  func.func @pos_lstm_kernel(%arg0: i32, %arg1: memref<128xi32, #tpu.memory_space<smem>>, %arg2: memref<256x32xf32, #tpu.memory_space<any>>, %arg3: memref<32x512xf32, #tpu.memory_space<vmem>>, %arg4: memref<128x512xf32, #tpu.memory_space<vmem>>, %arg5: memref<1x512xf32, #tpu.memory_space<vmem>>, %arg6: memref<128x8xf32, #tpu.memory_space<vmem>>, %arg7: memref<1x8xf32, #tpu.memory_space<vmem>>, %arg8: memref<1x64x8xf32, #tpu.memory_space<vmem>>, %arg9: memref<64x32xf32, #tpu.memory_space<vmem>>, %arg10: memref<64x512xf32, #tpu.memory_space<vmem>>, %arg11: memref<64x128xf32, #tpu.memory_space<vmem>>, %arg12: memref<1x!tpu.dma_semaphore, #tpu.memory_space<semaphore_mem>>) attributes {dimension_semantics = [#tpu.dimension_semantics<parallel>], iteration_bounds = array<i64: 2>, scalar_prefetch = 1 : i64, scratch_operands = 4 : i64, tpu.core_type = #tpu.core_type<tc>, window_params = [{}, {pipeline_mode = #tpu.pipeline_mode<synchronous>, transform_indices = @transform_1, window_bounds = array<i64: 32, 512>}, {pipeline_mode = #tpu.pipeline_mode<synchronous>, transform_indices = @transform_2, window_bounds = array<i64: 128, 512>}, {pipeline_mode = #tpu.pipeline_mode<synchronous>, transform_indices = @transform_3, window_bounds = array<i64: 1, 512>}, {pipeline_mode = #tpu.pipeline_mode<synchronous>, transform_indices = @transform_4, window_bounds = array<i64: 128, 8>}, {pipeline_mode = #tpu.pipeline_mode<synchronous>, transform_indices = @transform_5, window_bounds = array<i64: 1, 8>}, {transform_indices = @transform_6, window_bounds = array<i64: 1, 64, 8>}]} {
    %c64_i32 = arith.constant 64 : i32
    %0 = arith.muli %arg0, %c64_i32 : i32
    %c0_i32 = arith.constant 0 : i32
    %c64_i32_0 = arith.constant 64 : i32
    %1 = arith.addi %c0_i32, %c64_i32_0 : i32
    %c1_i32 = arith.constant 1 : i32
    scf.for %arg13 = %c0_i32 to %1 step %c1_i32  : i32 {
      %c1_i32_93 = arith.constant 1 : i32
      %271 = arith.muli %arg13, %c1_i32_93 : i32
      %c0_i32_94 = arith.constant 0 : i32
      %272 = arith.addi %c0_i32_94, %271 : i32
      %273 = arith.addi %0, %272 : i32
      %274 = arith.index_cast %273 : i32 to index
      %275 = memref.load %arg1[%274] : memref<128xi32, #tpu.memory_space<smem>>
      %c0_i32_95 = arith.constant 0 : i32
      %c0_i32_96 = arith.constant 0 : i32
      %276 = tpu.memref_slice %arg2[%275, %c0_i32_96] : memref<256x32xf32, #tpu.memory_space<any>> -> memref<1x32xf32, #tpu.memory_space<any>>
      %277 = tpu.memref_squeeze %276 : memref<1x32xf32, #tpu.memory_space<any>> -> memref<32xf32, #tpu.memory_space<any>>
      %c0_i32_97 = arith.constant 0 : i32
      %278 = tpu.memref_slice %arg9[%272, %c0_i32_97] : memref<64x32xf32, #tpu.memory_space<vmem>> -> memref<1x32xf32, #tpu.memory_space<vmem>>
      %279 = tpu.memref_squeeze %278 : memref<1x32xf32, #tpu.memory_space<vmem>> -> memref<32xf32, #tpu.memory_space<vmem>>
      %280 = tpu.memref_slice %arg12[%c0_i32_95] : memref<1x!tpu.dma_semaphore, #tpu.memory_space<semaphore_mem>> -> memref<1x!tpu.dma_semaphore, #tpu.memory_space<semaphore_mem>>
      %281 = tpu.memref_squeeze %280 : memref<1x!tpu.dma_semaphore, #tpu.memory_space<semaphore_mem>> -> memref<!tpu.dma_semaphore, #tpu.memory_space<semaphore_mem>>
      tpu.enqueue_dma source(%277 : memref<32xf32, #tpu.memory_space<any>>) target(%279 : memref<32xf32, #tpu.memory_space<vmem>>) target_semaphore(%281 : memref<!tpu.dma_semaphore, #tpu.memory_space<semaphore_mem>>)
    }
    %c64_i32_1 = arith.constant 64 : i32
    %c0_i32_2 = arith.constant 0 : i32
    %c64_i32_3 = arith.constant 64 : i32
    %2 = arith.addi %c0_i32_2, %c64_i32_3 : i32
    %c1_i32_4 = arith.constant 1 : i32
    scf.for %arg13 = %c0_i32_2 to %2 step %c1_i32_4  : i32 {
      %c1_i32_93 = arith.constant 1 : i32
      %271 = arith.muli %arg13, %c1_i32_93 : i32
      %c0_i32_94 = arith.constant 0 : i32
      %272 = arith.addi %c0_i32_94, %271 : i32
      %c0_i32_95 = arith.constant 0 : i32
      %c0_i32_96 = arith.constant 0 : i32
      %c0_i32_97 = arith.constant 0 : i32
      %273 = tpu.memref_slice %arg2[%c0_i32_95, %c0_i32_97] : memref<256x32xf32, #tpu.memory_space<any>> -> memref<1x32xf32, #tpu.memory_space<any>>
      %274 = tpu.memref_squeeze %273 : memref<1x32xf32, #tpu.memory_space<any>> -> memref<32xf32, #tpu.memory_space<any>>
      %c0_i32_98 = arith.constant 0 : i32
      %275 = tpu.memref_slice %arg9[%272, %c0_i32_98] : memref<64x32xf32, #tpu.memory_space<vmem>> -> memref<1x32xf32, #tpu.memory_space<vmem>>
      %276 = tpu.memref_squeeze %275 : memref<1x32xf32, #tpu.memory_space<vmem>> -> memref<32xf32, #tpu.memory_space<vmem>>
      %277 = tpu.memref_slice %arg12[%c0_i32_96] : memref<1x!tpu.dma_semaphore, #tpu.memory_space<semaphore_mem>> -> memref<1x!tpu.dma_semaphore, #tpu.memory_space<semaphore_mem>>
      %278 = tpu.memref_squeeze %277 : memref<1x!tpu.dma_semaphore, #tpu.memory_space<semaphore_mem>> -> memref<!tpu.dma_semaphore, #tpu.memory_space<semaphore_mem>>
      tpu.wait_dma2 semaphore(%278 : memref<!tpu.dma_semaphore, #tpu.memory_space<semaphore_mem>>) src(%274 : memref<32xf32, #tpu.memory_space<any>>) dst(%276 : memref<32xf32, #tpu.memory_space<vmem>>)
    }
    %c64_i32_5 = arith.constant 64 : i32
    %c0 = arith.constant 0 : index
    %c0_6 = arith.constant 0 : index
    %3 = vector.load %arg9[%c0, %c0_6] : memref<64x32xf32, #tpu.memory_space<vmem>>, vector<64x32xf32>
    %c0_7 = arith.constant 0 : index
    %c0_8 = arith.constant 0 : index
    %4 = vector.load %arg3[%c0_7, %c0_8] : memref<32x512xf32, #tpu.memory_space<vmem>>, vector<32x512xf32>
    %cst = arith.constant dense<0.000000e+00> : vector<64x512xf32>
    %5 = tpu.matmul %3, %4, %cst {dimension_numbers = #tpu.dot_dimension_numbers<[1], [0], [0], [1], [0, 0, 1, 1], [], []>} : vector<64x32xf32>, vector<32x512xf32>, vector<64x512xf32> -> vector<64x512xf32>
    %c0_9 = arith.constant 0 : index
    %c0_10 = arith.constant 0 : index
    %6 = vector.load %arg5[%c0_9, %c0_10] : memref<1x512xf32, #tpu.memory_space<vmem>>, vector<1x512xf32>
    %7 = vector.broadcast %6 : vector<1x512xf32> to vector<64x512xf32>
    %8 = arith.addf %5, %7 : vector<64x512xf32>
    %c0_11 = arith.constant 0 : index
    %c0_12 = arith.constant 0 : index
    %9 = vector.load %arg10[%c0_11, %c0_12] : memref<64x512xf32, #tpu.memory_space<vmem>>, vector<64x512xf32>
    tpu.vector_store %arg10[%c0_11, %c0_12], %8 {strides = array<i32>} : memref<64x512xf32, #tpu.memory_space<vmem>>, vector<64x512xf32>,
    %cst_13 = arith.constant 0.000000e+00 : f32
    %10 = vector.broadcast %cst_13 : f32 to vector<8x128xf32>
    %cst_14 = arith.constant 0.000000e+00 : f32
    %11 = vector.broadcast %cst_14 : f32 to vector<8x128xf32>
    %c0_i32_15 = arith.constant 0 : i32
    %c8_i32 = arith.constant 8 : i32
    %12 = arith.muli %c0_i32_15, %c8_i32 : i32
    %13 = tpu.assume_multiple %12, 8 : i32
    %14 = arith.index_cast %13 : i32 to index
    %c0_16 = arith.constant 0 : index
    %15 = vector.load %arg10[%14, %c0_16] : memref<64x512xf32, #tpu.memory_space<vmem>>, vector<8x512xf32>
    %c0_17 = arith.constant 0 : index
    %c0_18 = arith.constant 0 : index
    %16 = vector.load %arg4[%c0_17, %c0_18] : memref<128x512xf32, #tpu.memory_space<vmem>>, vector<128x512xf32>
    %cst_19 = arith.constant dense<0.000000e+00> : vector<8x512xf32>
    %17 = tpu.matmul %10, %16, %cst_19 {dimension_numbers = #tpu.dot_dimension_numbers<[1], [0], [0], [1], [0, 0, 1, 1], [], []>} : vector<8x128xf32>, vector<128x512xf32>, vector<8x512xf32> -> vector<8x512xf32>
    %18 = arith.addf %15, %17 : vector<8x512xf32>
    %19 = vector.extract_strided_slice %18 {offsets = [0, 0], sizes = [8, 256], strides = [1, 1]} : vector<8x512xf32> to vector<8x256xf32>
    %20 = arith.negf %19 : vector<8x256xf32>
    %21 = math.exp %20 : vector<8x256xf32>
    %cst_20 = arith.constant 1.000000e+00 : f32
    %22 = vector.broadcast %cst_20 : f32 to vector<8x256xf32>
    %23 = arith.addf %22, %21 : vector<8x256xf32>
    %24 = arith.divf %22, %23 : vector<8x256xf32>
    %25 = vector.extract_strided_slice %18 {offsets = [0, 256], sizes = [8, 128], strides = [1, 1]} : vector<8x512xf32> to vector<8x128xf32>
    %26 = math.tanh %25 : vector<8x128xf32>
    %27 = vector.extract_strided_slice %18 {offsets = [0, 384], sizes = [8, 128], strides = [1, 1]} : vector<8x512xf32> to vector<8x128xf32>
    %28 = arith.negf %27 : vector<8x128xf32>
    %29 = math.exp %28 : vector<8x128xf32>
    %cst_21 = arith.constant 1.000000e+00 : f32
    %30 = vector.broadcast %cst_21 : f32 to vector<8x128xf32>
    %31 = arith.addf %30, %29 : vector<8x128xf32>
    %32 = arith.divf %30, %31 : vector<8x128xf32>
    %33 = vector.extract_strided_slice %24 {offsets = [0, 0], sizes = [8, 128], strides = [1, 1]} : vector<8x256xf32> to vector<8x128xf32>
    %34 = vector.extract_strided_slice %24 {offsets = [0, 128], sizes = [8, 128], strides = [1, 1]} : vector<8x256xf32> to vector<8x128xf32>
    %35 = arith.mulf %34, %11 : vector<8x128xf32>
    %36 = arith.mulf %33, %26 : vector<8x128xf32>
    %37 = arith.addf %35, %36 : vector<8x128xf32>
    %38 = math.tanh %37 : vector<8x128xf32>
    %39 = arith.mulf %32, %38 : vector<8x128xf32>
    %40 = arith.index_cast %13 : i32 to index
    %c0_22 = arith.constant 0 : index
    %41 = vector.load %arg11[%40, %c0_22] : memref<64x128xf32, #tpu.memory_space<vmem>>, vector<8x128xf32>
    tpu.vector_store %arg11[%40, %c0_22], %39 {strides = array<i32>} : memref<64x128xf32, #tpu.memory_space<vmem>>, vector<8x128xf32>,
    %c1_i32_23 = arith.constant 1 : i32
    %c8_i32_24 = arith.constant 8 : i32
    %42 = arith.muli %c1_i32_23, %c8_i32_24 : i32
    %43 = tpu.assume_multiple %42, 8 : i32
    %44 = arith.index_cast %43 : i32 to index
    %c0_25 = arith.constant 0 : index
    %45 = vector.load %arg10[%44, %c0_25] : memref<64x512xf32, #tpu.memory_space<vmem>>, vector<8x512xf32>
    %c0_26 = arith.constant 0 : index
    %c0_27 = arith.constant 0 : index
    %46 = vector.load %arg4[%c0_26, %c0_27] : memref<128x512xf32, #tpu.memory_space<vmem>>, vector<128x512xf32>
    %cst_28 = arith.constant dense<0.000000e+00> : vector<8x512xf32>
    %47 = tpu.matmul %39, %46, %cst_28 {dimension_numbers = #tpu.dot_dimension_numbers<[1], [0], [0], [1], [0, 0, 1, 1], [], []>} : vector<8x128xf32>, vector<128x512xf32>, vector<8x512xf32> -> vector<8x512xf32>
    %48 = arith.addf %45, %47 : vector<8x512xf32>
    %49 = vector.extract_strided_slice %48 {offsets = [0, 0], sizes = [8, 256], strides = [1, 1]} : vector<8x512xf32> to vector<8x256xf32>
    %50 = arith.negf %49 : vector<8x256xf32>
    %51 = math.exp %50 : vector<8x256xf32>
    %cst_29 = arith.constant 1.000000e+00 : f32
    %52 = vector.broadcast %cst_29 : f32 to vector<8x256xf32>
    %53 = arith.addf %52, %51 : vector<8x256xf32>
    %54 = arith.divf %52, %53 : vector<8x256xf32>
    %55 = vector.extract_strided_slice %48 {offsets = [0, 256], sizes = [8, 128], strides = [1, 1]} : vector<8x512xf32> to vector<8x128xf32>
    %56 = math.tanh %55 : vector<8x128xf32>
    %57 = vector.extract_strided_slice %48 {offsets = [0, 384], sizes = [8, 128], strides = [1, 1]} : vector<8x512xf32> to vector<8x128xf32>
    %58 = arith.negf %57 : vector<8x128xf32>
    %59 = math.exp %58 : vector<8x128xf32>
    %cst_30 = arith.constant 1.000000e+00 : f32
    %60 = vector.broadcast %cst_30 : f32 to vector<8x128xf32>
    %61 = arith.addf %60, %59 : vector<8x128xf32>
    %62 = arith.divf %60, %61 : vector<8x128xf32>
    %63 = vector.extract_strided_slice %54 {offsets = [0, 0], sizes = [8, 128], strides = [1, 1]} : vector<8x256xf32> to vector<8x128xf32>
    %64 = vector.extract_strided_slice %54 {offsets = [0, 128], sizes = [8, 128], strides = [1, 1]} : vector<8x256xf32> to vector<8x128xf32>
    %65 = arith.mulf %64, %37 : vector<8x128xf32>
    %66 = arith.mulf %63, %56 : vector<8x128xf32>
    %67 = arith.addf %65, %66 : vector<8x128xf32>
    %68 = math.tanh %67 : vector<8x128xf32>
    %69 = arith.mulf %62, %68 : vector<8x128xf32>
    %70 = arith.index_cast %43 : i32 to index
    %c0_31 = arith.constant 0 : index
    %71 = vector.load %arg11[%70, %c0_31] : memref<64x128xf32, #tpu.memory_space<vmem>>, vector<8x128xf32>
    tpu.vector_store %arg11[%70, %c0_31], %69 {strides = array<i32>} : memref<64x128xf32, #tpu.memory_space<vmem>>, vector<8x128xf32>,
    %c2_i32 = arith.constant 2 : i32
    %c8_i32_32 = arith.constant 8 : i32
    %72 = arith.muli %c2_i32, %c8_i32_32 : i32
    %73 = tpu.assume_multiple %72, 8 : i32
    %74 = arith.index_cast %73 : i32 to index
    %c0_33 = arith.constant 0 : index
    %75 = vector.load %arg10[%74, %c0_33] : memref<64x512xf32, #tpu.memory_space<vmem>>, vector<8x512xf32>
    %c0_34 = arith.constant 0 : index
    %c0_35 = arith.constant 0 : index
    %76 = vector.load %arg4[%c0_34, %c0_35] : memref<128x512xf32, #tpu.memory_space<vmem>>, vector<128x512xf32>
    %cst_36 = arith.constant dense<0.000000e+00> : vector<8x512xf32>
    %77 = tpu.matmul %69, %76, %cst_36 {dimension_numbers = #tpu.dot_dimension_numbers<[1], [0], [0], [1], [0, 0, 1, 1], [], []>} : vector<8x128xf32>, vector<128x512xf32>, vector<8x512xf32> -> vector<8x512xf32>
    %78 = arith.addf %75, %77 : vector<8x512xf32>
    %79 = vector.extract_strided_slice %78 {offsets = [0, 0], sizes = [8, 256], strides = [1, 1]} : vector<8x512xf32> to vector<8x256xf32>
    %80 = arith.negf %79 : vector<8x256xf32>
    %81 = math.exp %80 : vector<8x256xf32>
    %cst_37 = arith.constant 1.000000e+00 : f32
    %82 = vector.broadcast %cst_37 : f32 to vector<8x256xf32>
    %83 = arith.addf %82, %81 : vector<8x256xf32>
    %84 = arith.divf %82, %83 : vector<8x256xf32>
    %85 = vector.extract_strided_slice %78 {offsets = [0, 256], sizes = [8, 128], strides = [1, 1]} : vector<8x512xf32> to vector<8x128xf32>
    %86 = math.tanh %85 : vector<8x128xf32>
    %87 = vector.extract_strided_slice %78 {offsets = [0, 384], sizes = [8, 128], strides = [1, 1]} : vector<8x512xf32> to vector<8x128xf32>
    %88 = arith.negf %87 : vector<8x128xf32>
    %89 = math.exp %88 : vector<8x128xf32>
    %cst_38 = arith.constant 1.000000e+00 : f32
    %90 = vector.broadcast %cst_38 : f32 to vector<8x128xf32>
    %91 = arith.addf %90, %89 : vector<8x128xf32>
    %92 = arith.divf %90, %91 : vector<8x128xf32>
    %93 = vector.extract_strided_slice %84 {offsets = [0, 0], sizes = [8, 128], strides = [1, 1]} : vector<8x256xf32> to vector<8x128xf32>
    %94 = vector.extract_strided_slice %84 {offsets = [0, 128], sizes = [8, 128], strides = [1, 1]} : vector<8x256xf32> to vector<8x128xf32>
    %95 = arith.mulf %94, %67 : vector<8x128xf32>
    %96 = arith.mulf %93, %86 : vector<8x128xf32>
    %97 = arith.addf %95, %96 : vector<8x128xf32>
    %98 = math.tanh %97 : vector<8x128xf32>
    %99 = arith.mulf %92, %98 : vector<8x128xf32>
    %100 = arith.index_cast %73 : i32 to index
    %c0_39 = arith.constant 0 : index
    %101 = vector.load %arg11[%100, %c0_39] : memref<64x128xf32, #tpu.memory_space<vmem>>, vector<8x128xf32>
    tpu.vector_store %arg11[%100, %c0_39], %99 {strides = array<i32>} : memref<64x128xf32, #tpu.memory_space<vmem>>, vector<8x128xf32>,
    %c3_i32 = arith.constant 3 : i32
    %c8_i32_40 = arith.constant 8 : i32
    %102 = arith.muli %c3_i32, %c8_i32_40 : i32
    %103 = tpu.assume_multiple %102, 8 : i32
    %104 = arith.index_cast %103 : i32 to index
    %c0_41 = arith.constant 0 : index
    %105 = vector.load %arg10[%104, %c0_41] : memref<64x512xf32, #tpu.memory_space<vmem>>, vector<8x512xf32>
    %c0_42 = arith.constant 0 : index
    %c0_43 = arith.constant 0 : index
    %106 = vector.load %arg4[%c0_42, %c0_43] : memref<128x512xf32, #tpu.memory_space<vmem>>, vector<128x512xf32>
    %cst_44 = arith.constant dense<0.000000e+00> : vector<8x512xf32>
    %107 = tpu.matmul %99, %106, %cst_44 {dimension_numbers = #tpu.dot_dimension_numbers<[1], [0], [0], [1], [0, 0, 1, 1], [], []>} : vector<8x128xf32>, vector<128x512xf32>, vector<8x512xf32> -> vector<8x512xf32>
    %108 = arith.addf %105, %107 : vector<8x512xf32>
    %109 = vector.extract_strided_slice %108 {offsets = [0, 0], sizes = [8, 256], strides = [1, 1]} : vector<8x512xf32> to vector<8x256xf32>
    %110 = arith.negf %109 : vector<8x256xf32>
    %111 = math.exp %110 : vector<8x256xf32>
    %cst_45 = arith.constant 1.000000e+00 : f32
    %112 = vector.broadcast %cst_45 : f32 to vector<8x256xf32>
    %113 = arith.addf %112, %111 : vector<8x256xf32>
    %114 = arith.divf %112, %113 : vector<8x256xf32>
    %115 = vector.extract_strided_slice %108 {offsets = [0, 256], sizes = [8, 128], strides = [1, 1]} : vector<8x512xf32> to vector<8x128xf32>
    %116 = math.tanh %115 : vector<8x128xf32>
    %117 = vector.extract_strided_slice %108 {offsets = [0, 384], sizes = [8, 128], strides = [1, 1]} : vector<8x512xf32> to vector<8x128xf32>
    %118 = arith.negf %117 : vector<8x128xf32>
    %119 = math.exp %118 : vector<8x128xf32>
    %cst_46 = arith.constant 1.000000e+00 : f32
    %120 = vector.broadcast %cst_46 : f32 to vector<8x128xf32>
    %121 = arith.addf %120, %119 : vector<8x128xf32>
    %122 = arith.divf %120, %121 : vector<8x128xf32>
    %123 = vector.extract_strided_slice %114 {offsets = [0, 0], sizes = [8, 128], strides = [1, 1]} : vector<8x256xf32> to vector<8x128xf32>
    %124 = vector.extract_strided_slice %114 {offsets = [0, 128], sizes = [8, 128], strides = [1, 1]} : vector<8x256xf32> to vector<8x128xf32>
    %125 = arith.mulf %124, %97 : vector<8x128xf32>
    %126 = arith.mulf %123, %116 : vector<8x128xf32>
    %127 = arith.addf %125, %126 : vector<8x128xf32>
    %128 = math.tanh %127 : vector<8x128xf32>
    %129 = arith.mulf %122, %128 : vector<8x128xf32>
    %130 = arith.index_cast %103 : i32 to index
    %c0_47 = arith.constant 0 : index
    %131 = vector.load %arg11[%130, %c0_47] : memref<64x128xf32, #tpu.memory_space<vmem>>, vector<8x128xf32>
    tpu.vector_store %arg11[%130, %c0_47], %129 {strides = array<i32>} : memref<64x128xf32, #tpu.memory_space<vmem>>, vector<8x128xf32>,
    %c4_i32 = arith.constant 4 : i32
    %c8_i32_48 = arith.constant 8 : i32
    %132 = arith.muli %c4_i32, %c8_i32_48 : i32
    %133 = tpu.assume_multiple %132, 8 : i32
    %134 = arith.index_cast %133 : i32 to index
    %c0_49 = arith.constant 0 : index
    %135 = vector.load %arg10[%134, %c0_49] : memref<64x512xf32, #tpu.memory_space<vmem>>, vector<8x512xf32>
    %c0_50 = arith.constant 0 : index
    %c0_51 = arith.constant 0 : index
    %136 = vector.load %arg4[%c0_50, %c0_51] : memref<128x512xf32, #tpu.memory_space<vmem>>, vector<128x512xf32>
    %cst_52 = arith.constant dense<0.000000e+00> : vector<8x512xf32>
    %137 = tpu.matmul %129, %136, %cst_52 {dimension_numbers = #tpu.dot_dimension_numbers<[1], [0], [0], [1], [0, 0, 1, 1], [], []>} : vector<8x128xf32>, vector<128x512xf32>, vector<8x512xf32> -> vector<8x512xf32>
    %138 = arith.addf %135, %137 : vector<8x512xf32>
    %139 = vector.extract_strided_slice %138 {offsets = [0, 0], sizes = [8, 256], strides = [1, 1]} : vector<8x512xf32> to vector<8x256xf32>
    %140 = arith.negf %139 : vector<8x256xf32>
    %141 = math.exp %140 : vector<8x256xf32>
    %cst_53 = arith.constant 1.000000e+00 : f32
    %142 = vector.broadcast %cst_53 : f32 to vector<8x256xf32>
    %143 = arith.addf %142, %141 : vector<8x256xf32>
    %144 = arith.divf %142, %143 : vector<8x256xf32>
    %145 = vector.extract_strided_slice %138 {offsets = [0, 256], sizes = [8, 128], strides = [1, 1]} : vector<8x512xf32> to vector<8x128xf32>
    %146 = math.tanh %145 : vector<8x128xf32>
    %147 = vector.extract_strided_slice %138 {offsets = [0, 384], sizes = [8, 128], strides = [1, 1]} : vector<8x512xf32> to vector<8x128xf32>
    %148 = arith.negf %147 : vector<8x128xf32>
    %149 = math.exp %148 : vector<8x128xf32>
    %cst_54 = arith.constant 1.000000e+00 : f32
    %150 = vector.broadcast %cst_54 : f32 to vector<8x128xf32>
    %151 = arith.addf %150, %149 : vector<8x128xf32>
    %152 = arith.divf %150, %151 : vector<8x128xf32>
    %153 = vector.extract_strided_slice %144 {offsets = [0, 0], sizes = [8, 128], strides = [1, 1]} : vector<8x256xf32> to vector<8x128xf32>
    %154 = vector.extract_strided_slice %144 {offsets = [0, 128], sizes = [8, 128], strides = [1, 1]} : vector<8x256xf32> to vector<8x128xf32>
    %155 = arith.mulf %154, %127 : vector<8x128xf32>
    %156 = arith.mulf %153, %146 : vector<8x128xf32>
    %157 = arith.addf %155, %156 : vector<8x128xf32>
    %158 = math.tanh %157 : vector<8x128xf32>
    %159 = arith.mulf %152, %158 : vector<8x128xf32>
    %160 = arith.index_cast %133 : i32 to index
    %c0_55 = arith.constant 0 : index
    %161 = vector.load %arg11[%160, %c0_55] : memref<64x128xf32, #tpu.memory_space<vmem>>, vector<8x128xf32>
    tpu.vector_store %arg11[%160, %c0_55], %159 {strides = array<i32>} : memref<64x128xf32, #tpu.memory_space<vmem>>, vector<8x128xf32>,
    %c5_i32 = arith.constant 5 : i32
    %c8_i32_56 = arith.constant 8 : i32
    %162 = arith.muli %c5_i32, %c8_i32_56 : i32
    %163 = tpu.assume_multiple %162, 8 : i32
    %164 = arith.index_cast %163 : i32 to index
    %c0_57 = arith.constant 0 : index
    %165 = vector.load %arg10[%164, %c0_57] : memref<64x512xf32, #tpu.memory_space<vmem>>, vector<8x512xf32>
    %c0_58 = arith.constant 0 : index
    %c0_59 = arith.constant 0 : index
    %166 = vector.load %arg4[%c0_58, %c0_59] : memref<128x512xf32, #tpu.memory_space<vmem>>, vector<128x512xf32>
    %cst_60 = arith.constant dense<0.000000e+00> : vector<8x512xf32>
    %167 = tpu.matmul %159, %166, %cst_60 {dimension_numbers = #tpu.dot_dimension_numbers<[1], [0], [0], [1], [0, 0, 1, 1], [], []>} : vector<8x128xf32>, vector<128x512xf32>, vector<8x512xf32> -> vector<8x512xf32>
    %168 = arith.addf %165, %167 : vector<8x512xf32>
    %169 = vector.extract_strided_slice %168 {offsets = [0, 0], sizes = [8, 256], strides = [1, 1]} : vector<8x512xf32> to vector<8x256xf32>
    %170 = arith.negf %169 : vector<8x256xf32>
    %171 = math.exp %170 : vector<8x256xf32>
    %cst_61 = arith.constant 1.000000e+00 : f32
    %172 = vector.broadcast %cst_61 : f32 to vector<8x256xf32>
    %173 = arith.addf %172, %171 : vector<8x256xf32>
    %174 = arith.divf %172, %173 : vector<8x256xf32>
    %175 = vector.extract_strided_slice %168 {offsets = [0, 256], sizes = [8, 128], strides = [1, 1]} : vector<8x512xf32> to vector<8x128xf32>
    %176 = math.tanh %175 : vector<8x128xf32>
    %177 = vector.extract_strided_slice %168 {offsets = [0, 384], sizes = [8, 128], strides = [1, 1]} : vector<8x512xf32> to vector<8x128xf32>
    %178 = arith.negf %177 : vector<8x128xf32>
    %179 = math.exp %178 : vector<8x128xf32>
    %cst_62 = arith.constant 1.000000e+00 : f32
    %180 = vector.broadcast %cst_62 : f32 to vector<8x128xf32>
    %181 = arith.addf %180, %179 : vector<8x128xf32>
    %182 = arith.divf %180, %181 : vector<8x128xf32>
    %183 = vector.extract_strided_slice %174 {offsets = [0, 0], sizes = [8, 128], strides = [1, 1]} : vector<8x256xf32> to vector<8x128xf32>
    %184 = vector.extract_strided_slice %174 {offsets = [0, 128], sizes = [8, 128], strides = [1, 1]} : vector<8x256xf32> to vector<8x128xf32>
    %185 = arith.mulf %184, %157 : vector<8x128xf32>
    %186 = arith.mulf %183, %176 : vector<8x128xf32>
    %187 = arith.addf %185, %186 : vector<8x128xf32>
    %188 = math.tanh %187 : vector<8x128xf32>
    %189 = arith.mulf %182, %188 : vector<8x128xf32>
    %190 = arith.index_cast %163 : i32 to index
    %c0_63 = arith.constant 0 : index
    %191 = vector.load %arg11[%190, %c0_63] : memref<64x128xf32, #tpu.memory_space<vmem>>, vector<8x128xf32>
    tpu.vector_store %arg11[%190, %c0_63], %189 {strides = array<i32>} : memref<64x128xf32, #tpu.memory_space<vmem>>, vector<8x128xf32>,
    %c6_i32 = arith.constant 6 : i32
    %c8_i32_64 = arith.constant 8 : i32
    %192 = arith.muli %c6_i32, %c8_i32_64 : i32
    %193 = tpu.assume_multiple %192, 8 : i32
    %194 = arith.index_cast %193 : i32 to index
    %c0_65 = arith.constant 0 : index
    %195 = vector.load %arg10[%194, %c0_65] : memref<64x512xf32, #tpu.memory_space<vmem>>, vector<8x512xf32>
    %c0_66 = arith.constant 0 : index
    %c0_67 = arith.constant 0 : index
    %196 = vector.load %arg4[%c0_66, %c0_67] : memref<128x512xf32, #tpu.memory_space<vmem>>, vector<128x512xf32>
    %cst_68 = arith.constant dense<0.000000e+00> : vector<8x512xf32>
    %197 = tpu.matmul %189, %196, %cst_68 {dimension_numbers = #tpu.dot_dimension_numbers<[1], [0], [0], [1], [0, 0, 1, 1], [], []>} : vector<8x128xf32>, vector<128x512xf32>, vector<8x512xf32> -> vector<8x512xf32>
    %198 = arith.addf %195, %197 : vector<8x512xf32>
    %199 = vector.extract_strided_slice %198 {offsets = [0, 0], sizes = [8, 256], strides = [1, 1]} : vector<8x512xf32> to vector<8x256xf32>
    %200 = arith.negf %199 : vector<8x256xf32>
    %201 = math.exp %200 : vector<8x256xf32>
    %cst_69 = arith.constant 1.000000e+00 : f32
    %202 = vector.broadcast %cst_69 : f32 to vector<8x256xf32>
    %203 = arith.addf %202, %201 : vector<8x256xf32>
    %204 = arith.divf %202, %203 : vector<8x256xf32>
    %205 = vector.extract_strided_slice %198 {offsets = [0, 256], sizes = [8, 128], strides = [1, 1]} : vector<8x512xf32> to vector<8x128xf32>
    %206 = math.tanh %205 : vector<8x128xf32>
    %207 = vector.extract_strided_slice %198 {offsets = [0, 384], sizes = [8, 128], strides = [1, 1]} : vector<8x512xf32> to vector<8x128xf32>
    %208 = arith.negf %207 : vector<8x128xf32>
    %209 = math.exp %208 : vector<8x128xf32>
    %cst_70 = arith.constant 1.000000e+00 : f32
    %210 = vector.broadcast %cst_70 : f32 to vector<8x128xf32>
    %211 = arith.addf %210, %209 : vector<8x128xf32>
    %212 = arith.divf %210, %211 : vector<8x128xf32>
    %213 = vector.extract_strided_slice %204 {offsets = [0, 0], sizes = [8, 128], strides = [1, 1]} : vector<8x256xf32> to vector<8x128xf32>
    %214 = vector.extract_strided_slice %204 {offsets = [0, 128], sizes = [8, 128], strides = [1, 1]} : vector<8x256xf32> to vector<8x128xf32>
    %215 = arith.mulf %214, %187 : vector<8x128xf32>
    %216 = arith.mulf %213, %206 : vector<8x128xf32>
    %217 = arith.addf %215, %216 : vector<8x128xf32>
    %218 = math.tanh %217 : vector<8x128xf32>
    %219 = arith.mulf %212, %218 : vector<8x128xf32>
    %220 = arith.index_cast %193 : i32 to index
    %c0_71 = arith.constant 0 : index
    %221 = vector.load %arg11[%220, %c0_71] : memref<64x128xf32, #tpu.memory_space<vmem>>, vector<8x128xf32>
    tpu.vector_store %arg11[%220, %c0_71], %219 {strides = array<i32>} : memref<64x128xf32, #tpu.memory_space<vmem>>, vector<8x128xf32>,
    %c7_i32 = arith.constant 7 : i32
    %c8_i32_72 = arith.constant 8 : i32
    %222 = arith.muli %c7_i32, %c8_i32_72 : i32
    %223 = tpu.assume_multiple %222, 8 : i32
    %224 = arith.index_cast %223 : i32 to index
    %c0_73 = arith.constant 0 : index
    %225 = vector.load %arg10[%224, %c0_73] : memref<64x512xf32, #tpu.memory_space<vmem>>, vector<8x512xf32>
    %c0_74 = arith.constant 0 : index
    %c0_75 = arith.constant 0 : index
    %226 = vector.load %arg4[%c0_74, %c0_75] : memref<128x512xf32, #tpu.memory_space<vmem>>, vector<128x512xf32>
    %cst_76 = arith.constant dense<0.000000e+00> : vector<8x512xf32>
    %227 = tpu.matmul %219, %226, %cst_76 {dimension_numbers = #tpu.dot_dimension_numbers<[1], [0], [0], [1], [0, 0, 1, 1], [], []>} : vector<8x128xf32>, vector<128x512xf32>, vector<8x512xf32> -> vector<8x512xf32>
    %228 = arith.addf %225, %227 : vector<8x512xf32>
    %229 = vector.extract_strided_slice %228 {offsets = [0, 0], sizes = [8, 256], strides = [1, 1]} : vector<8x512xf32> to vector<8x256xf32>
    %230 = arith.negf %229 : vector<8x256xf32>
    %231 = math.exp %230 : vector<8x256xf32>
    %cst_77 = arith.constant 1.000000e+00 : f32
    %232 = vector.broadcast %cst_77 : f32 to vector<8x256xf32>
    %233 = arith.addf %232, %231 : vector<8x256xf32>
    %234 = arith.divf %232, %233 : vector<8x256xf32>
    %235 = vector.extract_strided_slice %228 {offsets = [0, 256], sizes = [8, 128], strides = [1, 1]} : vector<8x512xf32> to vector<8x128xf32>
    %236 = math.tanh %235 : vector<8x128xf32>
    %237 = vector.extract_strided_slice %228 {offsets = [0, 384], sizes = [8, 128], strides = [1, 1]} : vector<8x512xf32> to vector<8x128xf32>
    %238 = arith.negf %237 : vector<8x128xf32>
    %239 = math.exp %238 : vector<8x128xf32>
    %cst_78 = arith.constant 1.000000e+00 : f32
    %240 = vector.broadcast %cst_78 : f32 to vector<8x128xf32>
    %241 = arith.addf %240, %239 : vector<8x128xf32>
    %242 = arith.divf %240, %241 : vector<8x128xf32>
    %243 = vector.extract_strided_slice %234 {offsets = [0, 0], sizes = [8, 128], strides = [1, 1]} : vector<8x256xf32> to vector<8x128xf32>
    %244 = vector.extract_strided_slice %234 {offsets = [0, 128], sizes = [8, 128], strides = [1, 1]} : vector<8x256xf32> to vector<8x128xf32>
    %245 = arith.mulf %244, %217 : vector<8x128xf32>
    %246 = arith.mulf %243, %236 : vector<8x128xf32>
    %247 = arith.addf %245, %246 : vector<8x128xf32>
    %248 = math.tanh %247 : vector<8x128xf32>
    %249 = arith.mulf %242, %248 : vector<8x128xf32>
    %250 = arith.index_cast %223 : i32 to index
    %c0_79 = arith.constant 0 : index
    %251 = vector.load %arg11[%250, %c0_79] : memref<64x128xf32, #tpu.memory_space<vmem>>, vector<8x128xf32>
    tpu.vector_store %arg11[%250, %c0_79], %249 {strides = array<i32>} : memref<64x128xf32, #tpu.memory_space<vmem>>, vector<8x128xf32>,
    %c8_i32_80 = arith.constant 8 : i32
    %c0_81 = arith.constant 0 : index
    %c0_82 = arith.constant 0 : index
    %252 = vector.load %arg11[%c0_81, %c0_82] : memref<64x128xf32, #tpu.memory_space<vmem>>, vector<64x128xf32>
    %c0_83 = arith.constant 0 : index
    %c0_84 = arith.constant 0 : index
    %253 = vector.load %arg6[%c0_83, %c0_84] : memref<128x8xf32, #tpu.memory_space<vmem>>, vector<128x8xf32>
    %cst_85 = arith.constant dense<0.000000e+00> : vector<64x8xf32>
    %254 = tpu.matmul %252, %253, %cst_85 {dimension_numbers = #tpu.dot_dimension_numbers<[1], [0], [0], [1], [0, 0, 1, 1], [], []>} : vector<64x128xf32>, vector<128x8xf32>, vector<64x8xf32> -> vector<64x8xf32>
    %c0_86 = arith.constant 0 : index
    %c0_87 = arith.constant 0 : index
    %255 = vector.load %arg7[%c0_86, %c0_87] : memref<1x8xf32, #tpu.memory_space<vmem>>, vector<1x8xf32>
    %256 = vector.broadcast %255 : vector<1x8xf32> to vector<64x8xf32>
    %257 = arith.addf %254, %256 : vector<64x8xf32>
    %cst_88 = arith.constant dense<0xFF800000> : vector<64xf32>
    %258 = vector.multi_reduction <maximumf>, %257, %cst_88 [1] : vector<64x8xf32> to vector<64xf32>
    %259 = vector.shape_cast %258 : vector<64xf32> to vector<64x1xf32>
    %260 = vector.broadcast %259 : vector<64x1xf32> to vector<64x8xf32>
    %261 = arith.subf %257, %260 : vector<64x8xf32>
    %262 = math.exp %261 : vector<64x8xf32>
    %cst_89 = arith.constant dense<0.000000e+00> : vector<64xf32>
    %263 = vector.multi_reduction <add>, %262, %cst_89 [1] : vector<64x8xf32> to vector<64xf32>
    %264 = vector.shape_cast %263 : vector<64xf32> to vector<64x1xf32>
    %265 = math.log %264 : vector<64x1xf32>
    %266 = vector.broadcast %265 : vector<64x1xf32> to vector<64x8xf32>
    %267 = arith.subf %261, %266 : vector<64x8xf32>
    %c0_90 = arith.constant 0 : index
    %c0_91 = arith.constant 0 : index
    %c0_92 = arith.constant 0 : index
    %268 = vector.load %arg8[%c0_90, %c0_91, %c0_92] : memref<1x64x8xf32, #tpu.memory_space<vmem>>, vector<1x64x8xf32>
    %269 = vector.shape_cast %268 : vector<1x64x8xf32> to vector<64x8xf32>
    %270 = vector.shape_cast %267 : vector<64x8xf32> to vector<1x64x8xf32>
    tpu.vector_store %arg8[%c0_90, %c0_91, %c0_92], %270 {strides = array<i32>} : memref<1x64x8xf32, #tpu.memory_space<vmem>>, vector<1x64x8xf32>,
    return
  }
  func.func @transform_1(%arg0: i32, %arg1: memref<128xi32, #tpu.memory_space<smem>>) -> (i32, i32) {
    %c0_i32 = arith.constant 0 : i32
    %c0_i32_0 = arith.constant 0 : i32
    %c0_i32_1 = arith.constant 0 : i32
    return %c0_i32, %c0_i32_0 : i32, i32
  }
  func.func @transform_2(%arg0: i32, %arg1: memref<128xi32, #tpu.memory_space<smem>>) -> (i32, i32) {
    %c0_i32 = arith.constant 0 : i32
    %c0_i32_0 = arith.constant 0 : i32
    %c0_i32_1 = arith.constant 0 : i32
    return %c0_i32, %c0_i32_0 : i32, i32
  }
  func.func @transform_3(%arg0: i32, %arg1: memref<128xi32, #tpu.memory_space<smem>>) -> (i32, i32) {
    %c0_i32 = arith.constant 0 : i32
    %c0_i32_0 = arith.constant 0 : i32
    %c0_i32_1 = arith.constant 0 : i32
    return %c0_i32, %c0_i32_0 : i32, i32
  }
  func.func @transform_4(%arg0: i32, %arg1: memref<128xi32, #tpu.memory_space<smem>>) -> (i32, i32) {
    %c0_i32 = arith.constant 0 : i32
    %c0_i32_0 = arith.constant 0 : i32
    %c0_i32_1 = arith.constant 0 : i32
    return %c0_i32, %c0_i32_0 : i32, i32
  }
  func.func @transform_5(%arg0: i32, %arg1: memref<128xi32, #tpu.memory_space<smem>>) -> (i32, i32) {
    %c0_i32 = arith.constant 0 : i32
    %c0_i32_0 = arith.constant 0 : i32
    %c0_i32_1 = arith.constant 0 : i32
    return %c0_i32, %c0_i32_0 : i32, i32
  }
  func.func @transform_6(%arg0: i32, %arg1: memref<128xi32, #tpu.memory_space<smem>>) -> (i32, i32, i32) {
    %c0_i32 = arith.constant 0 : i32
    %c0_i32_0 = arith.constant 0 : i32
    %c0_i32_1 = arith.constant 0 : i32
    return %arg0, %c0_i32, %c0_i32_0 : i32, i32, i32
  }
}

</mosaic_0001>

<llo_original>
// kernel: pos_forward.1
$region0: #{pos_forward.1}
  #allocation0 [shape = 'u32[]', space=smem, size = 0x4, offset = 0x4, fixed_abs, tag = 'smem constant byte address 0x4 - core index']
  #allocation1 [shape = 'u32[72,128]{1,0:T(1,128)}', space=vmem, size = 0x9000, scoped, tag = 'internal scratch']
  #allocation2 [shape = 'f32[64,32]{1,0:T(8,128)}', space=vmem, size = 0x8000, scoped, tag = 'scratch operand']
  #allocation3 [shape = 'f32[64,512]{1,0:T(8,128)}', space=vmem, size = 0x20000, scoped, tag = 'scratch operand']
  #allocation4 [shape = 'f32[64,128]{1,0:T(8,128)}', space=vmem, size = 0x8000, scoped, tag = 'scratch operand']
  #allocation5 [shape = 's32[1]{0}', space=sflag, size = 0x4, scoped, tag = 'scratch operand']
  #allocation6 [shape = 's32[1]{0}', space=sflag, size = 0x4, scoped, tag = 'scoped memory for pos_forward.1']
  #allocation7 [shape = 'u8[512]{0}', space=smem, size = 0x200, scoped, tag = 'prefetched SMEM operand 0']
  #allocation10 [shape = 's32[]', space=sflag, size = 0x4, offset = 0, fixed_abs, tag = 'sflag constant byte address 0x0 - dummy sync flag']
  %s0 = inlined_call_operand.vmem [shape: s32[128], index: 0, kind: input, shape index: {}]
  %s1 = inlined_call_operand.vmem [shape: f32[256,32], index: 1, kind: input, shape index: {}]
  %s2 = inlined_call_operand.vmem [shape: f32[32,512], index: 2, kind: input, shape index: {}]
  %s3 = inlined_call_operand.hbm [shape: f32[128,512], index: 3, kind: input, shape index: {}]
  %s4 = inlined_call_operand.vmem [shape: f32[1,512], index: 4, kind: input, shape index: {}]
  %s5 = inlined_call_operand.vmem [shape: f32[128,8], index: 5, kind: input, shape index: {}]
  %s6 = inlined_call_operand.vmem [shape: f32[1,8], index: 6, kind: input, shape index: {}]
  %s7 = inlined_call_operand.vmem [shape: f32[2,64,8], index: 7, kind: output, shape index: {}]
  %s8 = sld [smem:[#allocation0]]
  $region101: #{pos_forward.1} parent=0
    _
  %s10 = ssub.s32 1, %s8
  %s11 = scalar_select 0, %s10, %s8
  %s13 = sshll.u32 %s0, 4
  %s14 = int_to_ptr.vmem [resolvable:$true] %s13
  %16 = dma.vmem_to_smem %s14, 16, [#allocation7], [#allocation6]
  %18 = dma.done [#allocation6], 16
  %19 = sfence
  $region1: #{pos_forward.1} parent=0
    #allocation8 [shape = 'u8[262144]{0}', space=vmem, size = 0x40000, scoped, tag = 'input window, operand 3, single buffered']
    #allocation9 [shape = 's32[2]{0}', space=sflag, size = 0x8, scoped, tag = 'scoped memory for pos_forward.1']
    %20 = vsyncpa [#allocation9], 0
    loop: start=0, step=1, limit=4
    $region2: #{pos_forward.1} parent=1 // loop_pre_header
      _
    $region3: #{pos_forward.1} parent=1 // loop_header
      %s22 = sphi 0, %s26
      %p23 = scmp.ge.s32.totalorder %s22, 4
      %s30 = sphi 0, %s30
      %s32 = sphi 0, %s30
      %s33 = sphi 0, %s32
      %s47 = sphi 0, %s33
      %s51 = sphi 0, %s51
      %s53 = sphi 0, %s51
      %s54 = sphi 0, %s53
      %s68 = sphi 0, %s54
      %s72 = sphi 0, %s72
      %s74 = sphi 0, %s72
      %s75 = sphi 0, %s74
      %s89 = sphi 0, %s75
      %s93 = sphi 0, %s93
      %s95 = sphi 0, %s93
      %s96 = sphi 0, %s95
      %s110 = sphi 0, %s96
      %s114 = sphi 0, %s114
      %s116 = sphi 0, %s114
      %s117 = sphi 0, %s116
      %s131 = sphi 0, %s117
      %s137 = sphi 0, %s139
      %s140 = sphi 0, %s137
      %s141 = sphi 0, %s140
      %s157 = sphi 0, %s141
    $region4: #{pos_forward.1} parent=1 // loop_header_branch
      %25 = sbr.rel (%p23) target = $region8
    $region5: #{pos_forward.1} parent=1 // loop_body
      %s27 = ssub.s32 %s22, 1
      %s28 = ssub.s32 %s22, 2
      %s29 = sadd.s32 %s22, 1
      %s31 = sadd.s32 %s30, 1
      %p34 = scmp.eq.s32.totalorder %s22, 1
      %p35 = scmp.ne.s32.totalorder %s30, %s32
      %p36 = scmp.eq.s32.totalorder %s22, 0
      %p37 = por %p35, %p36
      %p38 = scmp.ne.s32.totalorder %s30, %s32
      %p39 = scmp.eq.s32.totalorder %s27, 1
      %p40 = por %p38, %p39
      %p41 = scmp.ne.s32.totalorder %s32, %s33
      %p42 = scmp.eq.s32.totalorder %s27, 0
      %p43 = por %p41, %p42
      %p44 = scmp.ne.s32.totalorder %s32, %s33
      %p45 = scmp.eq.s32.totalorder %s28, 1
      %p46 = por %p44, %p45
      %p48 = scmp.ne.s32.totalorder %s33, %s47
      %p49 = scmp.eq.s32.totalorder %s28, 0
      %p50 = por %p48, %p49
      %s52 = sadd.s32 %s51, 1
      %p55 = scmp.eq.s32.totalorder %s22, 1
      %p56 = scmp.ne.s32.totalorder %s51, %s53
      %p57 = scmp.eq.s32.totalorder %s22, 0
      %p58 = por %p56, %p57
      %p59 = scmp.ne.s32.totalorder %s51, %s53
      %p60 = scmp.eq.s32.totalorder %s27, 1
      %p61 = por %p59, %p60
      %p62 = scmp.ne.s32.totalorder %s53, %s54
      %p63 = scmp.eq.s32.totalorder %s27, 0
      %p64 = por %p62, %p63
      %p65 = scmp.ne.s32.totalorder %s53, %s54
      %p66 = scmp.eq.s32.totalorder %s28, 1
      %p67 = por %p65, %p66
      %p69 = scmp.ne.s32.totalorder %s54, %s68
      %p70 = scmp.eq.s32.totalorder %s28, 0
      %p71 = por %p69, %p70
      %s73 = sadd.s32 %s72, 1
      %p76 = scmp.eq.s32.totalorder %s22, 1
      %p77 = scmp.ne.s32.totalorder %s72, %s74
      %p78 = scmp.eq.s32.totalorder %s22, 0
      %p79 = por %p77, %p78
      %p80 = scmp.ne.s32.totalorder %s72, %s74
      %p81 = scmp.eq.s32.totalorder %s27, 1
      %p82 = por %p80, %p81
      %p83 = scmp.ne.s32.totalorder %s74, %s75
      %p84 = scmp.eq.s32.totalorder %s27, 0
      %p85 = por %p83, %p84
      %p86 = scmp.ne.s32.totalorder %s74, %s75
      %p87 = scmp.eq.s32.totalorder %s28, 1
      %p88 = por %p86, %p87
      %p90 = scmp.ne.s32.totalorder %s75, %s89
      %p91 = scmp.eq.s32.totalorder %s28, 0
      %p92 = por %p90, %p91
      %s94 = sadd.s32 %s93, 1
      %p97 = scmp.eq.s32.totalorder %s22, 1
      %p98 = scmp.ne.s32.totalorder %s93, %s95
      %p99 = scmp.eq.s32.totalorder %s22, 0
      %p100 = por %p98, %p99
      %p101 = scmp.ne.s32.totalorder %s93, %s95
      %p102 = scmp.eq.s32.totalorder %s27, 1
      %p103 = por %p101, %p102
      %p104 = scmp.ne.s32.totalorder %s95, %s96
      %p105 = scmp.eq.s32.totalorder %s27, 0
      %p106 = por %p104, %p105
      %p107 = scmp.ne.s32.totalorder %s95, %s96
      %p108 = scmp.eq.s32.totalorder %s28, 1
      %p109 = por %p107, %p108
      %p111 = scmp.ne.s32.totalorder %s96, %s110
      %p112 = scmp.eq.s32.totalorder %s28, 0
      %p113 = por %p111, %p112
      %s115 = sadd.s32 %s114, 1
      %p118 = scmp.eq.s32.totalorder %s22, 1
      %p119 = scmp.ne.s32.totalorder %s114, %s116
      %p120 = scmp.eq.s32.totalorder %s22, 0
      %p121 = por %p119, %p120
      %p122 = scmp.ne.s32.totalorder %s114, %s116
      %p123 = scmp.eq.s32.totalorder %s27, 1
      %p124 = por %p122, %p123
      %p125 = scmp.ne.s32.totalorder %s116, %s117
      %p126 = scmp.eq.s32.totalorder %s27, 0
      %p127 = por %p125, %p126
      %p128 = scmp.ne.s32.totalorder %s116, %s117
      %p129 = scmp.eq.s32.totalorder %s28, 1
      %p130 = por %p128, %p129
      %p132 = scmp.ne.s32.totalorder %s117, %s131
      %p133 = scmp.eq.s32.totalorder %s28, 0
      %p134 = por %p132, %p133
      %s135 = ssub.s32 %s22, %s29
      %p136 = scmp.eq.s32.totalorder %s135, 0
      %s138 = sadd.s32 %s137, 1
      %s139 = scalar_select %p136, %s137, %s138
      %p142 = pneg %p136
      %p143 = scmp.eq.s32.totalorder %s22, 1
      %p144 = por %p142, %p143
      %p145 = scmp.ne.s32.totalorder %s137, %s140
      %p146 = scmp.eq.s32.totalorder %s22, 0
      %p147 = por %p145, %p146
      %p148 = scmp.ne.s32.totalorder %s137, %s140
      %p149 = scmp.eq.s32.totalorder %s27, 1
      %p150 = por %p148, %p149
      %p151 = scmp.ne.s32.totalorder %s140, %s141
      %p152 = scmp.eq.s32.totalorder %s27, 0
      %p153 = por %p151, %p152
      %p154 = scmp.ne.s32.totalorder %s140, %s141
      %p155 = scmp.eq.s32.totalorder %s28, 1
      %p156 = por %p154, %p155
      %p158 = scmp.ne.s32.totalorder %s141, %s157
      %p159 = scmp.eq.s32.totalorder %s28, 0
      %p160 = por %p158, %p159
      %p161 = scmp.le.s32.totalorder 1, %s22
      %p162 = scmp.lt.s32.totalorder %s22, 3
      %p163 = pnand %p161, %p162
      %p164 = pneg %p163
      // Predicated region
      $region9: #{pos_forward.1} parent=5 // pred_check
        _
      $region10: #{pos_forward.1} parent=5 // pred_check_branch
        %166 = sbr.rel (%p163) target = $region12
      $region11: #{pos_forward.1} parent=5 // pred_region
        %s167 = ssub.s32 %s22, 1
        // Predicated region
        $region13: #{pos_forward.1} parent=11 // pred_check
          %p168 = pneg %p43
        $region14: #{pos_forward.1} parent=11 // pred_check_branch
          %170 = sbr.rel (%p168) target = $region16
        $region15: #{pos_forward.1} parent=11 // pred_region
          _
        $region16: #{pos_forward.1} parent=11 // pred_fallthru
          _
        // Predicated region
        $region17: #{pos_forward.1} parent=11 // pred_check
          %p171 = pneg %p64
        $region18: #{pos_forward.1} parent=11 // pred_check_branch
          %173 = sbr.rel (%p171) target = $region20
        $region19: #{pos_forward.1} parent=11 // pred_region
          %175 = vsyncadd [#allocation9], 0
          %s176 = sshll.u32 %s3, 4
          %s177 = int_to_ptr.hbm [resolvable:$true] %s176
          %s178 = sshll.u32 [#allocation8], 4
          %s179 = int_to_ptr.vmem [resolvable:$true] %s178
          %184 = dma.hbm_to_vmem [thread:$0]  %s177, 8192, %s179, [#allocation9], 512, 512, 32
        $region20: #{pos_forward.1} parent=11 // pred_fallthru
          _
        // Predicated region
        $region21: #{pos_forward.1} parent=11 // pred_check
          %p185 = pneg %p85
        $region22: #{pos_forward.1} parent=11 // pred_check_branch
          %187 = sbr.rel (%p185) target = $region24
        $region23: #{pos_forward.1} parent=11 // pred_region
          _
        $region24: #{pos_forward.1} parent=11 // pred_fallthru
          _
        // Predicated region
        $region25: #{pos_forward.1} parent=11 // pred_check
          %p188 = pneg %p106
        $region26: #{pos_forward.1} parent=11 // pred_check_branch
          %190 = sbr.rel (%p188) target = $region28
        $region27: #{pos_forward.1} parent=11 // pred_region
          _
        $region28: #{pos_forward.1} parent=11 // pred_fallthru
          _
        // Predicated region
        $region29: #{pos_forward.1} parent=11 // pred_check
          %p191 = pneg %p127
        $region30: #{pos_forward.1} parent=11 // pred_check_branch
          %193 = sbr.rel (%p191) target = $region32
        $region31: #{pos_forward.1} parent=11 // pred_region
          _
        $region32: #{pos_forward.1} parent=11 // pred_fallthru
          _
      $region12: #{pos_forward.1} parent=5 // pred_fallthru
        _
      %p194 = scmp.lt.s32.totalorder %s22, 2
      // Predicated region
      $region33: #{pos_forward.1} parent=5 // pred_check
        %p195 = pneg %p194
      $region34: #{pos_forward.1} parent=5 // pred_check_branch
        %197 = sbr.rel (%p195) target = $region36
      $region35: #{pos_forward.1} parent=5 // pred_region
        _
      $region36: #{pos_forward.1} parent=5 // pred_fallthru
        _
      %p198 = scmp.le.s32.totalorder 1, %s22
      %p199 = scmp.lt.s32.totalorder %s22, 3
      %p200 = pnand %p198, %p199
      %p201 = pneg %p200
      // Predicated region
      $region37: #{pos_forward.1} parent=5 // pred_check
        _
      $region38: #{pos_forward.1} parent=5 // pred_check_branch
        %203 = sbr.rel (%p200) target = $region40
      $region39: #{pos_forward.1} parent=5 // pred_region
        %s204 = ssub.s32 %s22, 1
        // Predicated region
        $region41: #{pos_forward.1} parent=39 // pred_check
          %p205 = pneg %p64
        $region42: #{pos_forward.1} parent=39 // pred_check_branch
          %207 = sbr.rel (%p205) target = $region44
        $region43: #{pos_forward.1} parent=39 // pred_region
          %209 = dma.done [#allocation9], 8192
        $region44: #{pos_forward.1} parent=39 // pred_fallthru
          _
        %p210 = pneg %p43
        %p211 = pneg %p40
        %p212 = pneg %p64
        %p213 = pneg %p61
        %p214 = pneg %p85
        %p215 = pneg %p82
        %p216 = pneg %p106
        %p217 = pneg %p103
        %p218 = pneg %p127
        %p219 = pneg %p124
        %p220 = pneg %p153
        %p221 = pneg %p150
        %p222 = scmp.lt.s32.totalorder %s27, 1
        %s223 = scalar_select %p222, %s27, 1
        %s224 = smul.addr %s223, 8
        %s225 = smul.addr %s224, 8
        %s226 = scalar_lea.vmem %s7, %s225
        %p227 = scmp.lt.s32.totalorder %s27, 1
        %s228 = scalar_select %p227, %s27, 1
        %s229 = smul.addr %s228, 8
        %s230 = smul.addr %s229, 8
        %s231 = scalar_lea.vmem %s7, %s230
        %s232 = smul.u32 %s27, 64
        loop: start=0, step=1, limit=64
        $region45: #{pos_forward.1} parent=39 // loop_pre_header
          _
        $region46: #{pos_forward.1} parent=39 // loop_header
          %s234 = sphi 0, %s238
          %p235 = scmp.ge.s32.totalorder %s234, 64
        $region47: #{pos_forward.1} parent=39 // loop_header_branch
          %237 = sbr.rel (%p235) target = $region51
        $region48: #{pos_forward.1} parent=39 // loop_body
          %s239 = sadd.s32 %s232, %s234
          %s240 = sld [smem:[#allocation7 + %s239]]
          %s241 = scalar_lea.vmem %s1, %s240
          %s242 = scalar_lea.vmem [#allocation2], %s234
          // Predicated region
          $region52: #{pos_forward.1} parent=48 // pred_check
            _
          $region53: #{pos_forward.1} parent=48 // pred_check_branch
            %244 = sbr.rel target = $region55
          $region54: #{pos_forward.1} parent=48 // pred_region
            // Predicated region
            $region67: #{pos_forward.1} parent=54 // pred_check
              _
            $region68: #{pos_forward.1} parent=54 // pred_check_branch
              %260 = sbr.rel (0) target = $region70
            $region69: #{pos_forward.1} parent=54 // pred_region
              %s262 = ssub.s32 2, 1
              loop: start=0, step=1, limit=1
              $region71: #{pos_forward.1} parent=69 // loop_pre_header
                _
              $region72: #{pos_forward.1} parent=69 // loop_header
                %s264 = sphi 0, %s268
                %p265 = scmp.ge.s32.totalorder %s264, 1
                %s269 = sphi %s241, %s241
                %s270 = sphi %s242, %s242
              $region73: #{pos_forward.1} parent=69 // loop_header_branch
                %267 = sbr.rel (%p265) target = $region77
              $region74: #{pos_forward.1} parent=69 // loop_body
                %v271 = vld [vmem:[%s269] sm:%s262]
                %272 = vst [vmem:[%s270] sm:%s262] %v271
              $region75: #{pos_forward.1} parent=69 // loop_footer
                %s268 = sadd.s32 1, %s264
              $region76: #{pos_forward.1} parent=69 // loop_footer_branch
                %263 = sbr.rel target = $region72
              $region77: #{pos_forward.1} parent=69 // loop_exit
                _
            $region70: #{pos_forward.1} parent=54 // pred_fallthru
              _
          $region55: #{pos_forward.1} parent=48 // pred_fallthru
            _
          // Predicated region
          $region56: #{pos_forward.1} parent=48 // pred_check
            _
          $region57: #{pos_forward.1} parent=48 // pred_check_branch
            %246 = sbr.rel (0) target = $region59
          $region58: #{pos_forward.1} parent=48 // pred_region
            %s248 = ssub.s32 2, 1
            loop: start=0, step=1, limit=1
            $region60: #{pos_forward.1} parent=58 // loop_pre_header
              _
            $region61: #{pos_forward.1} parent=58 // loop_header
              %s250 = sphi 0, %s254
              %p251 = scmp.ge.s32.totalorder %s250, 1
              %s255 = sphi %s241, %s241
              %s256 = sphi %s242, %s242
            $region62: #{pos_forward.1} parent=58 // loop_header_branch
              %253 = sbr.rel (%p251) target = $region66
            $region63: #{pos_forward.1} parent=58 // loop_body
              %v257 = vld [vmem:[%s255] sm:%s248]
              %258 = vst [vmem:[%s256] sm:%s248] %v257
            $region64: #{pos_forward.1} parent=58 // loop_footer
              %s254 = sadd.s32 1, %s250
            $region65: #{pos_forward.1} parent=58 // loop_footer_branch
              %249 = sbr.rel target = $region61
            $region66: #{pos_forward.1} parent=58 // loop_exit
              _
          $region59: #{pos_forward.1} parent=48 // pred_fallthru
            _
          // Predicated region
          $region78: #{pos_forward.1} parent=48 // pred_check
            _
          $region79: #{pos_forward.1} parent=48 // pred_check_branch
            %275 = sbr.rel (0) target = $region81
          $region80: #{pos_forward.1} parent=48 // pred_region
            %276 = vsyncadd [#allocation5], 16
          $region81: #{pos_forward.1} parent=48 // pred_fallthru
            _
        $region49: #{pos_forward.1} parent=39 // loop_footer
          %s238 = sadd.s32 1, %s234
        $region50: #{pos_forward.1} parent=39 // loop_footer_branch
          %233 = sbr.rel target = $region46
        $region51: #{pos_forward.1} parent=39 // loop_exit
          _
        loop: start=0, step=1, limit=64
        $region82: #{pos_forward.1} parent=39 // loop_pre_header
          _
        $region83: #{pos_forward.1} parent=39 // loop_header
          %s278 = sphi 0, %s282
          %p279 = scmp.ge.s32.totalorder %s278, 64
        $region84: #{pos_forward.1} parent=39 // loop_header_branch
          %281 = sbr.rel (%p279) target = $region88
        $region85: #{pos_forward.1} parent=39 // loop_body
          %284 = dma.done [#allocation5], 16
        $region86: #{pos_forward.1} parent=39 // loop_footer
          %s282 = sadd.s32 1, %s278
        $region87: #{pos_forward.1} parent=39 // loop_footer_branch
          %277 = sbr.rel target = $region83
        $region88: #{pos_forward.1} parent=39 // loop_exit
          _
        %v285 = vld [vmem:[#allocation2] sm:$0xff]
        %v286 = vld [vmem:[#allocation2 + $0x8] sm:$0xff]
        %v287 = vld [vmem:[#allocation2 + $0x10] sm:$0xff]
        %v288 = vld [vmem:[#allocation2 + $0x18] sm:$0xff]
        %v289 = vld [vmem:[#allocation2 + $0x20] sm:$0xff]
        %v290 = vld [vmem:[#allocation2 + $0x28] sm:$0xff]
        %v291 = vld [vmem:[#allocation2 + $0x30] sm:$0xff]
        %v292 = vld [vmem:[#allocation2 + $0x38] sm:$0xff]
        %v293 = vld [vmem:[%s2] sm:$0xff]
        %v294 = vld [vmem:[%s2 + $0x8] sm:$0xff]
        %v295 = vld [vmem:[%s2 + $0x10] sm:$0xff]
        %v296 = vld [vmem:[%s2 + $0x18] sm:$0xff]
        %v297 = vld [vmem:[%s2 + $0x20] sm:$0xff]
        %v298 = vld [vmem:[%s2 + $0x28] sm:$0xff]
        %v299 = vld [vmem:[%s2 + $0x30] sm:$0xff]
        %v300 = vld [vmem:[%s2 + $0x38] sm:$0xff]
        %v301 = vld [vmem:[%s2 + $0x40] sm:$0xff]
        %v302 = vld [vmem:[%s2 + $0x48] sm:$0xff]
        %v303 = vld [vmem:[%s2 + $0x50] sm:$0xff]
        %v304 = vld [vmem:[%s2 + $0x58] sm:$0xff]
        %v305 = vld [vmem:[%s2 + $0x60] sm:$0xff]
        %v306 = vld [vmem:[%s2 + $0x68] sm:$0xff]
        %v307 = vld [vmem:[%s2 + $0x70] sm:$0xff]
        %v308 = vld [vmem:[%s2 + $0x78] sm:$0xff]
        %v309 = vld [vmem:[%s4] sm:$0xf]
        %v311 = vperm.slane %v309, 0
        %v312 = vperm.slane %v309, 1
        %v313 = vperm.slane %v309, 2
        %v314 = vperm.slane %v309, 3
        %vm319 = vcmask 261120
        %v321 = vsel %vm319, %v285, 0
        %v324 = vsel %vm319, %v286, 0
        %v327 = vsel %vm319, %v287, 0
        %v330 = vsel %vm319, %v288, 0
        %v333 = vsel %vm319, %v289, 0
        %v336 = vsel %vm319, %v290, 0
        %v339 = vsel %vm319, %v291, 0
        %v342 = vsel %vm319, %v292, 0
        %344 = vmatpush.msra.mxu0 0.0
        %345 = vmatpush.msra.mxu0 0.0
        %346 = vmatpush.msra.mxu0 0.0
        %347 = vmatpush.msra.mxu0 0.0
        %348 = vmatpush.msra.mxu0 0.0
        %349 = vmatpush.msra.mxu0 0.0
        %350 = vmatpush.msra.mxu0 0.0
        %351 = vmatpush.msra.mxu0 0.0
        %352 = vmatpush.msra.mxu0 0.0
        %353 = vmatpush.msra.mxu0 0.0
        %354 = vmatpush.msra.mxu0 0.0
        %355 = vmatpush.msra.mxu0 0.0
        %356 = vmatpush.msra.mxu0 %v305
        %357 = vmatpush.msra.mxu0 %v301
        %358 = vmatpush.msra.mxu0 %v297
        %359 = vmatpush.msra.mxu0 %v293
        %360 = vmatmul.f32.gmra.mxu0 %v321
        %v361 = vpop.f32.mrf.mxu0
        %v362 = vadd.f32 %v311, %v361
        %363 = vmatmul.f32.gmra.mxu0 %v324
        %v364 = vpop.f32.mrf.mxu0
        %v365 = vadd.f32 %v311, %v364
        %366 = vmatmul.f32.gmra.mxu0 %v327
        %v367 = vpop.f32.mrf.mxu0
        %v368 = vadd.f32 %v311, %v367
        %369 = vmatmul.f32.gmra.mxu0 %v330
        %v370 = vpop.f32.mrf.mxu0
        %v371 = vadd.f32 %v311, %v370
        %372 = vmatmul.f32.gmra.mxu0 %v333
        %v373 = vpop.f32.mrf.mxu0
        %v374 = vadd.f32 %v311, %v373
        %375 = vmatmul.f32.gmra.mxu0 %v336
        %v376 = vpop.f32.mrf.mxu0
        %v377 = vadd.f32 %v311, %v376
        %378 = vmatmul.f32.gmra.mxu0 %v339
        %v379 = vpop.f32.mrf.mxu0
        %v380 = vadd.f32 %v311, %v379
        %381 = vmatmul.f32.gmra.mxu0 %v342
        %v382 = vpop.f32.mrf.mxu0
        %v383 = vadd.f32 %v311, %v382
        %384 = vdwg.mxu0
        %385 = vmatpush.msra.mxu0 0.0
        %386 = vmatpush.msra.mxu0 0.0
        %387 = vmatpush.msra.mxu0 0.0
        %388 = vmatpush.msra.mxu0 0.0
        %389 = vmatpush.msra.mxu0 0.0
        %390 = vmatpush.msra.mxu0 0.0
        %391 = vmatpush.msra.mxu0 0.0
        %392 = vmatpush.msra.mxu0 0.0
        %393 = vmatpush.msra.mxu0 0.0
        %394 = vmatpush.msra.mxu0 0.0
        %395 = vmatpush.msra.mxu0 0.0
        %396 = vmatpush.msra.mxu0 0.0
        %397 = vmatpush.msra.mxu0 %v306
        %398 = vmatpush.msra.mxu0 %v302
        %399 = vmatpush.msra.mxu0 %v298
        %400 = vmatpush.msra.mxu0 %v294
        %401 = vmatmul.f32.gmra.mxu0 %v321
        %v402 = vpop.f32.mrf.mxu0
        %v403 = vadd.f32 %v312, %v402
        %404 = vmatmul.f32.gmra.mxu0 %v324
        %v405 = vpop.f32.mrf.mxu0
        %v406 = vadd.f32 %v312, %v405
        %407 = vmatmul.f32.gmra.mxu0 %v327
        %v408 = vpop.f32.mrf.mxu0
        %v409 = vadd.f32 %v312, %v408
        %410 = vmatmul.f32.gmra.mxu0 %v330
        %v411 = vpop.f32.mrf.mxu0
        %v412 = vadd.f32 %v312, %v411
        %413 = vmatmul.f32.gmra.mxu0 %v333
        %v414 = vpop.f32.mrf.mxu0
        %v415 = vadd.f32 %v312, %v414
        %416 = vmatmul.f32.gmra.mxu0 %v336
        %v417 = vpop.f32.mrf.mxu0
        %v418 = vadd.f32 %v312, %v417
        %419 = vmatmul.f32.gmra.mxu0 %v339
        %v420 = vpop.f32.mrf.mxu0
        %v421 = vadd.f32 %v312, %v420
        %422 = vmatmul.f32.gmra.mxu0 %v342
        %v423 = vpop.f32.mrf.mxu0
        %v424 = vadd.f32 %v312, %v423
        %425 = vdwg.mxu0
        %426 = vmatpush.msra.mxu0 0.0
        %427 = vmatpush.msra.mxu0 0.0
        %428 = vmatpush.msra.mxu0 0.0
        %429 = vmatpush.msra.mxu0 0.0
        %430 = vmatpush.msra.mxu0 0.0
        %431 = vmatpush.msra.mxu0 0.0
        %432 = vmatpush.msra.mxu0 0.0
        %433 = vmatpush.msra.mxu0 0.0
        %434 = vmatpush.msra.mxu0 0.0
        %435 = vmatpush.msra.mxu0 0.0
        %436 = vmatpush.msra.mxu0 0.0
        %437 = vmatpush.msra.mxu0 0.0
        %438 = vmatpush.msra.mxu0 %v307
        %439 = vmatpush.msra.mxu0 %v303
        %440 = vmatpush.msra.mxu0 %v299
        %441 = vmatpush.msra.mxu0 %v295
        %442 = vmatmul.f32.gmra.mxu0 %v321
        %v443 = vpop.f32.mrf.mxu0
        %v444 = vadd.f32 %v313, %v443
        %445 = vmatmul.f32.gmra.mxu0 %v324
        %v446 = vpop.f32.mrf.mxu0
        %v447 = vadd.f32 %v313, %v446
        %448 = vmatmul.f32.gmra.mxu0 %v327
        %v449 = vpop.f32.mrf.mxu0
        %v450 = vadd.f32 %v313, %v449
        %451 = vmatmul.f32.gmra.mxu0 %v330
        %v452 = vpop.f32.mrf.mxu0
        %v453 = vadd.f32 %v313, %v452
        %454 = vmatmul.f32.gmra.mxu0 %v333
        %v455 = vpop.f32.mrf.mxu0
        %v456 = vadd.f32 %v313, %v455
        %457 = vmatmul.f32.gmra.mxu0 %v336
        %v458 = vpop.f32.mrf.mxu0
        %v459 = vadd.f32 %v313, %v458
        %460 = vmatmul.f32.gmra.mxu0 %v339
        %v461 = vpop.f32.mrf.mxu0
        %v462 = vadd.f32 %v313, %v461
        %463 = vmatmul.f32.gmra.mxu0 %v342
        %v464 = vpop.f32.mrf.mxu0
        %v465 = vadd.f32 %v313, %v464
        %466 = vdwg.mxu0
        %467 = vmatpush.msra.mxu0 0.0
        %468 = vmatpush.msra.mxu0 0.0
        %469 = vmatpush.msra.mxu0 0.0
        %470 = vmatpush.msra.mxu0 0.0
        %471 = vmatpush.msra.mxu0 0.0
        %472 = vmatpush.msra.mxu0 0.0
        %473 = vmatpush.msra.mxu0 0.0
        %474 = vmatpush.msra.mxu0 0.0
        %475 = vmatpush.msra.mxu0 0.0
        %476 = vmatpush.msra.mxu0 0.0
        %477 = vmatpush.msra.mxu0 0.0
        %478 = vmatpush.msra.mxu0 0.0
        %479 = vmatpush.msra.mxu0 %v308
        %480 = vmatpush.msra.mxu0 %v304
        %481 = vmatpush.msra.mxu0 %v300
        %482 = vmatpush.msra.mxu0 %v296
        %483 = vmatmul.f32.gmra.mxu0 %v321
        %v484 = vpop.f32.mrf.mxu0
        %v485 = vadd.f32 %v314, %v484
        %486 = vmatmul.f32.gmra.mxu0 %v324
        %v487 = vpop.f32.mrf.mxu0
        %v488 = vadd.f32 %v314, %v487
        %489 = vmatmul.f32.gmra.mxu0 %v327
        %v490 = vpop.f32.mrf.mxu0
        %v491 = vadd.f32 %v314, %v490
        %492 = vmatmul.f32.gmra.mxu0 %v330
        %v493 = vpop.f32.mrf.mxu0
        %v494 = vadd.f32 %v314, %v493
        %495 = vmatmul.f32.gmra.mxu0 %v333
        %v496 = vpop.f32.mrf.mxu0
        %v497 = vadd.f32 %v314, %v496
        %498 = vmatmul.f32.gmra.mxu0 %v336
        %v499 = vpop.f32.mrf.mxu0
        %v500 = vadd.f32 %v314, %v499
        %501 = vmatmul.f32.gmra.mxu0 %v339
        %v502 = vpop.f32.mrf.mxu0
        %v503 = vadd.f32 %v314, %v502
        %504 = vmatmul.f32.gmra.mxu0 %v342
        %v505 = vpop.f32.mrf.mxu0
        %v506 = vadd.f32 %v314, %v505
        %507 = vdwg.mxu0
        %508 = vst [vmem:[#allocation3] sm:$0xff] %v362
        %509 = vst [vmem:[#allocation3 + $0x8] sm:$0xff] %v403
        %510 = vst [vmem:[#allocation3 + $0x10] sm:$0xff] %v444
        %511 = vst [vmem:[#allocation3 + $0x18] sm:$0xff] %v485
        %512 = vst [vmem:[#allocation3 + $0x20] sm:$0xff] %v365
        %513 = vst [vmem:[#allocation3 + $0x28] sm:$0xff] %v406
        %514 = vst [vmem:[#allocation3 + $0x30] sm:$0xff] %v447
        %515 = vst [vmem:[#allocation3 + $0x38] sm:$0xff] %v488
        %516 = vst [vmem:[#allocation3 + $0x40] sm:$0xff] %v368
        %517 = vst [vmem:[#allocation3 + $0x48] sm:$0xff] %v409
        %518 = vst [vmem:[#allocation3 + $0x50] sm:$0xff] %v450
        %519 = vst [vmem:[#allocation3 + $0x58] sm:$0xff] %v491
        %520 = vst [vmem:[#allocation3 + $0x60] sm:$0xff] %v371
        %521 = vst [vmem:[#allocation3 + $0x68] sm:$0xff] %v412
        %522 = vst [vmem:[#allocation3 + $0x70] sm:$0xff] %v453
        %523 = vst [vmem:[#allocation3 + $0x78] sm:$0xff] %v494
        %524 = vst [vmem:[#allocation3 + $0x80] sm:$0xff] %v374
        %525 = vst [vmem:[#allocation3 + $0x88] sm:$0xff] %v415
        %526 = vst [vmem:[#allocation3 + $0x90] sm:$0xff] %v456
        %527 = vst [vmem:[#allocation3 + $0x98] sm:$0xff] %v497
        %528 = vst [vmem:[#allocation3 + $0xa0] sm:$0xff] %v377
        %529 = vst [vmem:[#allocation3 + $0xa8] sm:$0xff] %v418
        %530 = vst [vmem:[#allocation3 + $0xb0] sm:$0xff] %v459
        %531 = vst [vmem:[#allocation3 + $0xb8] sm:$0xff] %v500
        %532 = vst [vmem:[#allocation3 + $0xc0] sm:$0xff] %v380
        %533 = vst [vmem:[#allocation3 + $0xc8] sm:$0xff] %v421
        %534 = vst [vmem:[#allocation3 + $0xd0] sm:$0xff] %v462
        %535 = vst [vmem:[#allocation3 + $0xd8] sm:$0xff] %v503
        %536 = vst [vmem:[#allocation3 + $0xe0] sm:$0xff] %v383
        %537 = vst [vmem:[#allocation3 + $0xe8] sm:$0xff] %v424
        %538 = vst [vmem:[#allocation3 + $0xf0] sm:$0xff] %v465
        %539 = vst [vmem:[#allocation3 + $0xf8] sm:$0xff] %v506
        %s540 = smul.u32 0, 4
        %s541 = smul.addr %s540, 8
        %s542 = scalar_lea.vmem [#allocation3], %s541
        %v543 = vld [vmem:[%s542] sm:$0xff]
        %v544 = vld [vmem:[%s542 + $0x8] sm:$0xff]
        %v545 = vld [vmem:[%s542 + $0x10] sm:$0xff]
        %v546 = vld [vmem:[%s542 + $0x18] sm:$0xff]
        %v547 = vld [vmem:[#allocation8] sm:$0xff]
        %v548 = vld [vmem:[#allocation8 + $0x8] sm:$0xff]
        %v549 = vld [vmem:[#allocation8 + $0x10] sm:$0xff]
        %v550 = vld [vmem:[#allocation8 + $0x18] sm:$0xff]
        %v551 = vld [vmem:[#allocation8 + $0x20] sm:$0xff]
        %v552 = vld [vmem:[#allocation8 + $0x28] sm:$0xff]
        %v553 = vld [vmem:[#allocation8 + $0x30] sm:$0xff]
        %v554 = vld [vmem:[#allocation8 + $0x38] sm:$0xff]
        %v555 = vld [vmem:[#allocation8 + $0x40] sm:$0xff]
        %v556 = vld [vmem:[#allocation8 + $0x48] sm:$0xff]
        %v557 = vld [vmem:[#allocation8 + $0x50] sm:$0xff]
        %v558 = vld [vmem:[#allocation8 + $0x58] sm:$0xff]
        %v559 = vld [vmem:[#allocation8 + $0x60] sm:$0xff]
        %v560 = vld [vmem:[#allocation8 + $0x68] sm:$0xff]
        %v561 = vld [vmem:[#allocation8 + $0x70] sm:$0xff]
        %v562 = vld [vmem:[#allocation8 + $0x78] sm:$0xff]
        %v563 = vld [vmem:[#allocation8 + $0x80] sm:$0xff]
        %v564 = vld [vmem:[#allocation8 + $0x88] sm:$0xff]
        %v565 = vld [vmem:[#allocation8 + $0x90] sm:$0xff]
        %v566 = vld [vmem:[#allocation8 + $0x98] sm:$0xff]
        %v567 = vld [vmem:[#allocation8 + $0xa0] sm:$0xff]
        %v568 = vld [vmem:[#allocation8 + $0xa8] sm:$0xff]
        %v569 = vld [vmem:[#allocation8 + $0xb0] sm:$0xff]
        %v570 = vld [vmem:[#allocation8 + $0xb8] sm:$0xff]
        %v571 = vld [vmem:[#allocation8 + $0xc0] sm:$0xff]
        %v572 = vld [vmem:[#allocation8 + $0xc8] sm:$0xff]
        %v573 = vld [vmem:[#allocation8 + $0xd0] sm:$0xff]
        %v574 = vld [vmem:[#allocation8 + $0xd8] sm:$0xff]
        %v575 = vld [vmem:[#allocation8 + $0xe0] sm:$0xff]
        %v576 = vld [vmem:[#allocation8 + $0xe8] sm:$0xff]
        %v577 = vld [vmem:[#allocation8 + $0xf0] sm:$0xff]
        %v578 = vld [vmem:[#allocation8 + $0xf8] sm:$0xff]
        %v579 = vld [vmem:[#allocation8 + $0x100] sm:$0xff]
        %v580 = vld [vmem:[#allocation8 + $0x108] sm:$0xff]
        %v581 = vld [vmem:[#allocation8 + $0x110] sm:$0xff]
        %v582 = vld [vmem:[#allocation8 + $0x118] sm:$0xff]
        %v583 = vld [vmem:[#allocation8 + $0x120] sm:$0xff]
        %v584 = vld [vmem:[#allocation8 + $0x128] sm:$0xff]
        %v585 = vld [vmem:[#allocation8 + $0x130] sm:$0xff]
        %v586 = vld [vmem:[#allocation8 + $0x138] sm:$0xff]
        %v587 = vld [vmem:[#allocation8 + $0x140] sm:$0xff]
        %v588 = vld [vmem:[#allocation8 + $0x148] sm:$0xff]
        %v589 = vld [vmem:[#allocation8 + $0x150] sm:$0xff]
        %v590 = vld [vmem:[#allocation8 + $0x158] sm:$0xff]
        %v591 = vld [vmem:[#allocation8 + $0x160] sm:$0xff]
        %v592 = vld [vmem:[#allocation8 + $0x168] sm:$0xff]
        %v593 = vld [vmem:[#allocation8 + $0x170] sm:$0xff]
        %v594 = vld [vmem:[#allocation8 + $0x178] sm:$0xff]
        %v595 = vld [vmem:[#allocation8 + $0x180] sm:$0xff]
        %v596 = vld [vmem:[#allocation8 + $0x188] sm:$0xff]
        %v597 = vld [vmem:[#allocation8 + $0x190] sm:$0xff]
        %v598 = vld [vmem:[#allocation8 + $0x198] sm:$0xff]
        %v599 = vld [vmem:[#allocation8 + $0x1a0] sm:$0xff]
        %v600 = vld [vmem:[#allocation8 + $0x1a8] sm:$0xff]
        %v601 = vld [vmem:[#allocation8 + $0x1b0] sm:$0xff]
        %v602 = vld [vmem:[#allocation8 + $0x1b8] sm:$0xff]
        %v603 = vld [vmem:[#allocation8 + $0x1c0] sm:$0xff]
        %v604 = vld [vmem:[#allocation8 + $0x1c8] sm:$0xff]
        %v605 = vld [vmem:[#allocation8 + $0x1d0] sm:$0xff]
        %v606 = vld [vmem:[#allocation8 + $0x1d8] sm:$0xff]
        %v607 = vld [vmem:[#allocation8 + $0x1e0] sm:$0xff]
        %v608 = vld [vmem:[#allocation8 + $0x1e8] sm:$0xff]
        %v609 = vld [vmem:[#allocation8 + $0x1f0] sm:$0xff]
        %v610 = vld [vmem:[#allocation8 + $0x1f8] sm:$0xff]
        %611 = vmatpush.msra.mxu0 %v607
        %612 = vmatpush.msra.mxu0 %v603
        %613 = vmatpush.msra.mxu0 %v599
        %614 = vmatpush.msra.mxu0 %v595
        %615 = vmatpush.msra.mxu0 %v591
        %616 = vmatpush.msra.mxu0 %v587
        %617 = vmatpush.msra.mxu0 %v583
        %618 = vmatpush.msra.mxu0 %v579
        %619 = vmatpush.msra.mxu0 %v575
        %620 = vmatpush.msra.mxu0 %v571
        %621 = vmatpush.msra.mxu0 %v567
        %622 = vmatpush.msra.mxu0 %v563
        %623 = vmatpush.msra.mxu0 %v559
        %624 = vmatpush.msra.mxu0 %v555
        %625 = vmatpush.msra.mxu0 %v551
        %626 = vmatpush.msra.mxu0 %v547
        %627 = vmatmul.f32.gmra.mxu0 0.0
        %v628 = vpop.f32.mrf.mxu0
        %v629 = vadd.f32 0.0, %v628
        %630 = vdwg.mxu0
        %631 = vmatpush.msra.mxu0 %v608
        %632 = vmatpush.msra.mxu0 %v604
        %633 = vmatpush.msra.mxu0 %v600
        %634 = vmatpush.msra.mxu0 %v596
        %635 = vmatpush.msra.mxu0 %v592
        %636 = vmatpush.msra.mxu0 %v588
        %637 = vmatpush.msra.mxu0 %v584
        %638 = vmatpush.msra.mxu0 %v580
        %639 = vmatpush.msra.mxu0 %v576
        %640 = vmatpush.msra.mxu0 %v572
        %641 = vmatpush.msra.mxu0 %v568
        %642 = vmatpush.msra.mxu0 %v564
        %643 = vmatpush.msra.mxu0 %v560
        %644 = vmatpush.msra.mxu0 %v556
        %645 = vmatpush.msra.mxu0 %v552
        %646 = vmatpush.msra.mxu0 %v548
        %647 = vmatmul.f32.gmra.mxu0 0.0
        %v648 = vpop.f32.mrf.mxu0
        %v649 = vadd.f32 0.0, %v648
        %650 = vdwg.mxu0
        %651 = vmatpush.msra.mxu0 %v609
        %652 = vmatpush.msra.mxu0 %v605
        %653 = vmatpush.msra.mxu0 %v601
        %654 = vmatpush.msra.mxu0 %v597
        %655 = vmatpush.msra.mxu0 %v593
        %656 = vmatpush.msra.mxu0 %v589
        %657 = vmatpush.msra.mxu0 %v585
        %658 = vmatpush.msra.mxu0 %v581
        %659 = vmatpush.msra.mxu0 %v577
        %660 = vmatpush.msra.mxu0 %v573
        %661 = vmatpush.msra.mxu0 %v569
        %662 = vmatpush.msra.mxu0 %v565
        %663 = vmatpush.msra.mxu0 %v561
        %664 = vmatpush.msra.mxu0 %v557
        %665 = vmatpush.msra.mxu0 %v553
        %666 = vmatpush.msra.mxu0 %v549
        %667 = vmatmul.f32.gmra.mxu0 0.0
        %v668 = vpop.f32.mrf.mxu0
        %v669 = vadd.f32 0.0, %v668
        %670 = vdwg.mxu0
        %671 = vmatpush.msra.mxu0 %v610
        %672 = vmatpush.msra.mxu0 %v606
        %673 = vmatpush.msra.mxu0 %v602
        %674 = vmatpush.msra.mxu0 %v598
        %675 = vmatpush.msra.mxu0 %v594
        %676 = vmatpush.msra.mxu0 %v590
        %677 = vmatpush.msra.mxu0 %v586
        %678 = vmatpush.msra.mxu0 %v582
        %679 = vmatpush.msra.mxu0 %v578
        %680 = vmatpush.msra.mxu0 %v574
        %681 = vmatpush.msra.mxu0 %v570
        %682 = vmatpush.msra.mxu0 %v566
        %683 = vmatpush.msra.mxu0 %v562
        %684 = vmatpush.msra.mxu0 %v558
        %685 = vmatpush.msra.mxu0 %v554
        %686 = vmatpush.msra.mxu0 %v550
        %687 = vmatmul.f32.gmra.mxu0 0.0
        %v688 = vpop.f32.mrf.mxu0
        %v689 = vadd.f32 0.0, %v688
        %690 = vdwg.mxu0
        %v691 = vadd.f32 %v543, %v629
        %v692 = vadd.f32 %v544, %v649
        %v693 = vadd.f32 %v545, %v669
        %v694 = vadd.f32 %v546, %v689
        %v695 = vxor.u32 %v691, 2147483648
        %v696 = vxor.u32 %v692, 2147483648
        %v697 = vmul.f32 %v695, 1.442695
        %v698 = vpow.pop %v697
        %v699 = vmul.f32 %v696, 1.442695
        %v700 = vpow.pop %v699
        %v701 = vadd.f32 %v698, 1.0
        %v702 = vadd.f32 %v700, 1.0
        %v703 = vrcp.pop %v701
        %v704 = vmul.f32 %v701, %v703
        %v705 = vsub.f32 1.0, %v704
        %v706 = vmul.f32 %v703, %v705
        %v707 = vadd.f32 %v703, %v706
        %vm708 = vweird.f32 %v701
        %vm709 = vweird.f32 %v703
        %vm710 = vmor %vm708, %vm709
        %v711 = vsel %vm710, %v703, %v707
        %v712 = vand.u32 2147483647, %v701
        %vm713 = vcmp.eq.f32.partialorder %v712, 8.507059e+37
        %v714 = vand.u32 %v701, 2147483648
        %v715 = vor.u32 1.1754944e-38, %v714
        %v716 = vsel %vm713, %v715, %v711
        %v717 = vmul.f32 1.0, %v716
        %v718 = vrcp.pop %v702
        %v719 = vmul.f32 %v702, %v718
        %v720 = vsub.f32 1.0, %v719
        %v721 = vmul.f32 %v718, %v720
        %v722 = vadd.f32 %v718, %v721
        %vm723 = vweird.f32 %v702
        %vm724 = vweird.f32 %v718
        %vm725 = vmor %vm723, %vm724
        %v726 = vsel %vm725, %v718, %v722
        %v727 = vand.u32 2147483647, %v702
        %vm728 = vcmp.eq.f32.partialorder %v727, 8.507059e+37
        %v729 = vand.u32 %v702, 2147483648
        %v730 = vor.u32 1.1754944e-38, %v729
        %v731 = vsel %vm728, %v730, %v726
        %v732 = vmul.f32 1.0, %v731
        %v733 = vtanh.pop %v693
        %v734 = vxor.u32 %v694, 2147483648
        %v735 = vmul.f32 %v734, 1.442695
        %v736 = vpow.pop %v735
        %v737 = vadd.f32 %v736, 1.0
        %v738 = vrcp.pop %v737
        %v739 = vmul.f32 %v737, %v738
        %v740 = vsub.f32 1.0, %v739
        %v741 = vmul.f32 %v738, %v740
        %v742 = vadd.f32 %v738, %v741
        %vm743 = vweird.f32 %v737
        %vm744 = vweird.f32 %v738
        %vm745 = vmor %vm743, %vm744
        %v746 = vsel %vm745, %v738, %v742
        %v747 = vand.u32 2147483647, %v737
        %vm748 = vcmp.eq.f32.partialorder %v747, 8.507059e+37
        %v749 = vand.u32 %v737, 2147483648
        %v750 = vor.u32 1.1754944e-38, %v749
        %v751 = vsel %vm748, %v750, %v746
        %v752 = vmul.f32 1.0, %v751
        %v753 = vmul.f32 %v732, 0.0
        %v754 = vmul.f32 %v717, %v733
        %v755 = vadd.f32 %v753, %v754
        %v756 = vtanh.pop %v755
        %v757 = vmul.f32 %v752, %v756
        %758 = vst [vmem:[#allocation4] sm:$0xff] %v757
        %s759 = smul.u32 1, 4
        %s760 = smul.addr %s759, 8
        %s761 = scalar_lea.vmem [#allocation3], %s760
        %v762 = vld [vmem:[%s761] sm:$0xff]
        %v763 = vld [vmem:[%s761 + $0x8] sm:$0xff]
        %v764 = vld [vmem:[%s761 + $0x10] sm:$0xff]
        %v765 = vld [vmem:[%s761 + $0x18] sm:$0xff]
        %v766 = vld [vmem:[#allocation8] sm:$0xff]
        %v767 = vld [vmem:[#allocation8 + $0x8] sm:$0xff]
        %v768 = vld [vmem:[#allocation8 + $0x10] sm:$0xff]
        %v769 = vld [vmem:[#allocation8 + $0x18] sm:$0xff]
        %v770 = vld [vmem:[#allocation8 + $0x20] sm:$0xff]
        %v771 = vld [vmem:[#allocation8 + $0x28] sm:$0xff]
        %v772 = vld [vmem:[#allocation8 + $0x30] sm:$0xff]
        %v773 = vld [vmem:[#allocation8 + $0x38] sm:$0xff]
        %v774 = vld [vmem:[#allocation8 + $0x40] sm:$0xff]
        %v775 = vld [vmem:[#allocation8 + $0x48] sm:$0xff]
        %v776 = vld [vmem:[#allocation8 + $0x50] sm:$0xff]
        %v777 = vld [vmem:[#allocation8 + $0x58] sm:$0xff]
        %v778 = vld [vmem:[#allocation8 + $0x60] sm:$0xff]
        %v779 = vld [vmem:[#allocation8 + $0x68] sm:$0xff]
        %v780 = vld [vmem:[#allocation8 + $0x70] sm:$0xff]
        %v781 = vld [vmem:[#allocation8 + $0x78] sm:$0xff]
        %v782 = vld [vmem:[#allocation8 + $0x80] sm:$0xff]
        %v783 = vld [vmem:[#allocation8 + $0x88] sm:$0xff]
        %v784 = vld [vmem:[#allocation8 + $0x90] sm:$0xff]
        %v785 = vld [vmem:[#allocation8 + $0x98] sm:$0xff]
        %v786 = vld [vmem:[#allocation8 + $0xa0] sm:$0xff]
        %v787 = vld [vmem:[#allocation8 + $0xa8] sm:$0xff]
        %v788 = vld [vmem:[#allocation8 + $0xb0] sm:$0xff]
        %v789 = vld [vmem:[#allocation8 + $0xb8] sm:$0xff]
        %v790 = vld [vmem:[#allocation8 + $0xc0] sm:$0xff]
        %v791 = vld [vmem:[#allocation8 + $0xc8] sm:$0xff]
        %v792 = vld [vmem:[#allocation8 + $0xd0] sm:$0xff]
        %v793 = vld [vmem:[#allocation8 + $0xd8] sm:$0xff]
        %v794 = vld [vmem:[#allocation8 + $0xe0] sm:$0xff]
        %v795 = vld [vmem:[#allocation8 + $0xe8] sm:$0xff]
        %v796 = vld [vmem:[#allocation8 + $0xf0] sm:$0xff]
        %v797 = vld [vmem:[#allocation8 + $0xf8] sm:$0xff]
        %v798 = vld [vmem:[#allocation8 + $0x100] sm:$0xff]
        %v799 = vld [vmem:[#allocation8 + $0x108] sm:$0xff]
        %v800 = vld [vmem:[#allocation8 + $0x110] sm:$0xff]
        %v801 = vld [vmem:[#allocation8 + $0x118] sm:$0xff]
        %v802 = vld [vmem:[#allocation8 + $0x120] sm:$0xff]
        %v803 = vld [vmem:[#allocation8 + $0x128] sm:$0xff]
        %v804 = vld [vmem:[#allocation8 + $0x130] sm:$0xff]
        %v805 = vld [vmem:[#allocation8 + $0x138] sm:$0xff]
        %v806 = vld [vmem:[#allocation8 + $0x140] sm:$0xff]
        %v807 = vld [vmem:[#allocation8 + $0x148] sm:$0xff]
        %v808 = vld [vmem:[#allocation8 + $0x150] sm:$0xff]
        %v809 = vld [vmem:[#allocation8 + $0x158] sm:$0xff]
        %v810 = vld [vmem:[#allocation8 + $0x160] sm:$0xff]
        %v811 = vld [vmem:[#allocation8 + $0x168] sm:$0xff]
        %v812 = vld [vmem:[#allocation8 + $0x170] sm:$0xff]
        %v813 = vld [vmem:[#allocation8 + $0x178] sm:$0xff]
        %v814 = vld [vmem:[#allocation8 + $0x180] sm:$0xff]
        %v815 = vld [vmem:[#allocation8 + $0x188] sm:$0xff]
        %v816 = vld [vmem:[#allocation8 + $0x190] sm:$0xff]
        %v817 = vld [vmem:[#allocation8 + $0x198] sm:$0xff]
        %v818 = vld [vmem:[#allocation8 + $0x1a0] sm:$0xff]
        %v819 = vld [vmem:[#allocation8 + $0x1a8] sm:$0xff]
        %v820 = vld [vmem:[#allocation8 + $0x1b0] sm:$0xff]
        %v821 = vld [vmem:[#allocation8 + $0x1b8] sm:$0xff]
        %v822 = vld [vmem:[#allocation8 + $0x1c0] sm:$0xff]
        %v823 = vld [vmem:[#allocation8 + $0x1c8] sm:$0xff]
        %v824 = vld [vmem:[#allocation8 + $0x1d0] sm:$0xff]
        %v825 = vld [vmem:[#allocation8 + $0x1d8] sm:$0xff]
        %v826 = vld [vmem:[#allocation8 + $0x1e0] sm:$0xff]
        %v827 = vld [vmem:[#allocation8 + $0x1e8] sm:$0xff]
        %v828 = vld [vmem:[#allocation8 + $0x1f0] sm:$0xff]
        %v829 = vld [vmem:[#allocation8 + $0x1f8] sm:$0xff]
        %830 = vmatpush.msra.mxu0 %v826
        %831 = vmatpush.msra.mxu0 %v822
        %832 = vmatpush.msra.mxu0 %v818
        %833 = vmatpush.msra.mxu0 %v814
        %834 = vmatpush.msra.mxu0 %v810
        %835 = vmatpush.msra.mxu0 %v806
        %836 = vmatpush.msra.mxu0 %v802
        %837 = vmatpush.msra.mxu0 %v798
        %838 = vmatpush.msra.mxu0 %v794
        %839 = vmatpush.msra.mxu0 %v790
        %840 = vmatpush.msra.mxu0 %v786
        %841 = vmatpush.msra.mxu0 %v782
        %842 = vmatpush.msra.mxu0 %v778
        %843 = vmatpush.msra.mxu0 %v774
        %844 = vmatpush.msra.mxu0 %v770
        %845 = vmatpush.msra.mxu0 %v766
        %846 = vmatmul.f32.gmra.mxu0 %v757
        %v847 = vpop.f32.mrf.mxu0
        %v848 = vadd.f32 0.0, %v847
        %849 = vdwg.mxu0
        %850 = vmatpush.msra.mxu0 %v827
        %851 = vmatpush.msra.mxu0 %v823
        %852 = vmatpush.msra.mxu0 %v819
        %853 = vmatpush.msra.mxu0 %v815
        %854 = vmatpush.msra.mxu0 %v811
        %855 = vmatpush.msra.mxu0 %v807
        %856 = vmatpush.msra.mxu0 %v803
        %857 = vmatpush.msra.mxu0 %v799
        %858 = vmatpush.msra.mxu0 %v795
        %859 = vmatpush.msra.mxu0 %v791
        %860 = vmatpush.msra.mxu0 %v787
        %861 = vmatpush.msra.mxu0 %v783
        %862 = vmatpush.msra.mxu0 %v779
        %863 = vmatpush.msra.mxu0 %v775
        %864 = vmatpush.msra.mxu0 %v771
        %865 = vmatpush.msra.mxu0 %v767
        %866 = vmatmul.f32.gmra.mxu0 %v757
        %v867 = vpop.f32.mrf.mxu0
        %v868 = vadd.f32 0.0, %v867
        %869 = vdwg.mxu0
        %870 = vmatpush.msra.mxu0 %v828
        %871 = vmatpush.msra.mxu0 %v824
        %872 = vmatpush.msra.mxu0 %v820
        %873 = vmatpush.msra.mxu0 %v816
        %874 = vmatpush.msra.mxu0 %v812
        %875 = vmatpush.msra.mxu0 %v808
        %876 = vmatpush.msra.mxu0 %v804
        %877 = vmatpush.msra.mxu0 %v800
        %878 = vmatpush.msra.mxu0 %v796
        %879 = vmatpush.msra.mxu0 %v792
        %880 = vmatpush.msra.mxu0 %v788
        %881 = vmatpush.msra.mxu0 %v784
        %882 = vmatpush.msra.mxu0 %v780
        %883 = vmatpush.msra.mxu0 %v776
        %884 = vmatpush.msra.mxu0 %v772
        %885 = vmatpush.msra.mxu0 %v768
        %886 = vmatmul.f32.gmra.mxu0 %v757
        %v887 = vpop.f32.mrf.mxu0
        %v888 = vadd.f32 0.0, %v887
        %889 = vdwg.mxu0
        %890 = vmatpush.msra.mxu0 %v829
        %891 = vmatpush.msra.mxu0 %v825
        %892 = vmatpush.msra.mxu0 %v821
        %893 = vmatpush.msra.mxu0 %v817
        %894 = vmatpush.msra.mxu0 %v813
        %895 = vmatpush.msra.mxu0 %v809
        %896 = vmatpush.msra.mxu0 %v805
        %897 = vmatpush.msra.mxu0 %v801
        %898 = vmatpush.msra.mxu0 %v797
        %899 = vmatpush.msra.mxu0 %v793
        %900 = vmatpush.msra.mxu0 %v789
        %901 = vmatpush.msra.mxu0 %v785
        %902 = vmatpush.msra.mxu0 %v781
        %903 = vmatpush.msra.mxu0 %v777
        %904 = vmatpush.msra.mxu0 %v773
        %905 = vmatpush.msra.mxu0 %v769
        %906 = vmatmul.f32.gmra.mxu0 %v757
        %v907 = vpop.f32.mrf.mxu0
        %v908 = vadd.f32 0.0, %v907
        %909 = vdwg.mxu0
        %v910 = vadd.f32 %v762, %v848
        %v911 = vadd.f32 %v763, %v868
        %v912 = vadd.f32 %v764, %v888
        %v913 = vadd.f32 %v765, %v908
        %v914 = vxor.u32 %v910, 2147483648
        %v915 = vxor.u32 %v911, 2147483648
        %v916 = vmul.f32 %v914, 1.442695
        %v917 = vpow.pop %v916
        %v918 = vmul.f32 %v915, 1.442695
        %v919 = vpow.pop %v918
        %v920 = vadd.f32 %v917, 1.0
        %v921 = vadd.f32 %v919, 1.0
        %v922 = vrcp.pop %v920
        %v923 = vmul.f32 %v920, %v922
        %v924 = vsub.f32 1.0, %v923
        %v925 = vmul.f32 %v922, %v924
        %v926 = vadd.f32 %v922, %v925
        %vm927 = vweird.f32 %v920
        %vm928 = vweird.f32 %v922
        %vm929 = vmor %vm927, %vm928
        %v930 = vsel %vm929, %v922, %v926
        %v931 = vand.u32 2147483647, %v920
        %vm932 = vcmp.eq.f32.partialorder %v931, 8.507059e+37
        %v933 = vand.u32 %v920, 2147483648
        %v934 = vor.u32 1.1754944e-38, %v933
        %v935 = vsel %vm932, %v934, %v930
        %v936 = vmul.f32 1.0, %v935
        %v937 = vrcp.pop %v921
        %v938 = vmul.f32 %v921, %v937
        %v939 = vsub.f32 1.0, %v938
        %v940 = vmul.f32 %v937, %v939
        %v941 = vadd.f32 %v937, %v940
        %vm942 = vweird.f32 %v921
        %vm943 = vweird.f32 %v937
        %vm944 = vmor %vm942, %vm943
        %v945 = vsel %vm944, %v937, %v941
        %v946 = vand.u32 2147483647, %v921
        %vm947 = vcmp.eq.f32.partialorder %v946, 8.507059e+37
        %v948 = vand.u32 %v921, 2147483648
        %v949 = vor.u32 1.1754944e-38, %v948
        %v950 = vsel %vm947, %v949, %v945
        %v951 = vmul.f32 1.0, %v950
        %v952 = vtanh.pop %v912
        %v953 = vxor.u32 %v913, 2147483648
        %v954 = vmul.f32 %v953, 1.442695
        %v955 = vpow.pop %v954
        %v956 = vadd.f32 %v955, 1.0
        %v957 = vrcp.pop %v956
        %v958 = vmul.f32 %v956, %v957
        %v959 = vsub.f32 1.0, %v958
        %v960 = vmul.f32 %v957, %v959
        %v961 = vadd.f32 %v957, %v960
        %vm962 = vweird.f32 %v956
        %vm963 = vweird.f32 %v957
        %vm964 = vmor %vm962, %vm963
        %v965 = vsel %vm964, %v957, %v961
        %v966 = vand.u32 2147483647, %v956
        %vm967 = vcmp.eq.f32.partialorder %v966, 8.507059e+37
        %v968 = vand.u32 %v956, 2147483648
        %v969 = vor.u32 1.1754944e-38, %v968
        %v970 = vsel %vm967, %v969, %v965
        %v971 = vmul.f32 1.0, %v970
        %v972 = vmul.f32 %v951, %v755
        %v973 = vmul.f32 %v936, %v952
        %v974 = vadd.f32 %v972, %v973
        %v975 = vtanh.pop %v974
        %v976 = vmul.f32 %v971, %v975
        %s977 = scalar_lea.vmem [#allocation4], 8
        %978 = vst [vmem:[%s977] sm:$0xff] %v976
        %s979 = smul.u32 2, 4
        %s980 = smul.addr %s979, 8
        %s981 = scalar_lea.vmem [#allocation3], %s980
        %v982 = vld [vmem:[%s981] sm:$0xff]
        %v983 = vld [vmem:[%s981 + $0x8] sm:$0xff]
        %v984 = vld [vmem:[%s981 + $0x10] sm:$0xff]
        %v985 = vld [vmem:[%s981 + $0x18] sm:$0xff]
        %v986 = vld [vmem:[#allocation8] sm:$0xff]
        %v987 = vld [vmem:[#allocation8 + $0x8] sm:$0xff]
        %v988 = vld [vmem:[#allocation8 + $0x10] sm:$0xff]
        %v989 = vld [vmem:[#allocation8 + $0x18] sm:$0xff]
        %v990 = vld [vmem:[#allocation8 + $0x20] sm:$0xff]
        %v991 = vld [vmem:[#allocation8 + $0x28] sm:$0xff]
        %v992 = vld [vmem:[#allocation8 + $0x30] sm:$0xff]
        %v993 = vld [vmem:[#allocation8 + $0x38] sm:$0xff]
        %v994 = vld [vmem:[#allocation8 + $0x40] sm:$0xff]
        %v995 = vld [vmem:[#allocation8 + $0x48] sm:$0xff]
        %v996 = vld [vmem:[#allocation8 + $0x50] sm:$0xff]
        %v997 = vld [vmem:[#allocation8 + $0x58] sm:$0xff]
        %v998 = vld [vmem:[#allocation8 + $0x60] sm:$0xff]
        %v999 = vld [vmem:[#allocation8 + $0x68] sm:$0xff]
        %v1000 = vld [vmem:[#allocation8 + $0x70] sm:$0xff]
        %v1001 = vld [vmem:[#allocation8 + $0x78] sm:$0xff]
        %v1002 = vld [vmem:[#allocation8 + $0x80] sm:$0xff]
        %v1003 = vld [vmem:[#allocation8 + $0x88] sm:$0xff]
        %v1004 = vld [vmem:[#allocation8 + $0x90] sm:$0xff]
        %v1005 = vld [vmem:[#allocation8 + $0x98] sm:$0xff]
        %v1006 = vld [vmem:[#allocation8 + $0xa0] sm:$0xff]
        %v1007 = vld [vmem:[#allocation8 + $0xa8] sm:$0xff]
        %v1008 = vld [vmem:[#allocation8 + $0xb0] sm:$0xff]
        %v1009 = vld [vmem:[#allocation8 + $0xb8] sm:$0xff]
        %v1010 = vld [vmem:[#allocation8 + $0xc0] sm:$0xff]
        %v1011 = vld [vmem:[#allocation8 + $0xc8] sm:$0xff]
        %v1012 = vld [vmem:[#allocation8 + $0xd0] sm:$0xff]
        %v1013 = vld [vmem:[#allocation8 + $0xd8] sm:$0xff]
        %v1014 = vld [vmem:[#allocation8 + $0xe0] sm:$0xff]
        %v1015 = vld [vmem:[#allocation8 + $0xe8] sm:$0xff]
        %v1016 = vld [vmem:[#allocation8 + $0xf0] sm:$0xff]
        %v1017 = vld [vmem:[#allocation8 + $0xf8] sm:$0xff]
        %v1018 = vld [vmem:[#allocation8 + $0x100] sm:$0xff]
        %v1019 = vld [vmem:[#allocation8 + $0x108] sm:$0xff]
        %v1020 = vld [vmem:[#allocation8 + $0x110] sm:$0xff]
        %v1021 = vld [vmem:[#allocation8 + $0x118] sm:$0xff]
        %v1022 = vld [vmem:[#allocation8 + $0x120] sm:$0xff]
        %v1023 = vld [vmem:[#allocation8 + $0x128] sm:$0xff]
        %v1024 = vld [vmem:[#allocation8 + $0x130] sm:$0xff]
        %v1025 = vld [vmem:[#allocation8 + $0x138] sm:$0xff]
        %v1026 = vld [vmem:[#allocation8 + $0x140] sm:$0xff]
        %v1027 = vld [vmem:[#allocation8 + $0x148] sm:$0xff]
        %v1028 = vld [vmem:[#allocation8 + $0x150] sm:$0xff]
        %v1029 = vld [vmem:[#allocation8 + $0x158] sm:$0xff]
        %v1030 = vld [vmem:[#allocation8 + $0x160] sm:$0xff]
        %v1031 = vld [vmem:[#allocation8 + $0x168] sm:$0xff]
        %v1032 = vld [vmem:[#allocation8 + $0x170] sm:$0xff]
        %v1033 = vld [vmem:[#allocation8 + $0x178] sm:$0xff]
        %v1034 = vld [vmem:[#allocation8 + $0x180] sm:$0xff]
        %v1035 = vld [vmem:[#allocation8 + $0x188] sm:$0xff]
        %v1036 = vld [vmem:[#allocation8 + $0x190] sm:$0xff]
        %v1037 = vld [vmem:[#allocation8 + $0x198] sm:$0xff]
        %v1038 = vld [vmem:[#allocation8 + $0x1a0] sm:$0xff]
        %v1039 = vld [vmem:[#allocation8 + $0x1a8] sm:$0xff]
        %v1040 = vld [vmem:[#allocation8 + $0x1b0] sm:$0xff]
        %v1041 = vld [vmem:[#allocation8 + $0x1b8] sm:$0xff]
        %v1042 = vld [vmem:[#allocation8 + $0x1c0] sm:$0xff]
        %v1043 = vld [vmem:[#allocation8 + $0x1c8] sm:$0xff]
        %v1044 = vld [vmem:[#allocation8 + $0x1d0] sm:$0xff]
        %v1045 = vld [vmem:[#allocation8 + $0x1d8] sm:$0xff]
        %v1046 = vld [vmem:[#allocation8 + $0x1e0] sm:$0xff]
        %v1047 = vld [vmem:[#allocation8 + $0x1e8] sm:$0xff]
        %v1048 = vld [vmem:[#allocation8 + $0x1f0] sm:$0xff]
        %v1049 = vld [vmem:[#allocation8 + $0x1f8] sm:$0xff]
        %1050 = vmatpush.msra.mxu0 %v1046
        %1051 = vmatpush.msra.mxu0 %v1042
        %1052 = vmatpush.msra.mxu0 %v1038
        %1053 = vmatpush.msra.mxu0 %v1034
        %1054 = vmatpush.msra.mxu0 %v1030
        %1055 = vmatpush.msra.mxu0 %v1026
        %1056 = vmatpush.msra.mxu0 %v1022
        %1057 = vmatpush.msra.mxu0 %v1018
        %1058 = vmatpush.msra.mxu0 %v1014
        %1059 = vmatpush.msra.mxu0 %v1010
        %1060 = vmatpush.msra.mxu0 %v1006
        %1061 = vmatpush.msra.mxu0 %v1002
        %1062 = vmatpush.msra.mxu0 %v998
        %1063 = vmatpush.msra.mxu0 %v994
        %1064 = vmatpush.msra.mxu0 %v990
        %1065 = vmatpush.msra.mxu0 %v986
        %1066 = vmatmul.f32.gmra.mxu0 %v976
        %v1067 = vpop.f32.mrf.mxu0
        %v1068 = vadd.f32 0.0, %v1067
        %1069 = vdwg.mxu0
        %1070 = vmatpush.msra.mxu0 %v1047
        %1071 = vmatpush.msra.mxu0 %v1043
        %1072 = vmatpush.msra.mxu0 %v1039
        %1073 = vmatpush.msra.mxu0 %v1035
        %1074 = vmatpush.msra.mxu0 %v1031
        %1075 = vmatpush.msra.mxu0 %v1027
        %1076 = vmatpush.msra.mxu0 %v1023
        %1077 = vmatpush.msra.mxu0 %v1019
        %1078 = vmatpush.msra.mxu0 %v1015
        %1079 = vmatpush.msra.mxu0 %v1011
        %1080 = vmatpush.msra.mxu0 %v1007
        %1081 = vmatpush.msra.mxu0 %v1003
        %1082 = vmatpush.msra.mxu0 %v999
        %1083 = vmatpush.msra.mxu0 %v995
        %1084 = vmatpush.msra.mxu0 %v991
        %1085 = vmatpush.msra.mxu0 %v987
        %1086 = vmatmul.f32.gmra.mxu0 %v976
        %v1087 = vpop.f32.mrf.mxu0
        %v1088 = vadd.f32 0.0, %v1087
        %1089 = vdwg.mxu0
        %1090 = vmatpush.msra.mxu0 %v1048
        %1091 = vmatpush.msra.mxu0 %v1044
        %1092 = vmatpush.msra.mxu0 %v1040
        %1093 = vmatpush.msra.mxu0 %v1036
        %1094 = vmatpush.msra.mxu0 %v1032
        %1095 = vmatpush.msra.mxu0 %v1028
        %1096 = vmatpush.msra.mxu0 %v1024
        %1097 = vmatpush.msra.mxu0 %v1020
        %1098 = vmatpush.msra.mxu0 %v1016
        %1099 = vmatpush.msra.mxu0 %v1012
        %1100 = vmatpush.msra.mxu0 %v1008
        %1101 = vmatpush.msra.mxu0 %v1004
        %1102 = vmatpush.msra.mxu0 %v1000
        %1103 = vmatpush.msra.mxu0 %v996
        %1104 = vmatpush.msra.mxu0 %v992
        %1105 = vmatpush.msra.mxu0 %v988
        %1106 = vmatmul.f32.gmra.mxu0 %v976
        %v1107 = vpop.f32.mrf.mxu0
        %v1108 = vadd.f32 0.0, %v1107
        %1109 = vdwg.mxu0
        %1110 = vmatpush.msra.mxu0 %v1049
        %1111 = vmatpush.msra.mxu0 %v1045
        %1112 = vmatpush.msra.mxu0 %v1041
        %1113 = vmatpush.msra.mxu0 %v1037
        %1114 = vmatpush.msra.mxu0 %v1033
        %1115 = vmatpush.msra.mxu0 %v1029
        %1116 = vmatpush.msra.mxu0 %v1025
        %1117 = vmatpush.msra.mxu0 %v1021
        %1118 = vmatpush.msra.mxu0 %v1017
        %1119 = vmatpush.msra.mxu0 %v1013
        %1120 = vmatpush.msra.mxu0 %v1009
        %1121 = vmatpush.msra.mxu0 %v1005
        %1122 = vmatpush.msra.mxu0 %v1001
        %1123 = vmatpush.msra.mxu0 %v997
        %1124 = vmatpush.msra.mxu0 %v993
        %1125 = vmatpush.msra.mxu0 %v989
        %1126 = vmatmul.f32.gmra.mxu0 %v976
        %v1127 = vpop.f32.mrf.mxu0
        %v1128 = vadd.f32 0.0, %v1127
        %1129 = vdwg.mxu0
        %v1130 = vadd.f32 %v982, %v1068
        %v1131 = vadd.f32 %v983, %v1088
        %v1132 = vadd.f32 %v984, %v1108
        %v1133 = vadd.f32 %v985, %v1128
        %v1134 = vxor.u32 %v1130, 2147483648
        %v1135 = vxor.u32 %v1131, 2147483648
        %v1136 = vmul.f32 %v1134, 1.442695
        %v1137 = vpow.pop %v1136
        %v1138 = vmul.f32 %v1135, 1.442695
        %v1139 = vpow.pop %v1138
        %v1140 = vadd.f32 %v1137, 1.0
        %v1141 = vadd.f32 %v1139, 1.0
        %v1142 = vrcp.pop %v1140
        %v1143 = vmul.f32 %v1140, %v1142
        %v1144 = vsub.f32 1.0, %v1143
        %v1145 = vmul.f32 %v1142, %v1144
        %v1146 = vadd.f32 %v1142, %v1145
        %vm1147 = vweird.f32 %v1140
        %vm1148 = vweird.f32 %v1142
        %vm1149 = vmor %vm1147, %vm1148
        %v1150 = vsel %vm1149, %v1142, %v1146
        %v1151 = vand.u32 2147483647, %v1140
        %vm1152 = vcmp.eq.f32.partialorder %v1151, 8.507059e+37
        %v1153 = vand.u32 %v1140, 2147483648
        %v1154 = vor.u32 1.1754944e-38, %v1153
        %v1155 = vsel %vm1152, %v1154, %v1150
        %v1156 = vmul.f32 1.0, %v1155
        %v1157 = vrcp.pop %v1141
        %v1158 = vmul.f32 %v1141, %v1157
        %v1159 = vsub.f32 1.0, %v1158
        %v1160 = vmul.f32 %v1157, %v1159
        %v1161 = vadd.f32 %v1157, %v1160
        %vm1162 = vweird.f32 %v1141
        %vm1163 = vweird.f32 %v1157
        %vm1164 = vmor %vm1162, %vm1163
        %v1165 = vsel %vm1164, %v1157, %v1161
        %v1166 = vand.u32 2147483647, %v1141
        %vm1167 = vcmp.eq.f32.partialorder %v1166, 8.507059e+37
        %v1168 = vand.u32 %v1141, 2147483648
        %v1169 = vor.u32 1.1754944e-38, %v1168
        %v1170 = vsel %vm1167, %v1169, %v1165
        %v1171 = vmul.f32 1.0, %v1170
        %v1172 = vtanh.pop %v1132
        %v1173 = vxor.u32 %v1133, 2147483648
        %v1174 = vmul.f32 %v1173, 1.442695
        %v1175 = vpow.pop %v1174
        %v1176 = vadd.f32 %v1175, 1.0
        %v1177 = vrcp.pop %v1176
        %v1178 = vmul.f32 %v1176, %v1177
        %v1179 = vsub.f32 1.0, %v1178
        %v1180 = vmul.f32 %v1177, %v1179
        %v1181 = vadd.f32 %v1177, %v1180
        %vm1182 = vweird.f32 %v1176
        %vm1183 = vweird.f32 %v1177
        %vm1184 = vmor %vm1182, %vm1183
        %v1185 = vsel %vm1184, %v1177, %v1181
        %v1186 = vand.u32 2147483647, %v1176
        %vm1187 = vcmp.eq.f32.partialorder %v1186, 8.507059e+37
        %v1188 = vand.u32 %v1176, 2147483648
        %v1189 = vor.u32 1.1754944e-38, %v1188
        %v1190 = vsel %vm1187, %v1189, %v1185
        %v1191 = vmul.f32 1.0, %v1190
        %v1192 = vmul.f32 %v1171, %v974
        %v1193 = vmul.f32 %v1156, %v1172
        %v1194 = vadd.f32 %v1192, %v1193
        %v1195 = vtanh.pop %v1194
        %v1196 = vmul.f32 %v1191, %v1195
        %s1197 = scalar_lea.vmem [#allocation4], 16
        %1198 = vst [vmem:[%s1197] sm:$0xff] %v1196
        %s1199 = smul.u32 3, 4
        %s1200 = smul.addr %s1199, 8
        %s1201 = scalar_lea.vmem [#allocation3], %s1200
        %v1202 = vld [vmem:[%s1201] sm:$0xff]
        %v1203 = vld [vmem:[%s1201 + $0x8] sm:$0xff]
        %v1204 = vld [vmem:[%s1201 + $0x10] sm:$0xff]
        %v1205 = vld [vmem:[%s1201 + $0x18] sm:$0xff]
        %v1206 = vld [vmem:[#allocation8] sm:$0xff]
        %v1207 = vld [vmem:[#allocation8 + $0x8] sm:$0xff]
        %v1208 = vld [vmem:[#allocation8 + $0x10] sm:$0xff]
        %v1209 = vld [vmem:[#allocation8 + $0x18] sm:$0xff]
        %v1210 = vld [vmem:[#allocation8 + $0x20] sm:$0xff]
        %v1211 = vld [vmem:[#allocation8 + $0x28] sm:$0xff]
        %v1212 = vld [vmem:[#allocation8 + $0x30] sm:$0xff]
        %v1213 = vld [vmem:[#allocation8 + $0x38] sm:$0xff]
        %v1214 = vld [vmem:[#allocation8 + $0x40] sm:$0xff]
        %v1215 = vld [vmem:[#allocation8 + $0x48] sm:$0xff]
        %v1216 = vld [vmem:[#allocation8 + $0x50] sm:$0xff]
        %v1217 = vld [vmem:[#allocation8 + $0x58] sm:$0xff]
        %v1218 = vld [vmem:[#allocation8 + $0x60] sm:$0xff]
        %v1219 = vld [vmem:[#allocation8 + $0x68] sm:$0xff]
        %v1220 = vld [vmem:[#allocation8 + $0x70] sm:$0xff]
        %v1221 = vld [vmem:[#allocation8 + $0x78] sm:$0xff]
        %v1222 = vld [vmem:[#allocation8 + $0x80] sm:$0xff]
        %v1223 = vld [vmem:[#allocation8 + $0x88] sm:$0xff]
        %v1224 = vld [vmem:[#allocation8 + $0x90] sm:$0xff]
        %v1225 = vld [vmem:[#allocation8 + $0x98] sm:$0xff]
        %v1226 = vld [vmem:[#allocation8 + $0xa0] sm:$0xff]
        %v1227 = vld [vmem:[#allocation8 + $0xa8] sm:$0xff]
        %v1228 = vld [vmem:[#allocation8 + $0xb0] sm:$0xff]
        %v1229 = vld [vmem:[#allocation8 + $0xb8] sm:$0xff]
        %v1230 = vld [vmem:[#allocation8 + $0xc0] sm:$0xff]
        %v1231 = vld [vmem:[#allocation8 + $0xc8] sm:$0xff]
        %v1232 = vld [vmem:[#allocation8 + $0xd0] sm:$0xff]
        %v1233 = vld [vmem:[#allocation8 + $0xd8] sm:$0xff]
        %v1234 = vld [vmem:[#allocation8 + $0xe0] sm:$0xff]
        %v1235 = vld [vmem:[#allocation8 + $0xe8] sm:$0xff]
        %v1236 = vld [vmem:[#allocation8 + $0xf0] sm:$0xff]
        %v1237 = vld [vmem:[#allocation8 + $0xf8] sm:$0xff]
        %v1238 = vld [vmem:[#allocation8 + $0x100] sm:$0xff]
        %v1239 = vld [vmem:[#allocation8 + $0x108] sm:$0xff]
        %v1240 = vld [vmem:[#allocation8 + $0x110] sm:$0xff]
        %v1241 = vld [vmem:[#allocation8 + $0x118] sm:$0xff]
        %v1242 = vld [vmem:[#allocation8 + $0x120] sm:$0xff]
        %v1243 = vld [vmem:[#allocation8 + $0x128] sm:$0xff]
        %v1244 = vld [vmem:[#allocation8 + $0x130] sm:$0xff]
        %v1245 = vld [vmem:[#allocation8 + $0x138] sm:$0xff]
        %v1246 = vld [vmem:[#allocation8 + $0x140] sm:$0xff]
        %v1247 = vld [vmem:[#allocation8 + $0x148] sm:$0xff]
        %v1248 = vld [vmem:[#allocation8 + $0x150] sm:$0xff]
        %v1249 = vld [vmem:[#allocation8 + $0x158] sm:$0xff]
        %v1250 = vld [vmem:[#allocation8 + $0x160] sm:$0xff]
        %v1251 = vld [vmem:[#allocation8 + $0x168] sm:$0xff]
        %v1252 = vld [vmem:[#allocation8 + $0x170] sm:$0xff]
        %v1253 = vld [vmem:[#allocation8 + $0x178] sm:$0xff]
        %v1254 = vld [vmem:[#allocation8 + $0x180] sm:$0xff]
        %v1255 = vld [vmem:[#allocation8 + $0x188] sm:$0xff]
        %v1256 = vld [vmem:[#allocation8 + $0x190] sm:$0xff]
        %v1257 = vld [vmem:[#allocation8 + $0x198] sm:$0xff]
        %v1258 = vld [vmem:[#allocation8 + $0x1a0] sm:$0xff]
        %v1259 = vld [vmem:[#allocation8 + $0x1a8] sm:$0xff]
        %v1260 = vld [vmem:[#allocation8 + $0x1b0] sm:$0xff]
        %v1261 = vld [vmem:[#allocation8 + $0x1b8] sm:$0xff]
        %v1262 = vld [vmem:[#allocation8 + $0x1c0] sm:$0xff]
        %v1263 = vld [vmem:[#allocation8 + $0x1c8] sm:$0xff]
        %v1264 = vld [vmem:[#allocation8 + $0x1d0] sm:$0xff]
        %v1265 = vld [vmem:[#allocation8 + $0x1d8] sm:$0xff]
        %v1266 = vld [vmem:[#allocation8 + $0x1e0] sm:$0xff]
        %v1267 = vld [vmem:[#allocation8 + $0x1e8] sm:$0xff]
        %v1268 = vld [vmem:[#allocation8 + $0x1f0] sm:$0xff]
        %v1269 = vld [vmem:[#allocation8 + $0x1f8] sm:$0xff]
        %1270 = vmatpush.msra.mxu0 %v1266
        %1271 = vmatpush.msra.mxu0 %v1262
        %1272 = vmatpush.msra.mxu0 %v1258
        %1273 = vmatpush.msra.mxu0 %v1254
        %1274 = vmatpush.msra.mxu0 %v1250
        %1275 = vmatpush.msra.mxu0 %v1246
        %1276 = vmatpush.msra.mxu0 %v1242
        %1277 = vmatpush.msra.mxu0 %v1238
        %1278 = vmatpush.msra.mxu0 %v1234
        %1279 = vmatpush.msra.mxu0 %v1230
        %1280 = vmatpush.msra.mxu0 %v1226
        %1281 = vmatpush.msra.mxu0 %v1222
        %1282 = vmatpush.msra.mxu0 %v1218
        %1283 = vmatpush.msra.mxu0 %v1214
        %1284 = vmatpush.msra.mxu0 %v1210
        %1285 = vmatpush.msra.mxu0 %v1206
        %1286 = vmatmul.f32.gmra.mxu0 %v1196
        %v1287 = vpop.f32.mrf.mxu0
        %v1288 = vadd.f32 0.0, %v1287
        %1289 = vdwg.mxu0
        %1290 = vmatpush.msra.mxu0 %v1267
        %1291 = vmatpush.msra.mxu0 %v1263
        %1292 = vmatpush.msra.mxu0 %v1259
        %1293 = vmatpush.msra.mxu0 %v1255
        %1294 = vmatpush.msra.mxu0 %v1251
        %1295 = vmatpush.msra.mxu0 %v1247
        %1296 = vmatpush.msra.mxu0 %v1243
        %1297 = vmatpush.msra.mxu0 %v1239
        %1298 = vmatpush.msra.mxu0 %v1235
        %1299 = vmatpush.msra.mxu0 %v1231
        %1300 = vmatpush.msra.mxu0 %v1227
        %1301 = vmatpush.msra.mxu0 %v1223
        %1302 = vmatpush.msra.mxu0 %v1219
        %1303 = vmatpush.msra.mxu0 %v1215
        %1304 = vmatpush.msra.mxu0 %v1211
        %1305 = vmatpush.msra.mxu0 %v1207
        %1306 = vmatmul.f32.gmra.mxu0 %v1196
        %v1307 = vpop.f32.mrf.mxu0
        %v1308 = vadd.f32 0.0, %v1307
        %1309 = vdwg.mxu0
        %1310 = vmatpush.msra.mxu0 %v1268
        %1311 = vmatpush.msra.mxu0 %v1264
        %1312 = vmatpush.msra.mxu0 %v1260
        %1313 = vmatpush.msra.mxu0 %v1256
        %1314 = vmatpush.msra.mxu0 %v1252
        %1315 = vmatpush.msra.mxu0 %v1248
        %1316 = vmatpush.msra.mxu0 %v1244
        %1317 = vmatpush.msra.mxu0 %v1240
        %1318 = vmatpush.msra.mxu0 %v1236
        %1319 = vmatpush.msra.mxu0 %v1232
        %1320 = vmatpush.msra.mxu0 %v1228
        %1321 = vmatpush.msra.mxu0 %v1224
        %1322 = vmatpush.msra.mxu0 %v1220
        %1323 = vmatpush.msra.mxu0 %v1216
        %1324 = vmatpush.msra.mxu0 %v1212
        %1325 = vmatpush.msra.mxu0 %v1208
        %1326 = vmatmul.f32.gmra.mxu0 %v1196
        %v1327 = vpop.f32.mrf.mxu0
        %v1328 = vadd.f32 0.0, %v1327
        %1329 = vdwg.mxu0
        %1330 = vmatpush.msra.mxu0 %v1269
        %1331 = vmatpush.msra.mxu0 %v1265
        %1332 = vmatpush.msra.mxu0 %v1261
        %1333 = vmatpush.msra.mxu0 %v1257
        %1334 = vmatpush.msra.mxu0 %v1253
        %1335 = vmatpush.msra.mxu0 %v1249
        %1336 = vmatpush.msra.mxu0 %v1245
        %1337 = vmatpush.msra.mxu0 %v1241
        %1338 = vmatpush.msra.mxu0 %v1237
        %1339 = vmatpush.msra.mxu0 %v1233
        %1340 = vmatpush.msra.mxu0 %v1229
        %1341 = vmatpush.msra.mxu0 %v1225
        %1342 = vmatpush.msra.mxu0 %v1221
        %1343 = vmatpush.msra.mxu0 %v1217
        %1344 = vmatpush.msra.mxu0 %v1213
        %1345 = vmatpush.msra.mxu0 %v1209
        %1346 = vmatmul.f32.gmra.mxu0 %v1196
        %v1347 = vpop.f32.mrf.mxu0
        %v1348 = vadd.f32 0.0, %v1347
        %1349 = vdwg.mxu0
        %v1350 = vadd.f32 %v1202, %v1288
        %v1351 = vadd.f32 %v1203, %v1308
        %v1352 = vadd.f32 %v1204, %v1328
        %v1353 = vadd.f32 %v1205, %v1348
        %v1354 = vxor.u32 %v1350, 2147483648
        %v1355 = vxor.u32 %v1351, 2147483648
        %v1356 = vmul.f32 %v1354, 1.442695
        %v1357 = vpow.pop %v1356
        %v1358 = vmul.f32 %v1355, 1.442695
        %v1359 = vpow.pop %v1358
        %v1360 = vadd.f32 %v1357, 1.0
        %v1361 = vadd.f32 %v1359, 1.0
        %v1362 = vrcp.pop %v1360
        %v1363 = vmul.f32 %v1360, %v1362
        %v1364 = vsub.f32 1.0, %v1363
        %v1365 = vmul.f32 %v1362, %v1364
        %v1366 = vadd.f32 %v1362, %v1365
        %vm1367 = vweird.f32 %v1360
        %vm1368 = vweird.f32 %v1362
        %vm1369 = vmor %vm1367, %vm1368
        %v1370 = vsel %vm1369, %v1362, %v1366
        %v1371 = vand.u32 2147483647, %v1360
        %vm1372 = vcmp.eq.f32.partialorder %v1371, 8.507059e+37
        %v1373 = vand.u32 %v1360, 2147483648
        %v1374 = vor.u32 1.1754944e-38, %v1373
        %v1375 = vsel %vm1372, %v1374, %v1370
        %v1376 = vmul.f32 1.0, %v1375
        %v1377 = vrcp.pop %v1361
        %v1378 = vmul.f32 %v1361, %v1377
        %v1379 = vsub.f32 1.0, %v1378
        %v1380 = vmul.f32 %v1377, %v1379
        %v1381 = vadd.f32 %v1377, %v1380
        %vm1382 = vweird.f32 %v1361
        %vm1383 = vweird.f32 %v1377
        %vm1384 = vmor %vm1382, %vm1383
        %v1385 = vsel %vm1384, %v1377, %v1381
        %v1386 = vand.u32 2147483647, %v1361
        %vm1387 = vcmp.eq.f32.partialorder %v1386, 8.507059e+37
        %v1388 = vand.u32 %v1361, 2147483648
        %v1389 = vor.u32 1.1754944e-38, %v1388
        %v1390 = vsel %vm1387, %v1389, %v1385
        %v1391 = vmul.f32 1.0, %v1390
        %v1392 = vtanh.pop %v1352
        %v1393 = vxor.u32 %v1353, 2147483648
        %v1394 = vmul.f32 %v1393, 1.442695
        %v1395 = vpow.pop %v1394
        %v1396 = vadd.f32 %v1395, 1.0
        %v1397 = vrcp.pop %v1396
        %v1398 = vmul.f32 %v1396, %v1397
        %v1399 = vsub.f32 1.0, %v1398
        %v1400 = vmul.f32 %v1397, %v1399
        %v1401 = vadd.f32 %v1397, %v1400
        %vm1402 = vweird.f32 %v1396
        %vm1403 = vweird.f32 %v1397
        %vm1404 = vmor %vm1402, %vm1403
        %v1405 = vsel %vm1404, %v1397, %v1401
        %v1406 = vand.u32 2147483647, %v1396
        %vm1407 = vcmp.eq.f32.partialorder %v1406, 8.507059e+37
        %v1408 = vand.u32 %v1396, 2147483648
        %v1409 = vor.u32 1.1754944e-38, %v1408
        %v1410 = vsel %vm1407, %v1409, %v1405
        %v1411 = vmul.f32 1.0, %v1410
        %v1412 = vmul.f32 %v1391, %v1194
        %v1413 = vmul.f32 %v1376, %v1392
        %v1414 = vadd.f32 %v1412, %v1413
        %v1415 = vtanh.pop %v1414
        %v1416 = vmul.f32 %v1411, %v1415
        %s1417 = scalar_lea.vmem [#allocation4], 24
        %1418 = vst [vmem:[%s1417] sm:$0xff] %v1416
        %s1419 = smul.u32 4, 4
        %s1420 = smul.addr %s1419, 8
        %s1421 = scalar_lea.vmem [#allocation3], %s1420
        %v1422 = vld [vmem:[%s1421] sm:$0xff]
        %v1423 = vld [vmem:[%s1421 + $0x8] sm:$0xff]
        %v1424 = vld [vmem:[%s1421 + $0x10] sm:$0xff]
        %v1425 = vld [vmem:[%s1421 + $0x18] sm:$0xff]
        %v1426 = vld [vmem:[#allocation8] sm:$0xff]
        %v1427 = vld [vmem:[#allocation8 + $0x8] sm:$0xff]
        %v1428 = vld [vmem:[#allocation8 + $0x10] sm:$0xff]
        %v1429 = vld [vmem:[#allocation8 + $0x18] sm:$0xff]
        %v1430 = vld [vmem:[#allocation8 + $0x20] sm:$0xff]
        %v1431 = vld [vmem:[#allocation8 + $0x28] sm:$0xff]
        %v1432 = vld [vmem:[#allocation8 + $0x30] sm:$0xff]
        %v1433 = vld [vmem:[#allocation8 + $0x38] sm:$0xff]
        %v1434 = vld [vmem:[#allocation8 + $0x40] sm:$0xff]
        %v1435 = vld [vmem:[#allocation8 + $0x48] sm:$0xff]
        %v1436 = vld [vmem:[#allocation8 + $0x50] sm:$0xff]
        %v1437 = vld [vmem:[#allocation8 + $0x58] sm:$0xff]
        %v1438 = vld [vmem:[#allocation8 + $0x60] sm:$0xff]
        %v1439 = vld [vmem:[#allocation8 + $0x68] sm:$0xff]
        %v1440 = vld [vmem:[#allocation8 + $0x70] sm:$0xff]
        %v1441 = vld [vmem:[#allocation8 + $0x78] sm:$0xff]
        %v1442 = vld [vmem:[#allocation8 + $0x80] sm:$0xff]
        %v1443 = vld [vmem:[#allocation8 + $0x88] sm:$0xff]
        %v1444 = vld [vmem:[#allocation8 + $0x90] sm:$0xff]
        %v1445 = vld [vmem:[#allocation8 + $0x98] sm:$0xff]
        %v1446 = vld [vmem:[#allocation8 + $0xa0] sm:$0xff]
        %v1447 = vld [vmem:[#allocation8 + $0xa8] sm:$0xff]
        %v1448 = vld [vmem:[#allocation8 + $0xb0] sm:$0xff]
        %v1449 = vld [vmem:[#allocation8 + $0xb8] sm:$0xff]
        %v1450 = vld [vmem:[#allocation8 + $0xc0] sm:$0xff]
        %v1451 = vld [vmem:[#allocation8 + $0xc8] sm:$0xff]
        %v1452 = vld [vmem:[#allocation8 + $0xd0] sm:$0xff]
        %v1453 = vld [vmem:[#allocation8 + $0xd8] sm:$0xff]
        %v1454 = vld [vmem:[#allocation8 + $0xe0] sm:$0xff]
        %v1455 = vld [vmem:[#allocation8 + $0xe8] sm:$0xff]
        %v1456 = vld [vmem:[#allocation8 + $0xf0] sm:$0xff]
        %v1457 = vld [vmem:[#allocation8 + $0xf8] sm:$0xff]
        %v1458 = vld [vmem:[#allocation8 + $0x100] sm:$0xff]
        %v1459 = vld [vmem:[#allocation8 + $0x108] sm:$0xff]
        %v1460 = vld [vmem:[#allocation8 + $0x110] sm:$0xff]
        %v1461 = vld [vmem:[#allocation8 + $0x118] sm:$0xff]
        %v1462 = vld [vmem:[#allocation8 + $0x120] sm:$0xff]
        %v1463 = vld [vmem:[#allocation8 + $0x128] sm:$0xff]
        %v1464 = vld [vmem:[#allocation8 + $0x130] sm:$0xff]
        %v1465 = vld [vmem:[#allocation8 + $0x138] sm:$0xff]
        %v1466 = vld [vmem:[#allocation8 + $0x140] sm:$0xff]
        %v1467 = vld [vmem:[#allocation8 + $0x148] sm:$0xff]
        %v1468 = vld [vmem:[#allocation8 + $0x150] sm:$0xff]
        %v1469 = vld [vmem:[#allocation8 + $0x158] sm:$0xff]
        %v1470 = vld [vmem:[#allocation8 + $0x160] sm:$0xff]
        %v1471 = vld [vmem:[#allocation8 + $0x168] sm:$0xff]
        %v1472 = vld [vmem:[#allocation8 + $0x170] sm:$0xff]
        %v1473 = vld [vmem:[#allocation8 + $0x178] sm:$0xff]
        %v1474 = vld [vmem:[#allocation8 + $0x180] sm:$0xff]
        %v1475 = vld [vmem:[#allocation8 + $0x188] sm:$0xff]
        %v1476 = vld [vmem:[#allocation8 + $0x190] sm:$0xff]
        %v1477 = vld [vmem:[#allocation8 + $0x198] sm:$0xff]
        %v1478 = vld [vmem:[#allocation8 + $0x1a0] sm:$0xff]
        %v1479 = vld [vmem:[#allocation8 + $0x1a8] sm:$0xff]
        %v1480 = vld [vmem:[#allocation8 + $0x1b0] sm:$0xff]
        %v1481 = vld [vmem:[#allocation8 + $0x1b8] sm:$0xff]
        %v1482 = vld [vmem:[#allocation8 + $0x1c0] sm:$0xff]
        %v1483 = vld [vmem:[#allocation8 + $0x1c8] sm:$0xff]
        %v1484 = vld [vmem:[#allocation8 + $0x1d0] sm:$0xff]
        %v1485 = vld [vmem:[#allocation8 + $0x1d8] sm:$0xff]
        %v1486 = vld [vmem:[#allocation8 + $0x1e0] sm:$0xff]
        %v1487 = vld [vmem:[#allocation8 + $0x1e8] sm:$0xff]
        %v1488 = vld [vmem:[#allocation8 + $0x1f0] sm:$0xff]
        %v1489 = vld [vmem:[#allocation8 + $0x1f8] sm:$0xff]
        %1490 = vmatpush.msra.mxu0 %v1486
        %1491 = vmatpush.msra.mxu0 %v1482
        %1492 = vmatpush.msra.mxu0 %v1478
        %1493 = vmatpush.msra.mxu0 %v1474
        %1494 = vmatpush.msra.mxu0 %v1470
        %1495 = vmatpush.msra.mxu0 %v1466
        %1496 = vmatpush.msra.mxu0 %v1462
        %1497 = vmatpush.msra.mxu0 %v1458
        %1498 = vmatpush.msra.mxu0 %v1454
        %1499 = vmatpush.msra.mxu0 %v1450
        %1500 = vmatpush.msra.mxu0 %v1446
        %1501 = vmatpush.msra.mxu0 %v1442
        %1502 = vmatpush.msra.mxu0 %v1438
        %1503 = vmatpush.msra.mxu0 %v1434
        %1504 = vmatpush.msra.mxu0 %v1430
        %1505 = vmatpush.msra.mxu0 %v1426
        %1506 = vmatmul.f32.gmra.mxu0 %v1416
        %v1507 = vpop.f32.mrf.mxu0
        %v1508 = vadd.f32 0.0, %v1507
        %1509 = vdwg.mxu0
        %1510 = vmatpush.msra.mxu0 %v1487
        %1511 = vmatpush.msra.mxu0 %v1483
        %1512 = vmatpush.msra.mxu0 %v1479
        %1513 = vmatpush.msra.mxu0 %v1475
        %1514 = vmatpush.msra.mxu0 %v1471
        %1515 = vmatpush.msra.mxu0 %v1467
        %1516 = vmatpush.msra.mxu0 %v1463
        %1517 = vmatpush.msra.mxu0 %v1459
        %1518 = vmatpush.msra.mxu0 %v1455
        %1519 = vmatpush.msra.mxu0 %v1451
        %1520 = vmatpush.msra.mxu0 %v1447
        %1521 = vmatpush.msra.mxu0 %v1443
        %1522 = vmatpush.msra.mxu0 %v1439
        %1523 = vmatpush.msra.mxu0 %v1435
        %1524 = vmatpush.msra.mxu0 %v1431
        %1525 = vmatpush.msra.mxu0 %v1427
        %1526 = vmatmul.f32.gmra.mxu0 %v1416
        %v1527 = vpop.f32.mrf.mxu0
        %v1528 = vadd.f32 0.0, %v1527
        %1529 = vdwg.mxu0
        %1530 = vmatpush.msra.mxu0 %v1488
        %1531 = vmatpush.msra.mxu0 %v1484
        %1532 = vmatpush.msra.mxu0 %v1480
        %1533 = vmatpush.msra.mxu0 %v1476
        %1534 = vmatpush.msra.mxu0 %v1472
        %1535 = vmatpush.msra.mxu0 %v1468
        %1536 = vmatpush.msra.mxu0 %v1464
        %1537 = vmatpush.msra.mxu0 %v1460
        %1538 = vmatpush.msra.mxu0 %v1456
        %1539 = vmatpush.msra.mxu0 %v1452
        %1540 = vmatpush.msra.mxu0 %v1448
        %1541 = vmatpush.msra.mxu0 %v1444
        %1542 = vmatpush.msra.mxu0 %v1440
        %1543 = vmatpush.msra.mxu0 %v1436
        %1544 = vmatpush.msra.mxu0 %v1432
        %1545 = vmatpush.msra.mxu0 %v1428
        %1546 = vmatmul.f32.gmra.mxu0 %v1416
        %v1547 = vpop.f32.mrf.mxu0
        %v1548 = vadd.f32 0.0, %v1547
        %1549 = vdwg.mxu0
        %1550 = vmatpush.msra.mxu0 %v1489
        %1551 = vmatpush.msra.mxu0 %v1485
        %1552 = vmatpush.msra.mxu0 %v1481
        %1553 = vmatpush.msra.mxu0 %v1477
        %1554 = vmatpush.msra.mxu0 %v1473
        %1555 = vmatpush.msra.mxu0 %v1469
        %1556 = vmatpush.msra.mxu0 %v1465
        %1557 = vmatpush.msra.mxu0 %v1461
        %1558 = vmatpush.msra.mxu0 %v1457
        %1559 = vmatpush.msra.mxu0 %v1453
        %1560 = vmatpush.msra.mxu0 %v1449
        %1561 = vmatpush.msra.mxu0 %v1445
        %1562 = vmatpush.msra.mxu0 %v1441
        %1563 = vmatpush.msra.mxu0 %v1437
        %1564 = vmatpush.msra.mxu0 %v1433
        %1565 = vmatpush.msra.mxu0 %v1429
        %1566 = vmatmul.f32.gmra.mxu0 %v1416
        %v1567 = vpop.f32.mrf.mxu0
        %v1568 = vadd.f32 0.0, %v1567
        %1569 = vdwg.mxu0
        %v1570 = vadd.f32 %v1422, %v1508
        %v1571 = vadd.f32 %v1423, %v1528
        %v1572 = vadd.f32 %v1424, %v1548
        %v1573 = vadd.f32 %v1425, %v1568
        %v1574 = vxor.u32 %v1570, 2147483648
        %v1575 = vxor.u32 %v1571, 2147483648
        %v1576 = vmul.f32 %v1574, 1.442695
        %v1577 = vpow.pop %v1576
        %v1578 = vmul.f32 %v1575, 1.442695
        %v1579 = vpow.pop %v1578
        %v1580 = vadd.f32 %v1577, 1.0
        %v1581 = vadd.f32 %v1579, 1.0
        %v1582 = vrcp.pop %v1580
        %v1583 = vmul.f32 %v1580, %v1582
        %v1584 = vsub.f32 1.0, %v1583
        %v1585 = vmul.f32 %v1582, %v1584
        %v1586 = vadd.f32 %v1582, %v1585
        %vm1587 = vweird.f32 %v1580
        %vm1588 = vweird.f32 %v1582
        %vm1589 = vmor %vm1587, %vm1588
        %v1590 = vsel %vm1589, %v1582, %v1586
        %v1591 = vand.u32 2147483647, %v1580
        %vm1592 = vcmp.eq.f32.partialorder %v1591, 8.507059e+37
        %v1593 = vand.u32 %v1580, 2147483648
        %v1594 = vor.u32 1.1754944e-38, %v1593
        %v1595 = vsel %vm1592, %v1594, %v1590
        %v1596 = vmul.f32 1.0, %v1595
        %v1597 = vrcp.pop %v1581
        %v1598 = vmul.f32 %v1581, %v1597
        %v1599 = vsub.f32 1.0, %v1598
        %v1600 = vmul.f32 %v1597, %v1599
        %v1601 = vadd.f32 %v1597, %v1600
        %vm1602 = vweird.f32 %v1581
        %vm1603 = vweird.f32 %v1597
        %vm1604 = vmor %vm1602, %vm1603
        %v1605 = vsel %vm1604, %v1597, %v1601
        %v1606 = vand.u32 2147483647, %v1581
        %vm1607 = vcmp.eq.f32.partialorder %v1606, 8.507059e+37
        %v1608 = vand.u32 %v1581, 2147483648
        %v1609 = vor.u32 1.1754944e-38, %v1608
        %v1610 = vsel %vm1607, %v1609, %v1605
        %v1611 = vmul.f32 1.0, %v1610
        %v1612 = vtanh.pop %v1572
        %v1613 = vxor.u32 %v1573, 2147483648
        %v1614 = vmul.f32 %v1613, 1.442695
        %v1615 = vpow.pop %v1614
        %v1616 = vadd.f32 %v1615, 1.0
        %v1617 = vrcp.pop %v1616
        %v1618 = vmul.f32 %v1616, %v1617
        %v1619 = vsub.f32 1.0, %v1618
        %v1620 = vmul.f32 %v1617, %v1619
        %v1621 = vadd.f32 %v1617, %v1620
        %vm1622 = vweird.f32 %v1616
        %vm1623 = vweird.f32 %v1617
        %vm1624 = vmor %vm1622, %vm1623
        %v1625 = vsel %vm1624, %v1617, %v1621
        %v1626 = vand.u32 2147483647, %v1616
        %vm1627 = vcmp.eq.f32.partialorder %v1626, 8.507059e+37
        %v1628 = vand.u32 %v1616, 2147483648
        %v1629 = vor.u32 1.1754944e-38, %v1628
        %v1630 = vsel %vm1627, %v1629, %v1625
        %v1631 = vmul.f32 1.0, %v1630
        %v1632 = vmul.f32 %v1611, %v1414
        %v1633 = vmul.f32 %v1596, %v1612
        %v1634 = vadd.f32 %v1632, %v1633
        %v1635 = vtanh.pop %v1634
        %v1636 = vmul.f32 %v1631, %v1635
        %s1637 = scalar_lea.vmem [#allocation4], 32
        %1638 = vst [vmem:[%s1637] sm:$0xff] %v1636
        %s1639 = smul.u32 5, 4
        %s1640 = smul.addr %s1639, 8
        %s1641 = scalar_lea.vmem [#allocation3], %s1640
        %v1642 = vld [vmem:[%s1641] sm:$0xff]
        %v1643 = vld [vmem:[%s1641 + $0x8] sm:$0xff]
        %v1644 = vld [vmem:[%s1641 + $0x10] sm:$0xff]
        %v1645 = vld [vmem:[%s1641 + $0x18] sm:$0xff]
        %v1646 = vld [vmem:[#allocation8] sm:$0xff]
        %v1647 = vld [vmem:[#allocation8 + $0x8] sm:$0xff]
        %v1648 = vld [vmem:[#allocation8 + $0x10] sm:$0xff]
        %v1649 = vld [vmem:[#allocation8 + $0x18] sm:$0xff]
        %v1650 = vld [vmem:[#allocation8 + $0x20] sm:$0xff]
        %v1651 = vld [vmem:[#allocation8 + $0x28] sm:$0xff]
        %v1652 = vld [vmem:[#allocation8 + $0x30] sm:$0xff]
        %v1653 = vld [vmem:[#allocation8 + $0x38] sm:$0xff]
        %v1654 = vld [vmem:[#allocation8 + $0x40] sm:$0xff]
        %v1655 = vld [vmem:[#allocation8 + $0x48] sm:$0xff]
        %v1656 = vld [vmem:[#allocation8 + $0x50] sm:$0xff]
        %v1657 = vld [vmem:[#allocation8 + $0x58] sm:$0xff]
        %v1658 = vld [vmem:[#allocation8 + $0x60] sm:$0xff]
        %v1659 = vld [vmem:[#allocation8 + $0x68] sm:$0xff]
        %v1660 = vld [vmem:[#allocation8 + $0x70] sm:$0xff]
        %v1661 = vld [vmem:[#allocation8 + $0x78] sm:$0xff]
        %v1662 = vld [vmem:[#allocation8 + $0x80] sm:$0xff]
        %v1663 = vld [vmem:[#allocation8 + $0x88] sm:$0xff]
        %v1664 = vld [vmem:[#allocation8 + $0x90] sm:$0xff]
        %v1665 = vld [vmem:[#allocation8 + $0x98] sm:$0xff]
        %v1666 = vld [vmem:[#allocation8 + $0xa0] sm:$0xff]
        %v1667 = vld [vmem:[#allocation8 + $0xa8] sm:$0xff]
        %v1668 = vld [vmem:[#allocation8 + $0xb0] sm:$0xff]
        %v1669 = vld [vmem:[#allocation8 + $0xb8] sm:$0xff]
        %v1670 = vld [vmem:[#allocation8 + $0xc0] sm:$0xff]
        %v1671 = vld [vmem:[#allocation8 + $0xc8] sm:$0xff]
        %v1672 = vld [vmem:[#allocation8 + $0xd0] sm:$0xff]
        %v1673 = vld [vmem:[#allocation8 + $0xd8] sm:$0xff]
        %v1674 = vld [vmem:[#allocation8 + $0xe0] sm:$0xff]
        %v1675 = vld [vmem:[#allocation8 + $0xe8] sm:$0xff]
        %v1676 = vld [vmem:[#allocation8 + $0xf0] sm:$0xff]
        %v1677 = vld [vmem:[#allocation8 + $0xf8] sm:$0xff]
        %v1678 = vld [vmem:[#allocation8 + $0x100] sm:$0xff]
        %v1679 = vld [vmem:[#allocation8 + $0x108] sm:$0xff]
        %v1680 = vld [vmem:[#allocation8 + $0x110] sm:$0xff]
        %v1681 = vld [vmem:[#allocation8 + $0x118] sm:$0xff]
        %v1682 = vld [vmem:[#allocation8 + $0x120] sm:$0xff]
        %v1683 = vld [vmem:[#allocation8 + $0x128] sm:$0xff]
        %v1684 = vld [vmem:[#allocation8 + $0x130] sm:$0xff]
        %v1685 = vld [vmem:[#allocation8 + $0x138] sm:$0xff]
        %v1686 = vld [vmem:[#allocation8 + $0x140] sm:$0xff]
        %v1687 = vld [vmem:[#allocation8 + $0x148] sm:$0xff]
        %v1688 = vld [vmem:[#allocation8 + $0x150] sm:$0xff]
        %v1689 = vld [vmem:[#allocation8 + $0x158] sm:$0xff]
        %v1690 = vld [vmem:[#allocation8 + $0x160] sm:$0xff]
        %v1691 = vld [vmem:[#allocation8 + $0x168] sm:$0xff]
        %v1692 = vld [vmem:[#allocation8 + $0x170] sm:$0xff]
        %v1693 = vld [vmem:[#allocation8 + $0x178] sm:$0xff]
        %v1694 = vld [vmem:[#allocation8 + $0x180] sm:$0xff]
        %v1695 = vld [vmem:[#allocation8 + $0x188] sm:$0xff]
        %v1696 = vld [vmem:[#allocation8 + $0x190] sm:$0xff]
        %v1697 = vld [vmem:[#allocation8 + $0x198] sm:$0xff]
        %v1698 = vld [vmem:[#allocation8 + $0x1a0] sm:$0xff]
        %v1699 = vld [vmem:[#allocation8 + $0x1a8] sm:$0xff]
        %v1700 = vld [vmem:[#allocation8 + $0x1b0] sm:$0xff]
        %v1701 = vld [vmem:[#allocation8 + $0x1b8] sm:$0xff]
        %v1702 = vld [vmem:[#allocation8 + $0x1c0] sm:$0xff]
        %v1703 = vld [vmem:[#allocation8 + $0x1c8] sm:$0xff]
        %v1704 = vld [vmem:[#allocation8 + $0x1d0] sm:$0xff]
        %v1705 = vld [vmem:[#allocation8 + $0x1d8] sm:$0xff]
        %v1706 = vld [vmem:[#allocation8 + $0x1e0] sm:$0xff]
        %v1707 = vld [vmem:[#allocation8 + $0x1e8] sm:$0xff]
        %v1708 = vld [vmem:[#allocation8 + $0x1f0] sm:$0xff]
        %v1709 = vld [vmem:[#allocation8 + $0x1f8] sm:$0xff]
        %1710 = vmatpush.msra.mxu0 %v1706
        %1711 = vmatpush.msra.mxu0 %v1702
        %1712 = vmatpush.msra.mxu0 %v1698
        %1713 = vmatpush.msra.mxu0 %v1694
        %1714 = vmatpush.msra.mxu0 %v1690
        %1715 = vmatpush.msra.mxu0 %v1686
        %1716 = vmatpush.msra.mxu0 %v1682
        %1717 = vmatpush.msra.mxu0 %v1678
        %1718 = vmatpush.msra.mxu0 %v1674
        %1719 = vmatpush.msra.mxu0 %v1670
        %1720 = vmatpush.msra.mxu0 %v1666
        %1721 = vmatpush.msra.mxu0 %v1662
        %1722 = vmatpush.msra.mxu0 %v1658
        %1723 = vmatpush.msra.mxu0 %v1654
        %1724 = vmatpush.msra.mxu0 %v1650
        %1725 = vmatpush.msra.mxu0 %v1646
        %1726 = vmatmul.f32.gmra.mxu0 %v1636
        %v1727 = vpop.f32.mrf.mxu0
        %v1728 = vadd.f32 0.0, %v1727
        %1729 = vdwg.mxu0
        %1730 = vmatpush.msra.mxu0 %v1707
        %1731 = vmatpush.msra.mxu0 %v1703
        %1732 = vmatpush.msra.mxu0 %v1699
        %1733 = vmatpush.msra.mxu0 %v1695
        %1734 = vmatpush.msra.mxu0 %v1691
        %1735 = vmatpush.msra.mxu0 %v1687
        %1736 = vmatpush.msra.mxu0 %v1683
        %1737 = vmatpush.msra.mxu0 %v1679
        %1738 = vmatpush.msra.mxu0 %v1675
        %1739 = vmatpush.msra.mxu0 %v1671
        %1740 = vmatpush.msra.mxu0 %v1667
        %1741 = vmatpush.msra.mxu0 %v1663
        %1742 = vmatpush.msra.mxu0 %v1659
        %1743 = vmatpush.msra.mxu0 %v1655
        %1744 = vmatpush.msra.mxu0 %v1651
        %1745 = vmatpush.msra.mxu0 %v1647
        %1746 = vmatmul.f32.gmra.mxu0 %v1636
        %v1747 = vpop.f32.mrf.mxu0
        %v1748 = vadd.f32 0.0, %v1747
        %1749 = vdwg.mxu0
        %1750 = vmatpush.msra.mxu0 %v1708
        %1751 = vmatpush.msra.mxu0 %v1704
        %1752 = vmatpush.msra.mxu0 %v1700
        %1753 = vmatpush.msra.mxu0 %v1696
        %1754 = vmatpush.msra.mxu0 %v1692
        %1755 = vmatpush.msra.mxu0 %v1688
        %1756 = vmatpush.msra.mxu0 %v1684
        %1757 = vmatpush.msra.mxu0 %v1680
        %1758 = vmatpush.msra.mxu0 %v1676
        %1759 = vmatpush.msra.mxu0 %v1672
        %1760 = vmatpush.msra.mxu0 %v1668
        %1761 = vmatpush.msra.mxu0 %v1664
        %1762 = vmatpush.msra.mxu0 %v1660
        %1763 = vmatpush.msra.mxu0 %v1656
        %1764 = vmatpush.msra.mxu0 %v1652
        %1765 = vmatpush.msra.mxu0 %v1648
        %1766 = vmatmul.f32.gmra.mxu0 %v1636
        %v1767 = vpop.f32.mrf.mxu0
        %v1768 = vadd.f32 0.0, %v1767
        %1769 = vdwg.mxu0
        %1770 = vmatpush.msra.mxu0 %v1709
        %1771 = vmatpush.msra.mxu0 %v1705
        %1772 = vmatpush.msra.mxu0 %v1701
        %1773 = vmatpush.msra.mxu0 %v1697
        %1774 = vmatpush.msra.mxu0 %v1693
        %1775 = vmatpush.msra.mxu0 %v1689
        %1776 = vmatpush.msra.mxu0 %v1685
        %1777 = vmatpush.msra.mxu0 %v1681
        %1778 = vmatpush.msra.mxu0 %v1677
        %1779 = vmatpush.msra.mxu0 %v1673
        %1780 = vmatpush.msra.mxu0 %v1669
        %1781 = vmatpush.msra.mxu0 %v1665
        %1782 = vmatpush.msra.mxu0 %v1661
        %1783 = vmatpush.msra.mxu0 %v1657
        %1784 = vmatpush.msra.mxu0 %v1653
        %1785 = vmatpush.msra.mxu0 %v1649
        %1786 = vmatmul.f32.gmra.mxu0 %v1636
        %v1787 = vpop.f32.mrf.mxu0
        %v1788 = vadd.f32 0.0, %v1787
        %1789 = vdwg.mxu0
        %v1790 = vadd.f32 %v1642, %v1728
        %v1791 = vadd.f32 %v1643, %v1748
        %v1792 = vadd.f32 %v1644, %v1768
        %v1793 = vadd.f32 %v1645, %v1788
        %v1794 = vxor.u32 %v1790, 2147483648
        %v1795 = vxor.u32 %v1791, 2147483648
        %v1796 = vmul.f32 %v1794, 1.442695
        %v1797 = vpow.pop %v1796
        %v1798 = vmul.f32 %v1795, 1.442695
        %v1799 = vpow.pop %v1798
        %v1800 = vadd.f32 %v1797, 1.0
        %v1801 = vadd.f32 %v1799, 1.0
        %v1802 = vrcp.pop %v1800
        %v1803 = vmul.f32 %v1800, %v1802
        %v1804 = vsub.f32 1.0, %v1803
        %v1805 = vmul.f32 %v1802, %v1804
        %v1806 = vadd.f32 %v1802, %v1805
        %vm1807 = vweird.f32 %v1800
        %vm1808 = vweird.f32 %v1802
        %vm1809 = vmor %vm1807, %vm1808
        %v1810 = vsel %vm1809, %v1802, %v1806
        %v1811 = vand.u32 2147483647, %v1800
        %vm1812 = vcmp.eq.f32.partialorder %v1811, 8.507059e+37
        %v1813 = vand.u32 %v1800, 2147483648
        %v1814 = vor.u32 1.1754944e-38, %v1813
        %v1815 = vsel %vm1812, %v1814, %v1810
        %v1816 = vmul.f32 1.0, %v1815
        %v1817 = vrcp.pop %v1801
        %v1818 = vmul.f32 %v1801, %v1817
        %v1819 = vsub.f32 1.0, %v1818
        %v1820 = vmul.f32 %v1817, %v1819
        %v1821 = vadd.f32 %v1817, %v1820
        %vm1822 = vweird.f32 %v1801
        %vm1823 = vweird.f32 %v1817
        %vm1824 = vmor %vm1822, %vm1823
        %v1825 = vsel %vm1824, %v1817, %v1821
        %v1826 = vand.u32 2147483647, %v1801
        %vm1827 = vcmp.eq.f32.partialorder %v1826, 8.507059e+37
        %v1828 = vand.u32 %v1801, 2147483648
        %v1829 = vor.u32 1.1754944e-38, %v1828
        %v1830 = vsel %vm1827, %v1829, %v1825
        %v1831 = vmul.f32 1.0, %v1830
        %v1832 = vtanh.pop %v1792
        %v1833 = vxor.u32 %v1793, 2147483648
        %v1834 = vmul.f32 %v1833, 1.442695
        %v1835 = vpow.pop %v1834
        %v1836 = vadd.f32 %v1835, 1.0
        %v1837 = vrcp.pop %v1836
        %v1838 = vmul.f32 %v1836, %v1837
        %v1839 = vsub.f32 1.0, %v1838
        %v1840 = vmul.f32 %v1837, %v1839
        %v1841 = vadd.f32 %v1837, %v1840
        %vm1842 = vweird.f32 %v1836
        %vm1843 = vweird.f32 %v1837
        %vm1844 = vmor %vm1842, %vm1843
        %v1845 = vsel %vm1844, %v1837, %v1841
        %v1846 = vand.u32 2147483647, %v1836
        %vm1847 = vcmp.eq.f32.partialorder %v1846, 8.507059e+37
        %v1848 = vand.u32 %v1836, 2147483648
        %v1849 = vor.u32 1.1754944e-38, %v1848
        %v1850 = vsel %vm1847, %v1849, %v1845
        %v1851 = vmul.f32 1.0, %v1850
        %v1852 = vmul.f32 %v1831, %v1634
        %v1853 = vmul.f32 %v1816, %v1832
        %v1854 = vadd.f32 %v1852, %v1853
        %v1855 = vtanh.pop %v1854
        %v1856 = vmul.f32 %v1851, %v1855
        %s1857 = scalar_lea.vmem [#allocation4], 40
        %1858 = vst [vmem:[%s1857] sm:$0xff] %v1856
        %s1859 = smul.u32 6, 4
        %s1860 = smul.addr %s1859, 8
        %s1861 = scalar_lea.vmem [#allocation3], %s1860
        %v1862 = vld [vmem:[%s1861] sm:$0xff]
        %v1863 = vld [vmem:[%s1861 + $0x8] sm:$0xff]
        %v1864 = vld [vmem:[%s1861 + $0x10] sm:$0xff]
        %v1865 = vld [vmem:[%s1861 + $0x18] sm:$0xff]
        %v1866 = vld [vmem:[#allocation8] sm:$0xff]
        %v1867 = vld [vmem:[#allocation8 + $0x8] sm:$0xff]
        %v1868 = vld [vmem:[#allocation8 + $0x10] sm:$0xff]
        %v1869 = vld [vmem:[#allocation8 + $0x18] sm:$0xff]
        %v1870 = vld [vmem:[#allocation8 + $0x20] sm:$0xff]
        %v1871 = vld [vmem:[#allocation8 + $0x28] sm:$0xff]
        %v1872 = vld [vmem:[#allocation8 + $0x30] sm:$0xff]
        %v1873 = vld [vmem:[#allocation8 + $0x38] sm:$0xff]
        %v1874 = vld [vmem:[#allocation8 + $0x40] sm:$0xff]
        %v1875 = vld [vmem:[#allocation8 + $0x48] sm:$0xff]
        %v1876 = vld [vmem:[#allocation8 + $0x50] sm:$0xff]
        %v1877 = vld [vmem:[#allocation8 + $0x58] sm:$0xff]
        %v1878 = vld [vmem:[#allocation8 + $0x60] sm:$0xff]
        %v1879 = vld [vmem:[#allocation8 + $0x68] sm:$0xff]
        %v1880 = vld [vmem:[#allocation8 + $0x70] sm:$0xff]
        %v1881 = vld [vmem:[#allocation8 + $0x78] sm:$0xff]
        %v1882 = vld [vmem:[#allocation8 + $0x80] sm:$0xff]
        %v1883 = vld [vmem:[#allocation8 + $0x88] sm:$0xff]
        %v1884 = vld [vmem:[#allocation8 + $0x90] sm:$0xff]
        %v1885 = vld [vmem:[#allocation8 + $0x98] sm:$0xff]
        %v1886 = vld [vmem:[#allocation8 + $0xa0] sm:$0xff]
        %v1887 = vld [vmem:[#allocation8 + $0xa8] sm:$0xff]
        %v1888 = vld [vmem:[#allocation8 + $0xb0] sm:$0xff]
        %v1889 = vld [vmem:[#allocation8 + $0xb8] sm:$0xff]
        %v1890 = vld [vmem:[#allocation8 + $0xc0] sm:$0xff]
        %v1891 = vld [vmem:[#allocation8 + $0xc8] sm:$0xff]
        %v1892 = vld [vmem:[#allocation8 + $0xd0] sm:$0xff]
        %v1893 = vld [vmem:[#allocation8 + $0xd8] sm:$0xff]
        %v1894 = vld [vmem:[#allocation8 + $0xe0] sm:$0xff]
        %v1895 = vld [vmem:[#allocation8 + $0xe8] sm:$0xff]
        %v1896 = vld [vmem:[#allocation8 + $0xf0] sm:$0xff]
        %v1897 = vld [vmem:[#allocation8 + $0xf8] sm:$0xff]
        %v1898 = vld [vmem:[#allocation8 + $0x100] sm:$0xff]
        %v1899 = vld [vmem:[#allocation8 + $0x108] sm:$0xff]
        %v1900 = vld [vmem:[#allocation8 + $0x110] sm:$0xff]
        %v1901 = vld [vmem:[#allocation8 + $0x118] sm:$0xff]
        %v1902 = vld [vmem:[#allocation8 + $0x120] sm:$0xff]
        %v1903 = vld [vmem:[#allocation8 + $0x128] sm:$0xff]
        %v1904 = vld [vmem:[#allocation8 + $0x130] sm:$0xff]
        %v1905 = vld [vmem:[#allocation8 + $0x138] sm:$0xff]
        %v1906 = vld [vmem:[#allocation8 + $0x140] sm:$0xff]
        %v1907 = vld [vmem:[#allocation8 + $0x148] sm:$0xff]
        %v1908 = vld [vmem:[#allocation8 + $0x150] sm:$0xff]
        %v1909 = vld [vmem:[#allocation8 + $0x158] sm:$0xff]
        %v1910 = vld [vmem:[#allocation8 + $0x160] sm:$0xff]
        %v1911 = vld [vmem:[#allocation8 + $0x168] sm:$0xff]
        %v1912 = vld [vmem:[#allocation8 + $0x170] sm:$0xff]
        %v1913 = vld [vmem:[#allocation8 + $0x178] sm:$0xff]
        %v1914 = vld [vmem:[#allocation8 + $0x180] sm:$0xff]
        %v1915 = vld [vmem:[#allocation8 + $0x188] sm:$0xff]
        %v1916 = vld [vmem:[#allocation8 + $0x190] sm:$0xff]
        %v1917 = vld [vmem:[#allocation8 + $0x198] sm:$0xff]
        %v1918 = vld [vmem:[#allocation8 + $0x1a0] sm:$0xff]
        %v1919 = vld [vmem:[#allocation8 + $0x1a8] sm:$0xff]
        %v1920 = vld [vmem:[#allocation8 + $0x1b0] sm:$0xff]
        %v1921 = vld [vmem:[#allocation8 + $0x1b8] sm:$0xff]
        %v1922 = vld [vmem:[#allocation8 + $0x1c0] sm:$0xff]
        %v1923 = vld [vmem:[#allocation8 + $0x1c8] sm:$0xff]
        %v1924 = vld [vmem:[#allocation8 + $0x1d0] sm:$0xff]
        %v1925 = vld [vmem:[#allocation8 + $0x1d8] sm:$0xff]
        %v1926 = vld [vmem:[#allocation8 + $0x1e0] sm:$0xff]
        %v1927 = vld [vmem:[#allocation8 + $0x1e8] sm:$0xff]
        %v1928 = vld [vmem:[#allocation8 + $0x1f0] sm:$0xff]
        %v1929 = vld [vmem:[#allocation8 + $0x1f8] sm:$0xff]
        %1930 = vmatpush.msra.mxu0 %v1926
        %1931 = vmatpush.msra.mxu0 %v1922
        %1932 = vmatpush.msra.mxu0 %v1918
        %1933 = vmatpush.msra.mxu0 %v1914
        %1934 = vmatpush.msra.mxu0 %v1910
        %1935 = vmatpush.msra.mxu0 %v1906
        %1936 = vmatpush.msra.mxu0 %v1902
        %1937 = vmatpush.msra.mxu0 %v1898
        %1938 = vmatpush.msra.mxu0 %v1894
        %1939 = vmatpush.msra.mxu0 %v1890
        %1940 = vmatpush.msra.mxu0 %v1886
        %1941 = vmatpush.msra.mxu0 %v1882
        %1942 = vmatpush.msra.mxu0 %v1878
        %1943 = vmatpush.msra.mxu0 %v1874
        %1944 = vmatpush.msra.mxu0 %v1870
        %1945 = vmatpush.msra.mxu0 %v1866
        %1946 = vmatmul.f32.gmra.mxu0 %v1856
        %v1947 = vpop.f32.mrf.mxu0
        %v1948 = vadd.f32 0.0, %v1947
        %1949 = vdwg.mxu0
        %1950 = vmatpush.msra.mxu0 %v1927
        %1951 = vmatpush.msra.mxu0 %v1923
        %1952 = vmatpush.msra.mxu0 %v1919
        %1953 = vmatpush.msra.mxu0 %v1915
        %1954 = vmatpush.msra.mxu0 %v1911
        %1955 = vmatpush.msra.mxu0 %v1907
        %1956 = vmatpush.msra.mxu0 %v1903
        %1957 = vmatpush.msra.mxu0 %v1899
        %1958 = vmatpush.msra.mxu0 %v1895
        %1959 = vmatpush.msra.mxu0 %v1891
        %1960 = vmatpush.msra.mxu0 %v1887
        %1961 = vmatpush.msra.mxu0 %v1883
        %1962 = vmatpush.msra.mxu0 %v1879
        %1963 = vmatpush.msra.mxu0 %v1875
        %1964 = vmatpush.msra.mxu0 %v1871
        %1965 = vmatpush.msra.mxu0 %v1867
        %1966 = vmatmul.f32.gmra.mxu0 %v1856
        %v1967 = vpop.f32.mrf.mxu0
        %v1968 = vadd.f32 0.0, %v1967
        %1969 = vdwg.mxu0
        %1970 = vmatpush.msra.mxu0 %v1928
        %1971 = vmatpush.msra.mxu0 %v1924
        %1972 = vmatpush.msra.mxu0 %v1920
        %1973 = vmatpush.msra.mxu0 %v1916
        %1974 = vmatpush.msra.mxu0 %v1912
        %1975 = vmatpush.msra.mxu0 %v1908
        %1976 = vmatpush.msra.mxu0 %v1904
        %1977 = vmatpush.msra.mxu0 %v1900
        %1978 = vmatpush.msra.mxu0 %v1896
        %1979 = vmatpush.msra.mxu0 %v1892
        %1980 = vmatpush.msra.mxu0 %v1888
        %1981 = vmatpush.msra.mxu0 %v1884
        %1982 = vmatpush.msra.mxu0 %v1880
        %1983 = vmatpush.msra.mxu0 %v1876
        %1984 = vmatpush.msra.mxu0 %v1872
        %1985 = vmatpush.msra.mxu0 %v1868
        %1986 = vmatmul.f32.gmra.mxu0 %v1856
        %v1987 = vpop.f32.mrf.mxu0
        %v1988 = vadd.f32 0.0, %v1987
        %1989 = vdwg.mxu0
        %1990 = vmatpush.msra.mxu0 %v1929
        %1991 = vmatpush.msra.mxu0 %v1925
        %1992 = vmatpush.msra.mxu0 %v1921
        %1993 = vmatpush.msra.mxu0 %v1917
        %1994 = vmatpush.msra.mxu0 %v1913
        %1995 = vmatpush.msra.mxu0 %v1909
        %1996 = vmatpush.msra.mxu0 %v1905
        %1997 = vmatpush.msra.mxu0 %v1901
        %1998 = vmatpush.msra.mxu0 %v1897
        %1999 = vmatpush.msra.mxu0 %v1893
        %2000 = vmatpush.msra.mxu0 %v1889
        %2001 = vmatpush.msra.mxu0 %v1885
        %2002 = vmatpush.msra.mxu0 %v1881
        %2003 = vmatpush.msra.mxu0 %v1877
        %2004 = vmatpush.msra.mxu0 %v1873
        %2005 = vmatpush.msra.mxu0 %v1869
        %2006 = vmatmul.f32.gmra.mxu0 %v1856
        %v2007 = vpop.f32.mrf.mxu0
        %v2008 = vadd.f32 0.0, %v2007
        %2009 = vdwg.mxu0
        %v2010 = vadd.f32 %v1862, %v1948
        %v2011 = vadd.f32 %v1863, %v1968
        %v2012 = vadd.f32 %v1864, %v1988
        %v2013 = vadd.f32 %v1865, %v2008
        %v2014 = vxor.u32 %v2010, 2147483648
        %v2015 = vxor.u32 %v2011, 2147483648
        %v2016 = vmul.f32 %v2014, 1.442695
        %v2017 = vpow.pop %v2016
        %v2018 = vmul.f32 %v2015, 1.442695
        %v2019 = vpow.pop %v2018
        %v2020 = vadd.f32 %v2017, 1.0
        %v2021 = vadd.f32 %v2019, 1.0
        %v2022 = vrcp.pop %v2020
        %v2023 = vmul.f32 %v2020, %v2022
        %v2024 = vsub.f32 1.0, %v2023
        %v2025 = vmul.f32 %v2022, %v2024
        %v2026 = vadd.f32 %v2022, %v2025
        %vm2027 = vweird.f32 %v2020
        %vm2028 = vweird.f32 %v2022
        %vm2029 = vmor %vm2027, %vm2028
        %v2030 = vsel %vm2029, %v2022, %v2026
        %v2031 = vand.u32 2147483647, %v2020
        %vm2032 = vcmp.eq.f32.partialorder %v2031, 8.507059e+37
        %v2033 = vand.u32 %v2020, 2147483648
        %v2034 = vor.u32 1.1754944e-38, %v2033
        %v2035 = vsel %vm2032, %v2034, %v2030
        %v2036 = vmul.f32 1.0, %v2035
        %v2037 = vrcp.pop %v2021
        %v2038 = vmul.f32 %v2021, %v2037
        %v2039 = vsub.f32 1.0, %v2038
        %v2040 = vmul.f32 %v2037, %v2039
        %v2041 = vadd.f32 %v2037, %v2040
        %vm2042 = vweird.f32 %v2021
        %vm2043 = vweird.f32 %v2037
        %vm2044 = vmor %vm2042, %vm2043
        %v2045 = vsel %vm2044, %v2037, %v2041
        %v2046 = vand.u32 2147483647, %v2021
        %vm2047 = vcmp.eq.f32.partialorder %v2046, 8.507059e+37
        %v2048 = vand.u32 %v2021, 2147483648
        %v2049 = vor.u32 1.1754944e-38, %v2048
        %v2050 = vsel %vm2047, %v2049, %v2045
        %v2051 = vmul.f32 1.0, %v2050
        %v2052 = vtanh.pop %v2012
        %v2053 = vxor.u32 %v2013, 2147483648
        %v2054 = vmul.f32 %v2053, 1.442695
        %v2055 = vpow.pop %v2054
        %v2056 = vadd.f32 %v2055, 1.0
        %v2057 = vrcp.pop %v2056
        %v2058 = vmul.f32 %v2056, %v2057
        %v2059 = vsub.f32 1.0, %v2058
        %v2060 = vmul.f32 %v2057, %v2059
        %v2061 = vadd.f32 %v2057, %v2060
        %vm2062 = vweird.f32 %v2056
        %vm2063 = vweird.f32 %v2057
        %vm2064 = vmor %vm2062, %vm2063
        %v2065 = vsel %vm2064, %v2057, %v2061
        %v2066 = vand.u32 2147483647, %v2056
        %vm2067 = vcmp.eq.f32.partialorder %v2066, 8.507059e+37
        %v2068 = vand.u32 %v2056, 2147483648
        %v2069 = vor.u32 1.1754944e-38, %v2068
        %v2070 = vsel %vm2067, %v2069, %v2065
        %v2071 = vmul.f32 1.0, %v2070
        %v2072 = vmul.f32 %v2051, %v1854
        %v2073 = vmul.f32 %v2036, %v2052
        %v2074 = vadd.f32 %v2072, %v2073
        %v2075 = vtanh.pop %v2074
        %v2076 = vmul.f32 %v2071, %v2075
        %s2077 = scalar_lea.vmem [#allocation4], 48
        %2078 = vst [vmem:[%s2077] sm:$0xff] %v2076
        %s2079 = smul.u32 7, 4
        %s2080 = smul.addr %s2079, 8
        %s2081 = scalar_lea.vmem [#allocation3], %s2080
        %v2082 = vld [vmem:[%s2081] sm:$0xff]
        %v2083 = vld [vmem:[%s2081 + $0x8] sm:$0xff]
        %v2084 = vld [vmem:[%s2081 + $0x10] sm:$0xff]
        %v2085 = vld [vmem:[%s2081 + $0x18] sm:$0xff]
        %v2086 = vld [vmem:[#allocation8] sm:$0xff]
        %v2087 = vld [vmem:[#allocation8 + $0x8] sm:$0xff]
        %v2088 = vld [vmem:[#allocation8 + $0x10] sm:$0xff]
        %v2089 = vld [vmem:[#allocation8 + $0x18] sm:$0xff]
        %v2090 = vld [vmem:[#allocation8 + $0x20] sm:$0xff]
        %v2091 = vld [vmem:[#allocation8 + $0x28] sm:$0xff]
        %v2092 = vld [vmem:[#allocation8 + $0x30] sm:$0xff]
        %v2093 = vld [vmem:[#allocation8 + $0x38] sm:$0xff]
        %v2094 = vld [vmem:[#allocation8 + $0x40] sm:$0xff]
        %v2095 = vld [vmem:[#allocation8 + $0x48] sm:$0xff]
        %v2096 = vld [vmem:[#allocation8 + $0x50] sm:$0xff]
        %v2097 = vld [vmem:[#allocation8 + $0x58] sm:$0xff]
        %v2098 = vld [vmem:[#allocation8 + $0x60] sm:$0xff]
        %v2099 = vld [vmem:[#allocation8 + $0x68] sm:$0xff]
        %v2100 = vld [vmem:[#allocation8 + $0x70] sm:$0xff]
        %v2101 = vld [vmem:[#allocation8 + $0x78] sm:$0xff]
        %v2102 = vld [vmem:[#allocation8 + $0x80] sm:$0xff]
        %v2103 = vld [vmem:[#allocation8 + $0x88] sm:$0xff]
        %v2104 = vld [vmem:[#allocation8 + $0x90] sm:$0xff]
        %v2105 = vld [vmem:[#allocation8 + $0x98] sm:$0xff]
        %v2106 = vld [vmem:[#allocation8 + $0xa0] sm:$0xff]
        %v2107 = vld [vmem:[#allocation8 + $0xa8] sm:$0xff]
        %v2108 = vld [vmem:[#allocation8 + $0xb0] sm:$0xff]
        %v2109 = vld [vmem:[#allocation8 + $0xb8] sm:$0xff]
        %v2110 = vld [vmem:[#allocation8 + $0xc0] sm:$0xff]
        %v2111 = vld [vmem:[#allocation8 + $0xc8] sm:$0xff]
        %v2112 = vld [vmem:[#allocation8 + $0xd0] sm:$0xff]
        %v2113 = vld [vmem:[#allocation8 + $0xd8] sm:$0xff]
        %v2114 = vld [vmem:[#allocation8 + $0xe0] sm:$0xff]
        %v2115 = vld [vmem:[#allocation8 + $0xe8] sm:$0xff]
        %v2116 = vld [vmem:[#allocation8 + $0xf0] sm:$0xff]
        %v2117 = vld [vmem:[#allocation8 + $0xf8] sm:$0xff]
        %v2118 = vld [vmem:[#allocation8 + $0x100] sm:$0xff]
        %v2119 = vld [vmem:[#allocation8 + $0x108] sm:$0xff]
        %v2120 = vld [vmem:[#allocation8 + $0x110] sm:$0xff]
        %v2121 = vld [vmem:[#allocation8 + $0x118] sm:$0xff]
        %v2122 = vld [vmem:[#allocation8 + $0x120] sm:$0xff]
        %v2123 = vld [vmem:[#allocation8 + $0x128] sm:$0xff]
        %v2124 = vld [vmem:[#allocation8 + $0x130] sm:$0xff]
        %v2125 = vld [vmem:[#allocation8 + $0x138] sm:$0xff]
        %v2126 = vld [vmem:[#allocation8 + $0x140] sm:$0xff]
        %v2127 = vld [vmem:[#allocation8 + $0x148] sm:$0xff]
        %v2128 = vld [vmem:[#allocation8 + $0x150] sm:$0xff]
        %v2129 = vld [vmem:[#allocation8 + $0x158] sm:$0xff]
        %v2130 = vld [vmem:[#allocation8 + $0x160] sm:$0xff]
        %v2131 = vld [vmem:[#allocation8 + $0x168] sm:$0xff]
        %v2132 = vld [vmem:[#allocation8 + $0x170] sm:$0xff]
        %v2133 = vld [vmem:[#allocation8 + $0x178] sm:$0xff]
        %v2134 = vld [vmem:[#allocation8 + $0x180] sm:$0xff]
        %v2135 = vld [vmem:[#allocation8 + $0x188] sm:$0xff]
        %v2136 = vld [vmem:[#allocation8 + $0x190] sm:$0xff]
        %v2137 = vld [vmem:[#allocation8 + $0x198] sm:$0xff]
        %v2138 = vld [vmem:[#allocation8 + $0x1a0] sm:$0xff]
        %v2139 = vld [vmem:[#allocation8 + $0x1a8] sm:$0xff]
        %v2140 = vld [vmem:[#allocation8 + $0x1b0] sm:$0xff]
        %v2141 = vld [vmem:[#allocation8 + $0x1b8] sm:$0xff]
        %v2142 = vld [vmem:[#allocation8 + $0x1c0] sm:$0xff]
        %v2143 = vld [vmem:[#allocation8 + $0x1c8] sm:$0xff]
        %v2144 = vld [vmem:[#allocation8 + $0x1d0] sm:$0xff]
        %v2145 = vld [vmem:[#allocation8 + $0x1d8] sm:$0xff]
        %v2146 = vld [vmem:[#allocation8 + $0x1e0] sm:$0xff]
        %v2147 = vld [vmem:[#allocation8 + $0x1e8] sm:$0xff]
        %v2148 = vld [vmem:[#allocation8 + $0x1f0] sm:$0xff]
        %v2149 = vld [vmem:[#allocation8 + $0x1f8] sm:$0xff]
        %2150 = vmatpush.msra.mxu0 %v2146
        %2151 = vmatpush.msra.mxu0 %v2142
        %2152 = vmatpush.msra.mxu0 %v2138
        %2153 = vmatpush.msra.mxu0 %v2134
        %2154 = vmatpush.msra.mxu0 %v2130
        %2155 = vmatpush.msra.mxu0 %v2126
        %2156 = vmatpush.msra.mxu0 %v2122
        %2157 = vmatpush.msra.mxu0 %v2118
        %2158 = vmatpush.msra.mxu0 %v2114
        %2159 = vmatpush.msra.mxu0 %v2110
        %2160 = vmatpush.msra.mxu0 %v2106
        %2161 = vmatpush.msra.mxu0 %v2102
        %2162 = vmatpush.msra.mxu0 %v2098
        %2163 = vmatpush.msra.mxu0 %v2094
        %2164 = vmatpush.msra.mxu0 %v2090
        %2165 = vmatpush.msra.mxu0 %v2086
        %2166 = vmatmul.f32.gmra.mxu0 %v2076
        %v2167 = vpop.f32.mrf.mxu0
        %v2168 = vadd.f32 0.0, %v2167
        %2169 = vdwg.mxu0
        %2170 = vmatpush.msra.mxu0 %v2147
        %2171 = vmatpush.msra.mxu0 %v2143
        %2172 = vmatpush.msra.mxu0 %v2139
        %2173 = vmatpush.msra.mxu0 %v2135
        %2174 = vmatpush.msra.mxu0 %v2131
        %2175 = vmatpush.msra.mxu0 %v2127
        %2176 = vmatpush.msra.mxu0 %v2123
        %2177 = vmatpush.msra.mxu0 %v2119
        %2178 = vmatpush.msra.mxu0 %v2115
        %2179 = vmatpush.msra.mxu0 %v2111
        %2180 = vmatpush.msra.mxu0 %v2107
        %2181 = vmatpush.msra.mxu0 %v2103
        %2182 = vmatpush.msra.mxu0 %v2099
        %2183 = vmatpush.msra.mxu0 %v2095
        %2184 = vmatpush.msra.mxu0 %v2091
        %2185 = vmatpush.msra.mxu0 %v2087
        %2186 = vmatmul.f32.gmra.mxu0 %v2076
        %v2187 = vpop.f32.mrf.mxu0
        %v2188 = vadd.f32 0.0, %v2187
        %2189 = vdwg.mxu0
        %2190 = vmatpush.msra.mxu0 %v2148
        %2191 = vmatpush.msra.mxu0 %v2144
        %2192 = vmatpush.msra.mxu0 %v2140
        %2193 = vmatpush.msra.mxu0 %v2136
        %2194 = vmatpush.msra.mxu0 %v2132
        %2195 = vmatpush.msra.mxu0 %v2128
        %2196 = vmatpush.msra.mxu0 %v2124
        %2197 = vmatpush.msra.mxu0 %v2120
        %2198 = vmatpush.msra.mxu0 %v2116
        %2199 = vmatpush.msra.mxu0 %v2112
        %2200 = vmatpush.msra.mxu0 %v2108
        %2201 = vmatpush.msra.mxu0 %v2104
        %2202 = vmatpush.msra.mxu0 %v2100
        %2203 = vmatpush.msra.mxu0 %v2096
        %2204 = vmatpush.msra.mxu0 %v2092
        %2205 = vmatpush.msra.mxu0 %v2088
        %2206 = vmatmul.f32.gmra.mxu0 %v2076
        %v2207 = vpop.f32.mrf.mxu0
        %v2208 = vadd.f32 0.0, %v2207
        %2209 = vdwg.mxu0
        %2210 = vmatpush.msra.mxu0 %v2149
        %2211 = vmatpush.msra.mxu0 %v2145
        %2212 = vmatpush.msra.mxu0 %v2141
        %2213 = vmatpush.msra.mxu0 %v2137
        %2214 = vmatpush.msra.mxu0 %v2133
        %2215 = vmatpush.msra.mxu0 %v2129
        %2216 = vmatpush.msra.mxu0 %v2125
        %2217 = vmatpush.msra.mxu0 %v2121
        %2218 = vmatpush.msra.mxu0 %v2117
        %2219 = vmatpush.msra.mxu0 %v2113
        %2220 = vmatpush.msra.mxu0 %v2109
        %2221 = vmatpush.msra.mxu0 %v2105
        %2222 = vmatpush.msra.mxu0 %v2101
        %2223 = vmatpush.msra.mxu0 %v2097
        %2224 = vmatpush.msra.mxu0 %v2093
        %2225 = vmatpush.msra.mxu0 %v2089
        %2226 = vmatmul.f32.gmra.mxu0 %v2076
        %v2227 = vpop.f32.mrf.mxu0
        %v2228 = vadd.f32 0.0, %v2227
        %2229 = vdwg.mxu0
        %v2230 = vadd.f32 %v2082, %v2168
        %v2231 = vadd.f32 %v2083, %v2188
        %v2232 = vadd.f32 %v2084, %v2208
        %v2233 = vadd.f32 %v2085, %v2228
        %v2234 = vxor.u32 %v2230, 2147483648
        %v2235 = vxor.u32 %v2231, 2147483648
        %v2236 = vmul.f32 %v2234, 1.442695
        %v2237 = vpow.pop %v2236
        %v2238 = vmul.f32 %v2235, 1.442695
        %v2239 = vpow.pop %v2238
        %v2240 = vadd.f32 %v2237, 1.0
        %v2241 = vadd.f32 %v2239, 1.0
        %v2242 = vrcp.pop %v2240
        %v2243 = vmul.f32 %v2240, %v2242
        %v2244 = vsub.f32 1.0, %v2243
        %v2245 = vmul.f32 %v2242, %v2244
        %v2246 = vadd.f32 %v2242, %v2245
        %vm2247 = vweird.f32 %v2240
        %vm2248 = vweird.f32 %v2242
        %vm2249 = vmor %vm2247, %vm2248
        %v2250 = vsel %vm2249, %v2242, %v2246
        %v2251 = vand.u32 2147483647, %v2240
        %vm2252 = vcmp.eq.f32.partialorder %v2251, 8.507059e+37
        %v2253 = vand.u32 %v2240, 2147483648
        %v2254 = vor.u32 1.1754944e-38, %v2253
        %v2255 = vsel %vm2252, %v2254, %v2250
        %v2256 = vmul.f32 1.0, %v2255
        %v2257 = vrcp.pop %v2241
        %v2258 = vmul.f32 %v2241, %v2257
        %v2259 = vsub.f32 1.0, %v2258
        %v2260 = vmul.f32 %v2257, %v2259
        %v2261 = vadd.f32 %v2257, %v2260
        %vm2262 = vweird.f32 %v2241
        %vm2263 = vweird.f32 %v2257
        %vm2264 = vmor %vm2262, %vm2263
        %v2265 = vsel %vm2264, %v2257, %v2261
        %v2266 = vand.u32 2147483647, %v2241
        %vm2267 = vcmp.eq.f32.partialorder %v2266, 8.507059e+37
        %v2268 = vand.u32 %v2241, 2147483648
        %v2269 = vor.u32 1.1754944e-38, %v2268
        %v2270 = vsel %vm2267, %v2269, %v2265
        %v2271 = vmul.f32 1.0, %v2270
        %v2272 = vtanh.pop %v2232
        %v2273 = vxor.u32 %v2233, 2147483648
        %v2274 = vmul.f32 %v2273, 1.442695
        %v2275 = vpow.pop %v2274
        %v2276 = vadd.f32 %v2275, 1.0
        %v2277 = vrcp.pop %v2276
        %v2278 = vmul.f32 %v2276, %v2277
        %v2279 = vsub.f32 1.0, %v2278
        %v2280 = vmul.f32 %v2277, %v2279
        %v2281 = vadd.f32 %v2277, %v2280
        %vm2282 = vweird.f32 %v2276
        %vm2283 = vweird.f32 %v2277
        %vm2284 = vmor %vm2282, %vm2283
        %v2285 = vsel %vm2284, %v2277, %v2281
        %v2286 = vand.u32 2147483647, %v2276
        %vm2287 = vcmp.eq.f32.partialorder %v2286, 8.507059e+37
        %v2288 = vand.u32 %v2276, 2147483648
        %v2289 = vor.u32 1.1754944e-38, %v2288
        %v2290 = vsel %vm2287, %v2289, %v2285
        %v2291 = vmul.f32 1.0, %v2290
        %v2292 = vmul.f32 %v2271, %v2074
        %v2293 = vmul.f32 %v2256, %v2272
        %v2294 = vadd.f32 %v2292, %v2293
        %v2295 = vtanh.pop %v2294
        %v2296 = vmul.f32 %v2291, %v2295
        %s2297 = scalar_lea.vmem [#allocation4], 56
        %2298 = vst [vmem:[%s2297] sm:$0xff] %v2296
        %v2299 = vld [vmem:[#allocation4] sm:$0xff]
        %v2300 = vld [vmem:[#allocation4 + $0x8] sm:$0xff]
        %v2301 = vld [vmem:[#allocation4 + $0x10] sm:$0xff]
        %v2302 = vld [vmem:[#allocation4 + $0x18] sm:$0xff]
        %v2303 = vld [vmem:[#allocation4 + $0x20] sm:$0xff]
        %v2304 = vld [vmem:[#allocation4 + $0x28] sm:$0xff]
        %v2305 = vld [vmem:[#allocation4 + $0x30] sm:$0xff]
        %v2306 = vld [vmem:[#allocation4 + $0x38] sm:$0xff]
        %v2307 = vld [vmem:[%s5] sm:$0xff]
        %v2308 = vld [vmem:[%s5 + $0x8] sm:$0xff]
        %v2309 = vld [vmem:[%s5 + $0x10] sm:$0xff]
        %v2310 = vld [vmem:[%s5 + $0x18] sm:$0xff]
        %v2311 = vld [vmem:[%s5 + $0x20] sm:$0xff]
        %v2312 = vld [vmem:[%s5 + $0x28] sm:$0xff]
        %v2313 = vld [vmem:[%s5 + $0x30] sm:$0xff]
        %v2314 = vld [vmem:[%s5 + $0x38] sm:$0xff]
        %v2315 = vld [vmem:[%s5 + $0x40] sm:$0xff]
        %v2316 = vld [vmem:[%s5 + $0x48] sm:$0xff]
        %v2317 = vld [vmem:[%s5 + $0x50] sm:$0xff]
        %v2318 = vld [vmem:[%s5 + $0x58] sm:$0xff]
        %v2319 = vld [vmem:[%s5 + $0x60] sm:$0xff]
        %v2320 = vld [vmem:[%s5 + $0x68] sm:$0xff]
        %v2321 = vld [vmem:[%s5 + $0x70] sm:$0xff]
        %v2322 = vld [vmem:[%s5 + $0x78] sm:$0xff]
        %v2323 = vld [vmem:[%s6] sm:$0x1]
        %v2325 = vperm.slane %v2323, 0
        %2327 = vmatpush.msra.mxu0 %v2322
        %2328 = vmatpush.msra.mxu0 %v2321
        %2329 = vmatpush.msra.mxu0 %v2320
        %2330 = vmatpush.msra.mxu0 %v2319
        %2331 = vmatpush.msra.mxu0 %v2318
        %2332 = vmatpush.msra.mxu0 %v2317
        %2333 = vmatpush.msra.mxu0 %v2316
        %2334 = vmatpush.msra.mxu0 %v2315
        %2335 = vmatpush.msra.mxu0 %v2314
        %2336 = vmatpush.msra.mxu0 %v2313
        %2337 = vmatpush.msra.mxu0 %v2312
        %2338 = vmatpush.msra.mxu0 %v2311
        %2339 = vmatpush.msra.mxu0 %v2310
        %2340 = vmatpush.msra.mxu0 %v2309
        %2341 = vmatpush.msra.mxu0 %v2308
        %2342 = vmatpush.msra.mxu0 %v2307
        %2343 = vmatmul.f32.gmra.mxu0 %v2299
        %v2344 = vpop.f32.mrf.mxu0
        %v2345 = vadd.f32 %v2325, %v2344
        %2346 = vmatmul.f32.gmra.mxu0 %v2300
        %v2347 = vpop.f32.mrf.mxu0
        %v2348 = vadd.f32 %v2325, %v2347
        %2349 = vmatmul.f32.gmra.mxu0 %v2301
        %v2350 = vpop.f32.mrf.mxu0
        %v2351 = vadd.f32 %v2325, %v2350
        %2352 = vmatmul.f32.gmra.mxu0 %v2302
        %v2353 = vpop.f32.mrf.mxu0
        %v2354 = vadd.f32 %v2325, %v2353
        %2355 = vmatmul.f32.gmra.mxu0 %v2303
        %v2356 = vpop.f32.mrf.mxu0
        %v2357 = vadd.f32 %v2325, %v2356
        %2358 = vmatmul.f32.gmra.mxu0 %v2304
        %v2359 = vpop.f32.mrf.mxu0
        %v2360 = vadd.f32 %v2325, %v2359
        %2361 = vmatmul.f32.gmra.mxu0 %v2305
        %v2362 = vpop.f32.mrf.mxu0
        %v2363 = vadd.f32 %v2325, %v2362
        %2364 = vmatmul.f32.gmra.mxu0 %v2306
        %v2365 = vpop.f32.mrf.mxu0
        %v2366 = vadd.f32 %v2325, %v2365
        %2367 = vdwg.mxu0
        %vm2368 = vcmask 64512
        %v2369 = vsel %vm2368, %v2345, -inf
        %2370 = vmax.xlane.f32.xlu0 %v2369
        %v2371 = vpop.xlane.xlu0 %2370
        %v2372 = vsel %vm2368, %v2348, -inf
        %2373 = vmax.xlane.f32.xlu0 %v2372
        %v2374 = vpop.xlane.xlu0 %2373
        %v2375 = vsel %vm2368, %v2351, -inf
        %2376 = vmax.xlane.f32.xlu0 %v2375
        %v2377 = vpop.xlane.xlu0 %2376
        %v2378 = vsel %vm2368, %v2354, -inf
        %2379 = vmax.xlane.f32.xlu0 %v2378
        %v2380 = vpop.xlane.xlu0 %2379
        %v2381 = vsel %vm2368, %v2357, -inf
        %2382 = vmax.xlane.f32.xlu0 %v2381
        %v2383 = vpop.xlane.xlu0 %2382
        %v2384 = vsel %vm2368, %v2360, -inf
        %2385 = vmax.xlane.f32.xlu0 %v2384
        %v2386 = vpop.xlane.xlu0 %2385
        %v2387 = vsel %vm2368, %v2363, -inf
        %2388 = vmax.xlane.f32.xlu0 %v2387
        %v2389 = vpop.xlane.xlu0 %2388
        %v2390 = vsel %vm2368, %v2366, -inf
        %2391 = vmax.xlane.f32.xlu0 %v2390
        %v2392 = vpop.xlane.xlu0 %2391
        %v2393 = vsub.f32 %v2345, %v2371
        %v2394 = vsub.f32 %v2348, %v2374
        %v2395 = vsub.f32 %v2351, %v2377
        %v2396 = vsub.f32 %v2354, %v2380
        %v2397 = vsub.f32 %v2357, %v2383
        %v2398 = vsub.f32 %v2360, %v2386
        %v2399 = vsub.f32 %v2363, %v2389
        %v2400 = vsub.f32 %v2366, %v2392
        %v2401 = vmul.f32 %v2393, 1.442695
        %v2402 = vpow.pop %v2401
        %v2403 = vmul.f32 %v2394, 1.442695
        %v2404 = vpow.pop %v2403
        %v2405 = vmul.f32 %v2395, 1.442695
        %v2406 = vpow.pop %v2405
        %v2407 = vmul.f32 %v2396, 1.442695
        %v2408 = vpow.pop %v2407
        %v2409 = vmul.f32 %v2397, 1.442695
        %v2410 = vpow.pop %v2409
        %v2411 = vmul.f32 %v2398, 1.442695
        %v2412 = vpow.pop %v2411
        %v2413 = vmul.f32 %v2399, 1.442695
        %v2414 = vpow.pop %v2413
        %v2415 = vmul.f32 %v2400, 1.442695
        %v2416 = vpow.pop %v2415
        %v2417 = vsel %vm2368, %v2402, 0.0
        %2418 = vadd.xlane.f32.xlu0 %v2417
        %v2419 = vpop.xlane.xlu0 %2418
        %v2420 = vsel %vm2368, %v2404, 0.0
        %2421 = vadd.xlane.f32.xlu0 %v2420
        %v2422 = vpop.xlane.xlu0 %2421
        %v2423 = vsel %vm2368, %v2406, 0.0
        %2424 = vadd.xlane.f32.xlu0 %v2423
        %v2425 = vpop.xlane.xlu0 %2424
        %v2426 = vsel %vm2368, %v2408, 0.0
        %2427 = vadd.xlane.f32.xlu0 %v2426
        %v2428 = vpop.xlane.xlu0 %2427
        %v2429 = vsel %vm2368, %v2410, 0.0
        %2430 = vadd.xlane.f32.xlu0 %v2429
        %v2431 = vpop.xlane.xlu0 %2430
        %v2432 = vsel %vm2368, %v2412, 0.0
        %2433 = vadd.xlane.f32.xlu0 %v2432
        %v2434 = vpop.xlane.xlu0 %2433
        %v2435 = vsel %vm2368, %v2414, 0.0
        %2436 = vadd.xlane.f32.xlu0 %v2435
        %v2437 = vpop.xlane.xlu0 %2436
        %v2438 = vsel %vm2368, %v2416, 0.0
        %2439 = vadd.xlane.f32.xlu0 %v2438
        %v2440 = vpop.xlane.xlu0 %2439
        %v2441 = vlog2.pop %v2419
        %v2442 = vmul.f32 %v2441, 0.6931472
        %v2443 = vlog2.pop %v2422
        %v2444 = vmul.f32 %v2443, 0.6931472
        %v2445 = vlog2.pop %v2425
        %v2446 = vmul.f32 %v2445, 0.6931472
        %v2447 = vlog2.pop %v2428
        %v2448 = vmul.f32 %v2447, 0.6931472
        %v2449 = vlog2.pop %v2431
        %v2450 = vmul.f32 %v2449, 0.6931472
        %v2451 = vlog2.pop %v2434
        %v2452 = vmul.f32 %v2451, 0.6931472
        %v2453 = vlog2.pop %v2437
        %v2454 = vmul.f32 %v2453, 0.6931472
        %v2455 = vlog2.pop %v2440
        %v2456 = vmul.f32 %v2455, 0.6931472
        %v2457 = vsub.f32 %v2393, %v2442
        %v2458 = vsub.f32 %v2394, %v2444
        %v2459 = vsub.f32 %v2395, %v2446
        %v2460 = vsub.f32 %v2396, %v2448
        %v2461 = vsub.f32 %v2397, %v2450
        %v2462 = vsub.f32 %v2398, %v2452
        %v2463 = vsub.f32 %v2399, %v2454
        %v2464 = vsub.f32 %v2400, %v2456
        %2465 = vst.msk [vmem:[%s231] sm:$0xff] %vm2368, %v2457
        %2466 = vst.msk [vmem:[%s231 + $0x8] sm:$0xff] %vm2368, %v2458
        %2467 = vst.msk [vmem:[%s231 + $0x10] sm:$0xff] %vm2368, %v2459
        %2468 = vst.msk [vmem:[%s231 + $0x18] sm:$0xff] %vm2368, %v2460
        %2469 = vst.msk [vmem:[%s231 + $0x20] sm:$0xff] %vm2368, %v2461
        %2470 = vst.msk [vmem:[%s231 + $0x28] sm:$0xff] %vm2368, %v2462
        %2471 = vst.msk [vmem:[%s231 + $0x30] sm:$0xff] %vm2368, %v2463
        %2472 = vst.msk [vmem:[%s231 + $0x38] sm:$0xff] %vm2368, %v2464
        %p2473 = scmp.lt.s32.totalorder %s27, 1
        %s2474 = scalar_select %p2473, %s27, 1
        %s2475 = smul.addr %s2474, 8
        %s2476 = smul.addr %s2475, 8
        %s2477 = scalar_lea.vmem %s7, %s2476
        // Predicated region
        $region89: #{pos_forward.1} parent=39 // pred_check
          %p2478 = pneg %p150
        $region90: #{pos_forward.1} parent=39 // pred_check_branch
          %2480 = sbr.rel (%p2478) target = $region92
        $region91: #{pos_forward.1} parent=39 // pred_region
          _
        $region92: #{pos_forward.1} parent=39 // pred_fallthru
          _
      $region40: #{pos_forward.1} parent=5 // pred_fallthru
        _
      %p2481 = scmp.le.s32.totalorder 2, %s22
      // Predicated region
      $region93: #{pos_forward.1} parent=5 // pred_check
        %p2482 = pneg %p2481
      $region94: #{pos_forward.1} parent=5 // pred_check_branch
        %2484 = sbr.rel (%p2482) target = $region96
      $region95: #{pos_forward.1} parent=5 // pred_region
        %s2485 = ssub.s32 %s22, 2
        // Predicated region
        $region97: #{pos_forward.1} parent=95 // pred_check
          %p2486 = pneg %p156
        $region98: #{pos_forward.1} parent=95 // pred_check_branch
          %2488 = sbr.rel (%p2486) target = $region100
        $region99: #{pos_forward.1} parent=95 // pred_region
          %p2489 = scmp.lt.s32.totalorder %s28, 1
          %s2490 = scalar_select %p2489, %s28, 1
          %s2491 = smul.addr %s2490, 8
          %s2492 = smul.addr %s2491, 8
          %s2493 = scalar_lea.vmem %s7, %s2492
        $region100: #{pos_forward.1} parent=95 // pred_fallthru
          _
      $region96: #{pos_forward.1} parent=5 // pred_fallthru
        _
    $region6: #{pos_forward.1} parent=1 // loop_footer
      %s26 = sadd.s32 1, %s22
    $region7: #{pos_forward.1} parent=1 // loop_footer_branch
      %21 = sbr.rel target = $region3
    $region8: #{pos_forward.1} parent=1 // loop_exit
      _
    %2494 = vsyncpa [#allocation9], 1
    %s2495 = scalar_lea.sflag [#allocation9], 1
    %2496 = vsyncpa %s2495, 1
  %2497 = vsyncmov [#allocation5]
  %s2498 = vpop.sfrf %2497
  %p2499 = scmp.eq.s32.totalorder %s2498, 0
  %p2500 = pneg %p2499
  %2502 = shalt.err (%p2500)

</llo_original>
